<compile_context>
chip_gen: v6e
topology: v6e:2x2x1
jax: 0.10.0
libtpu: 0.0.40
codegen_flags: <defaults>
</compile_context>

<pallas_src>
import jax
import jax.numpy as jnp
from jax import lax
from jax.experimental import pallas as pl
from jax.experimental.pallas import tpu as pltpu  # noqa: F401  (TPU backend)

B = 2
C_IN = 101 * 16          # 1616
L_IN = 8
K = 3
O = 16
L_OUT = L_IN - K + 1     # 6
L_POOL = L_OUT // 2      # 3
FLAT = O * L_POOL        # 48  (matches nn.Linear(48, 50))
H1 = 50
OUT_DIM = 101 * 16       # 1616

# contract the last (lane-dense) dims of both operands:  (M,C) x (N,C) -> (M,N)
_NT = (((1,), (1,)), ((), ()))


def cnn_kernel(x_ref, wconv_ref, bconv_ref, w1_ref, b1_ref, w2_ref, b2_ref,
               out_ref):
    bconv = bconv_ref[...]                       # (1, O)   f32
    b1 = b1_ref[...]                             # (1, H1)  f32

    # Conv1d with im2col fused: y_b = sum_k x[b, k:k+L_OUT, :] @ w_k^T  (f32 acc)
    accs = [jnp.zeros((L_OUT, O), jnp.float32) for _ in range(B)]
    for k in range(K):
        wk = wconv_ref[k].astype(jnp.float32)    # (O, C_IN)  bf16 -> f32 once/tap
        for b in range(B):
            xk = x_ref[b, k:k + L_OUT, :]        # (L_OUT, C_IN) contiguous slice
            accs[b] = accs[b] + lax.dot_general(
                xk, wk, _NT, preferred_element_type=jnp.float32)

    # ReLU -> MaxPool1d(2) -> Flatten -> Linear1, with the flatten folded into
    # Linear1: w1_ref is (L_POOL, O, H1), already matching PyTorch's (o, lp)
    # flatten order, so each pooled row multiplies its own (O, H1) slab.
    h_rows = []
    for b in range(B):
        y = jnp.maximum(accs[b] + bconv, 0.0)    # (L_OUT, O)
        hb = b1                                  # (1, H1)
        for lp in range(L_POOL):
            pooled = jnp.max(y[2 * lp:2 * lp + 2, :], axis=0, keepdims=True)  # (1, O)
            hb = hb + jnp.dot(pooled, w1_ref[lp],
                              preferred_element_type=jnp.float32)             # (1, H1)
        h_rows.append(hb)
    h = jnp.concatenate(h_rows, axis=0)          # (B, H1)

    # Linear2: lane-dense (B, 1616) output, bf16 weight up-cast, f32 accumulate.
    out_ref[...] = jnp.dot(h, w2_ref[...].astype(jnp.float32),
                           preferred_element_type=jnp.float32) + b2_ref[...]


def prepare_params(w_conv, b_conv, w1, b1, w2, b2):
    """One-time re-layout of the weights into kernel-friendly, lane-dense form.

    Called once at setup (NOT per forward call).  The two large weights are
    stored in bf16 to halve their per-call HBM->VMEM DMA.
    """
    wconv_k = jnp.transpose(w_conv, (2, 0, 1)).astype(jnp.bfloat16)    # (K, O, C_IN)
    bconv_r = b_conv.reshape(1, O).astype(jnp.float32)
    # PyTorch Flatten order is (o, lp): w1 column index = o*L_POOL + lp.
    w1_k = jnp.transpose(w1.reshape(H1, O, L_POOL), (2, 1, 0)).astype(jnp.float32)  # (L_POOL, O, H1)
    b1_r = b1.reshape(1, H1).astype(jnp.float32)
    w2_k = jnp.transpose(w2, (1, 0)).astype(jnp.bfloat16)              # (H1, OUT_DIM)
    b2_r = b2.reshape(1, OUT_DIM).astype(jnp.float32)
    return (wconv_k, bconv_r, w1_k, b1_r, w2_k, b2_r)


def _full(shape):
    return pl.BlockSpec(shape, lambda i, _n=len(shape): (0,) * _n)


@jax.jit
def cnn_forward(x, params):
    wconv_k, bconv_r, w1_k, b1_r, w2_k, b2_r = params
    # Only per-call glue: one transpose to the lane-dense (B, L_IN, C_IN) layout.
    x_t = jnp.transpose(x, (0, 2, 1))
    return pl.pallas_call(
        cnn_kernel,
        out_shape=jax.ShapeDtypeStruct((B, OUT_DIM), jnp.float32),
        grid=(1,),   # single block: workload fits VMEM everywhere; no tiling.
        in_specs=[
            _full((B, L_IN, C_IN)),
            _full((K, O, C_IN)),
            _full((1, O)),
            _full((L_POOL, O, H1)),
            _full((1, H1)),
            _full((H1, OUT_DIM)),
            _full((1, OUT_DIM)),
        ],
        out_specs=_full((B, OUT_DIM)),
    )(x_t, wconv_k, bconv_r, w1_k, b1_r, w2_k, b2_r)


if __name__ == "__main__":
    key = jax.random.PRNGKey(0)
    ks = jax.random.split(key, 7)
    x = jax.random.normal(ks[0], (B, C_IN, L_IN), jnp.float32)
    w_conv = jax.random.normal(ks[1], (O, C_IN, K), jnp.float32) * 0.02
    b_conv = jax.random.normal(ks[2], (O,), jnp.float32) * 0.02
    w1 = jax.random.normal(ks[3], (H1, FLAT), jnp.float32) * 0.1
    b1 = jax.random.normal(ks[4], (H1,), jnp.float32) * 0.1
    w2 = jax.random.normal(ks[5], (OUT_DIM, H1), jnp.float32) * 0.1
    b2 = jax.random.normal(ks[6], (OUT_DIM,), jnp.float32) * 0.1

    params = prepare_params(w_conv, b_conv, w1, b1, w2, b2)   # one-time layout/cast
    out = jax.block_until_ready(cnn_forward(x, params))

    # Pure-JAX reference with PyTorch semantics.  The two large weights are
    # bf16-quantized exactly as the kernel stores them (perf-review change),
    # so this validates the kernel's math directly.
    w_conv_q = w_conv.astype(jnp.bfloat16).astype(jnp.float32)
    w2_q = w2.astype(jnp.bfloat16).astype(jnp.float32)
    ref = jax.lax.conv_general_dilated(
        x, w_conv_q, window_strides=(1,), padding="VALID",
        dimension_numbers=("NCH", "OIH", "NCH"))
    ref = ref + b_conv[None, :, None]
    ref = jnp.maximum(ref, 0.0)
    ref = jnp.max(ref.reshape(B, O, L_POOL, 2), axis=-1)
    ref = ref.reshape(B, FLAT)                 # PyTorch Flatten order (o, lp)
    ref = ref @ w1.T + b1
    ref = ref @ w2_q.T + b2

    err = float(jnp.max(jnp.abs(out - ref)))
    assert jnp.allclose(out, ref, atol=5e-3, rtol=5e-3), f"max abs err {err}"
    print("KERNEL_OK")
</pallas_src>

<mosaic_0001>
module attributes {stable_mosaic.version = 11 : i64} {
  func.func @cnn_kernel(%arg0: i32, %arg1: memref<2x8x1616xf32, #tpu.memory_space<vmem>>, %arg2: memref<3x16x1616xbf16, #tpu.memory_space<vmem>>, %arg3: memref<1x16xf32, #tpu.memory_space<vmem>>, %arg4: memref<3x16x50xf32, #tpu.memory_space<vmem>>, %arg5: memref<1x50xf32, #tpu.memory_space<vmem>>, %arg6: memref<50x1616xbf16, #tpu.memory_space<vmem>>, %arg7: memref<1x1616xf32, #tpu.memory_space<vmem>>, %arg8: memref<2x1616xf32, #tpu.memory_space<vmem>>) attributes {dimension_semantics = [#tpu.dimension_semantics<arbitrary>], iteration_bounds = array<i64: 1>, scalar_prefetch = 0 : i64, scratch_operands = 0 : i64, tpu.core_type = #tpu.core_type<tc>, window_params = [{pipeline_mode = #tpu.pipeline_mode<synchronous>, transform_indices = @transform_0, window_bounds = array<i64: 2, 8, 1616>}, {pipeline_mode = #tpu.pipeline_mode<synchronous>, transform_indices = @transform_1, window_bounds = array<i64: 3, 16, 1616>}, {pipeline_mode = #tpu.pipeline_mode<synchronous>, transform_indices = @transform_2, window_bounds = array<i64: 1, 16>}, {pipeline_mode = #tpu.pipeline_mode<synchronous>, transform_indices = @transform_3, window_bounds = array<i64: 3, 16, 50>}, {pipeline_mode = #tpu.pipeline_mode<synchronous>, transform_indices = @transform_4, window_bounds = array<i64: 1, 50>}, {pipeline_mode = #tpu.pipeline_mode<synchronous>, transform_indices = @transform_5, window_bounds = array<i64: 50, 1616>}, {pipeline_mode = #tpu.pipeline_mode<synchronous>, transform_indices = @transform_6, window_bounds = array<i64: 1, 1616>}, {pipeline_mode = #tpu.pipeline_mode<synchronous>, transform_indices = @transform_7, window_bounds = array<i64: 2, 1616>}]} {
    %c0 = arith.constant 0 : index
    %c0_0 = arith.constant 0 : index
    %0 = vector.load %arg3[%c0, %c0_0] : memref<1x16xf32, #tpu.memory_space<vmem>>, vector<1x16xf32>
    %c0_1 = arith.constant 0 : index
    %c0_2 = arith.constant 0 : index
    %1 = vector.load %arg5[%c0_1, %c0_2] : memref<1x50xf32, #tpu.memory_space<vmem>>, vector<1x50xf32>
    %cst = arith.constant 0.000000e+00 : f32
    %2 = vector.broadcast %cst : f32 to vector<6x16xf32>
    %cst_3 = arith.constant 0.000000e+00 : f32
    %3 = vector.broadcast %cst_3 : f32 to vector<6x16xf32>
    %c0_4 = arith.constant 0 : index
    %c0_5 = arith.constant 0 : index
    %c0_6 = arith.constant 0 : index
    %4 = vector.load %arg2[%c0_4, %c0_5, %c0_6] : memref<3x16x1616xbf16, #tpu.memory_space<vmem>>, vector<1x16x1616xbf16>
    %5 = vector.shape_cast %4 : vector<1x16x1616xbf16> to vector<16x1616xbf16>
    %6 = arith.extf %5 : vector<16x1616xbf16> to vector<16x1616xf32>
    %c0_7 = arith.constant 0 : index
    %c0_8 = arith.constant 0 : index
    %c0_9 = arith.constant 0 : index
    %7 = vector.load %arg1[%c0_7, %c0_8, %c0_9] : memref<2x8x1616xf32, #tpu.memory_space<vmem>>, vector<1x6x1616xf32>
    %8 = vector.shape_cast %7 : vector<1x6x1616xf32> to vector<6x1616xf32>
    %cst_10 = arith.constant dense<0.000000e+00> : vector<6x16xf32>
    %9 = tpu.matmul %8, %6, %cst_10 {dimension_numbers = #tpu.dot_dimension_numbers<[1], [1], [0], [0], [0, 0, 1, 0], [], []>} : vector<6x1616xf32>, vector<16x1616xf32>, vector<6x16xf32> -> vector<6x16xf32>
    %10 = arith.addf %2, %9 : vector<6x16xf32>
    %c1 = arith.constant 1 : index
    %c0_11 = arith.constant 0 : index
    %c0_12 = arith.constant 0 : index
    %11 = vector.load %arg1[%c1, %c0_11, %c0_12] : memref<2x8x1616xf32, #tpu.memory_space<vmem>>, vector<1x6x1616xf32>
    %12 = vector.shape_cast %11 : vector<1x6x1616xf32> to vector<6x1616xf32>
    %cst_13 = arith.constant dense<0.000000e+00> : vector<6x16xf32>
    %13 = tpu.matmul %12, %6, %cst_13 {dimension_numbers = #tpu.dot_dimension_numbers<[1], [1], [0], [0], [0, 0, 1, 0], [], []>} : vector<6x1616xf32>, vector<16x1616xf32>, vector<6x16xf32> -> vector<6x16xf32>
    %14 = arith.addf %3, %13 : vector<6x16xf32>
    %c1_14 = arith.constant 1 : index
    %c0_15 = arith.constant 0 : index
    %c0_16 = arith.constant 0 : index
    %15 = vector.load %arg2[%c1_14, %c0_15, %c0_16] : memref<3x16x1616xbf16, #tpu.memory_space<vmem>>, vector<1x16x1616xbf16>
    %16 = vector.shape_cast %15 : vector<1x16x1616xbf16> to vector<16x1616xbf16>
    %17 = arith.extf %16 : vector<16x1616xbf16> to vector<16x1616xf32>
    %c0_17 = arith.constant 0 : index
    %c1_18 = arith.constant 1 : index
    %c0_19 = arith.constant 0 : index
    %18 = vector.load %arg1[%c0_17, %c1_18, %c0_19] : memref<2x8x1616xf32, #tpu.memory_space<vmem>>, vector<1x6x1616xf32>
    %19 = vector.shape_cast %18 : vector<1x6x1616xf32> to vector<6x1616xf32>
    %cst_20 = arith.constant dense<0.000000e+00> : vector<6x16xf32>
    %20 = tpu.matmul %19, %17, %cst_20 {dimension_numbers = #tpu.dot_dimension_numbers<[1], [1], [0], [0], [0, 0, 1, 0], [], []>} : vector<6x1616xf32>, vector<16x1616xf32>, vector<6x16xf32> -> vector<6x16xf32>
    %21 = arith.addf %10, %20 : vector<6x16xf32>
    %c1_21 = arith.constant 1 : index
    %c1_22 = arith.constant 1 : index
    %c0_23 = arith.constant 0 : index
    %22 = vector.load %arg1[%c1_21, %c1_22, %c0_23] : memref<2x8x1616xf32, #tpu.memory_space<vmem>>, vector<1x6x1616xf32>
    %23 = vector.shape_cast %22 : vector<1x6x1616xf32> to vector<6x1616xf32>
    %cst_24 = arith.constant dense<0.000000e+00> : vector<6x16xf32>
    %24 = tpu.matmul %23, %17, %cst_24 {dimension_numbers = #tpu.dot_dimension_numbers<[1], [1], [0], [0], [0, 0, 1, 0], [], []>} : vector<6x1616xf32>, vector<16x1616xf32>, vector<6x16xf32> -> vector<6x16xf32>
    %25 = arith.addf %14, %24 : vector<6x16xf32>
    %c2 = arith.constant 2 : index
    %c0_25 = arith.constant 0 : index
    %c0_26 = arith.constant 0 : index
    %26 = vector.load %arg2[%c2, %c0_25, %c0_26] : memref<3x16x1616xbf16, #tpu.memory_space<vmem>>, vector<1x16x1616xbf16>
    %27 = vector.shape_cast %26 : vector<1x16x1616xbf16> to vector<16x1616xbf16>
    %28 = arith.extf %27 : vector<16x1616xbf16> to vector<16x1616xf32>
    %c0_27 = arith.constant 0 : index
    %c2_28 = arith.constant 2 : index
    %c0_29 = arith.constant 0 : index
    %29 = vector.load %arg1[%c0_27, %c2_28, %c0_29] : memref<2x8x1616xf32, #tpu.memory_space<vmem>>, vector<1x6x1616xf32>
    %30 = vector.shape_cast %29 : vector<1x6x1616xf32> to vector<6x1616xf32>
    %cst_30 = arith.constant dense<0.000000e+00> : vector<6x16xf32>
    %31 = tpu.matmul %30, %28, %cst_30 {dimension_numbers = #tpu.dot_dimension_numbers<[1], [1], [0], [0], [0, 0, 1, 0], [], []>} : vector<6x1616xf32>, vector<16x1616xf32>, vector<6x16xf32> -> vector<6x16xf32>
    %32 = arith.addf %21, %31 : vector<6x16xf32>
    %c1_31 = arith.constant 1 : index
    %c2_32 = arith.constant 2 : index
    %c0_33 = arith.constant 0 : index
    %33 = vector.load %arg1[%c1_31, %c2_32, %c0_33] : memref<2x8x1616xf32, #tpu.memory_space<vmem>>, vector<1x6x1616xf32>
    %34 = vector.shape_cast %33 : vector<1x6x1616xf32> to vector<6x1616xf32>
    %cst_34 = arith.constant dense<0.000000e+00> : vector<6x16xf32>
    %35 = tpu.matmul %34, %28, %cst_34 {dimension_numbers = #tpu.dot_dimension_numbers<[1], [1], [0], [0], [0, 0, 1, 0], [], []>} : vector<6x1616xf32>, vector<16x1616xf32>, vector<6x16xf32> -> vector<6x16xf32>
    %36 = arith.addf %25, %35 : vector<6x16xf32>
    %37 = vector.broadcast %0 : vector<1x16xf32> to vector<6x16xf32>
    %38 = arith.addf %32, %37 : vector<6x16xf32>
    %cst_35 = arith.constant 0.000000e+00 : f32
    %39 = vector.broadcast %cst_35 : f32 to vector<6x16xf32>
    %40 = arith.maximumf %38, %39 : vector<6x16xf32>
    %41 = vector.extract_strided_slice %40 {offsets = [0, 0], sizes = [2, 16], strides = [1, 1]} : vector<6x16xf32> to vector<2x16xf32>
    %cst_36 = arith.constant dense<0xFF800000> : vector<16xf32>
    %42 = vector.multi_reduction <maximumf>, %41, %cst_36 [0] : vector<2x16xf32> to vector<16xf32>
    %43 = vector.shape_cast %42 : vector<16xf32> to vector<1x16xf32>
    %c0_37 = arith.constant 0 : index
    %c0_38 = arith.constant 0 : index
    %c0_39 = arith.constant 0 : index
    %44 = vector.load %arg4[%c0_37, %c0_38, %c0_39] : memref<3x16x50xf32, #tpu.memory_space<vmem>>, vector<1x16x50xf32>
    %45 = vector.shape_cast %44 : vector<1x16x50xf32> to vector<16x50xf32>
    %cst_40 = arith.constant dense<0.000000e+00> : vector<1x50xf32>
    %46 = tpu.matmul %43, %45, %cst_40 {dimension_numbers = #tpu.dot_dimension_numbers<[1], [0], [0], [1], [0, 0, 1, 1], [], []>} : vector<1x16xf32>, vector<16x50xf32>, vector<1x50xf32> -> vector<1x50xf32>
    %47 = arith.addf %1, %46 : vector<1x50xf32>
    %48 = vector.extract_strided_slice %40 {offsets = [2, 0], sizes = [2, 16], strides = [1, 1]} : vector<6x16xf32> to vector<2x16xf32>
    %cst_41 = arith.constant dense<0xFF800000> : vector<16xf32>
    %49 = vector.multi_reduction <maximumf>, %48, %cst_41 [0] : vector<2x16xf32> to vector<16xf32>
    %50 = vector.shape_cast %49 : vector<16xf32> to vector<1x16xf32>
    %c1_42 = arith.constant 1 : index
    %c0_43 = arith.constant 0 : index
    %c0_44 = arith.constant 0 : index
    %51 = vector.load %arg4[%c1_42, %c0_43, %c0_44] : memref<3x16x50xf32, #tpu.memory_space<vmem>>, vector<1x16x50xf32>
    %52 = vector.shape_cast %51 : vector<1x16x50xf32> to vector<16x50xf32>
    %cst_45 = arith.constant dense<0.000000e+00> : vector<1x50xf32>
    %53 = tpu.matmul %50, %52, %cst_45 {dimension_numbers = #tpu.dot_dimension_numbers<[1], [0], [0], [1], [0, 0, 1, 1], [], []>} : vector<1x16xf32>, vector<16x50xf32>, vector<1x50xf32> -> vector<1x50xf32>
    %54 = arith.addf %47, %53 : vector<1x50xf32>
    %55 = vector.extract_strided_slice %40 {offsets = [4, 0], sizes = [2, 16], strides = [1, 1]} : vector<6x16xf32> to vector<2x16xf32>
    %cst_46 = arith.constant dense<0xFF800000> : vector<16xf32>
    %56 = vector.multi_reduction <maximumf>, %55, %cst_46 [0] : vector<2x16xf32> to vector<16xf32>
    %57 = vector.shape_cast %56 : vector<16xf32> to vector<1x16xf32>
    %c2_47 = arith.constant 2 : index
    %c0_48 = arith.constant 0 : index
    %c0_49 = arith.constant 0 : index
    %58 = vector.load %arg4[%c2_47, %c0_48, %c0_49] : memref<3x16x50xf32, #tpu.memory_space<vmem>>, vector<1x16x50xf32>
    %59 = vector.shape_cast %58 : vector<1x16x50xf32> to vector<16x50xf32>
    %cst_50 = arith.constant dense<0.000000e+00> : vector<1x50xf32>
    %60 = tpu.matmul %57, %59, %cst_50 {dimension_numbers = #tpu.dot_dimension_numbers<[1], [0], [0], [1], [0, 0, 1, 1], [], []>} : vector<1x16xf32>, vector<16x50xf32>, vector<1x50xf32> -> vector<1x50xf32>
    %61 = arith.addf %54, %60 : vector<1x50xf32>
    %62 = vector.broadcast %0 : vector<1x16xf32> to vector<6x16xf32>
    %63 = arith.addf %36, %62 : vector<6x16xf32>
    %cst_51 = arith.constant 0.000000e+00 : f32
    %64 = vector.broadcast %cst_51 : f32 to vector<6x16xf32>
    %65 = arith.maximumf %63, %64 : vector<6x16xf32>
    %66 = vector.extract_strided_slice %65 {offsets = [0, 0], sizes = [2, 16], strides = [1, 1]} : vector<6x16xf32> to vector<2x16xf32>
    %cst_52 = arith.constant dense<0xFF800000> : vector<16xf32>
    %67 = vector.multi_reduction <maximumf>, %66, %cst_52 [0] : vector<2x16xf32> to vector<16xf32>
    %68 = vector.shape_cast %67 : vector<16xf32> to vector<1x16xf32>
    %c0_53 = arith.constant 0 : index
    %c0_54 = arith.constant 0 : index
    %c0_55 = arith.constant 0 : index
    %69 = vector.load %arg4[%c0_53, %c0_54, %c0_55] : memref<3x16x50xf32, #tpu.memory_space<vmem>>, vector<1x16x50xf32>
    %70 = vector.shape_cast %69 : vector<1x16x50xf32> to vector<16x50xf32>
    %cst_56 = arith.constant dense<0.000000e+00> : vector<1x50xf32>
    %71 = tpu.matmul %68, %70, %cst_56 {dimension_numbers = #tpu.dot_dimension_numbers<[1], [0], [0], [1], [0, 0, 1, 1], [], []>} : vector<1x16xf32>, vector<16x50xf32>, vector<1x50xf32> -> vector<1x50xf32>
    %72 = arith.addf %1, %71 : vector<1x50xf32>
    %73 = vector.extract_strided_slice %65 {offsets = [2, 0], sizes = [2, 16], strides = [1, 1]} : vector<6x16xf32> to vector<2x16xf32>
    %cst_57 = arith.constant dense<0xFF800000> : vector<16xf32>
    %74 = vector.multi_reduction <maximumf>, %73, %cst_57 [0] : vector<2x16xf32> to vector<16xf32>
    %75 = vector.shape_cast %74 : vector<16xf32> to vector<1x16xf32>
    %c1_58 = arith.constant 1 : index
    %c0_59 = arith.constant 0 : index
    %c0_60 = arith.constant 0 : index
    %76 = vector.load %arg4[%c1_58, %c0_59, %c0_60] : memref<3x16x50xf32, #tpu.memory_space<vmem>>, vector<1x16x50xf32>
    %77 = vector.shape_cast %76 : vector<1x16x50xf32> to vector<16x50xf32>
    %cst_61 = arith.constant dense<0.000000e+00> : vector<1x50xf32>
    %78 = tpu.matmul %75, %77, %cst_61 {dimension_numbers = #tpu.dot_dimension_numbers<[1], [0], [0], [1], [0, 0, 1, 1], [], []>} : vector<1x16xf32>, vector<16x50xf32>, vector<1x50xf32> -> vector<1x50xf32>
    %79 = arith.addf %72, %78 : vector<1x50xf32>
    %80 = vector.extract_strided_slice %65 {offsets = [4, 0], sizes = [2, 16], strides = [1, 1]} : vector<6x16xf32> to vector<2x16xf32>
    %cst_62 = arith.constant dense<0xFF800000> : vector<16xf32>
    %81 = vector.multi_reduction <maximumf>, %80, %cst_62 [0] : vector<2x16xf32> to vector<16xf32>
    %82 = vector.shape_cast %81 : vector<16xf32> to vector<1x16xf32>
    %c2_63 = arith.constant 2 : index
    %c0_64 = arith.constant 0 : index
    %c0_65 = arith.constant 0 : index
    %83 = vector.load %arg4[%c2_63, %c0_64, %c0_65] : memref<3x16x50xf32, #tpu.memory_space<vmem>>, vector<1x16x50xf32>
    %84 = vector.shape_cast %83 : vector<1x16x50xf32> to vector<16x50xf32>
    %cst_66 = arith.constant dense<0.000000e+00> : vector<1x50xf32>
    %85 = tpu.matmul %82, %84, %cst_66 {dimension_numbers = #tpu.dot_dimension_numbers<[1], [0], [0], [1], [0, 0, 1, 1], [], []>} : vector<1x16xf32>, vector<16x50xf32>, vector<1x50xf32> -> vector<1x50xf32>
    %86 = arith.addf %79, %85 : vector<1x50xf32>
    %87 = tpu.concatenate %61, %86 in 0 : vector<1x50xf32>, vector<1x50xf32> -> vector<2x50xf32>
    %c0_67 = arith.constant 0 : index
    %c0_68 = arith.constant 0 : index
    %88 = vector.load %arg6[%c0_67, %c0_68] : memref<50x1616xbf16, #tpu.memory_space<vmem>>, vector<50x1616xbf16>
    %89 = arith.extf %88 : vector<50x1616xbf16> to vector<50x1616xf32>
    %cst_69 = arith.constant dense<0.000000e+00> : vector<2x1616xf32>
    %90 = tpu.matmul %87, %89, %cst_69 {dimension_numbers = #tpu.dot_dimension_numbers<[1], [0], [0], [1], [0, 0, 1, 1], [], []>} : vector<2x50xf32>, vector<50x1616xf32>, vector<2x1616xf32> -> vector<2x1616xf32>
    %c0_70 = arith.constant 0 : index
    %c0_71 = arith.constant 0 : index
    %91 = vector.load %arg7[%c0_70, %c0_71] : memref<1x1616xf32, #tpu.memory_space<vmem>>, vector<1x1616xf32>
    %92 = vector.broadcast %91 : vector<1x1616xf32> to vector<2x1616xf32>
    %93 = arith.addf %90, %92 : vector<2x1616xf32>
    %c0_72 = arith.constant 0 : index
    %c0_73 = arith.constant 0 : index
    %94 = vector.load %arg8[%c0_72, %c0_73] : memref<2x1616xf32, #tpu.memory_space<vmem>>, vector<2x1616xf32>
    tpu.vector_store %arg8[%c0_72, %c0_73], %93 {strides = array<i32>} : memref<2x1616xf32, #tpu.memory_space<vmem>>, vector<2x1616xf32>,
    return
  }
  func.func @transform_0(%arg0: i32) -> (i32, i32, i32) {
    %c0_i32 = arith.constant 0 : i32
    %c0_i32_0 = arith.constant 0 : i32
    %c0_i32_1 = arith.constant 0 : i32
    %c0_i32_2 = arith.constant 0 : i32
    return %c0_i32, %c0_i32_0, %c0_i32_1 : i32, i32, i32
  }
  func.func @transform_1(%arg0: i32) -> (i32, i32, i32) {
    %c0_i32 = arith.constant 0 : i32
    %c0_i32_0 = arith.constant 0 : i32
    %c0_i32_1 = arith.constant 0 : i32
    %c0_i32_2 = arith.constant 0 : i32
    return %c0_i32, %c0_i32_0, %c0_i32_1 : i32, i32, i32
  }
  func.func @transform_2(%arg0: i32) -> (i32, i32) {
    %c0_i32 = arith.constant 0 : i32
    %c0_i32_0 = arith.constant 0 : i32
    %c0_i32_1 = arith.constant 0 : i32
    return %c0_i32, %c0_i32_0 : i32, i32
  }
  func.func @transform_3(%arg0: i32) -> (i32, i32, i32) {
    %c0_i32 = arith.constant 0 : i32
    %c0_i32_0 = arith.constant 0 : i32
    %c0_i32_1 = arith.constant 0 : i32
    %c0_i32_2 = arith.constant 0 : i32
    return %c0_i32, %c0_i32_0, %c0_i32_1 : i32, i32, i32
  }
  func.func @transform_4(%arg0: i32) -> (i32, i32) {
    %c0_i32 = arith.constant 0 : i32
    %c0_i32_0 = arith.constant 0 : i32
    %c0_i32_1 = arith.constant 0 : i32
    return %c0_i32, %c0_i32_0 : i32, i32
  }
  func.func @transform_5(%arg0: i32) -> (i32, i32) {
    %c0_i32 = arith.constant 0 : i32
    %c0_i32_0 = arith.constant 0 : i32
    %c0_i32_1 = arith.constant 0 : i32
    return %c0_i32, %c0_i32_0 : i32, i32
  }
  func.func @transform_6(%arg0: i32) -> (i32, i32) {
    %c0_i32 = arith.constant 0 : i32
    %c0_i32_0 = arith.constant 0 : i32
    %c0_i32_1 = arith.constant 0 : i32
    return %c0_i32, %c0_i32_0 : i32, i32
  }
  func.func @transform_7(%arg0: i32) -> (i32, i32) {
    %c0_i32 = arith.constant 0 : i32
    %c0_i32_0 = arith.constant 0 : i32
    %c0_i32_1 = arith.constant 0 : i32
    return %c0_i32, %c0_i32_0 : i32, i32
  }
}

</mosaic_0001>

<llo_original>
// kernel: cnn_forward.1
$region0: #{cnn_forward.1}
  #allocation0 [shape = 'u32[]', space=smem, size = 0x4, offset = 0x4, fixed_abs, tag = 'smem constant byte address 0x4 - core index']
  #allocation1 [shape = 'u32[144,128]{1,0:T(1,128)}', space=vmem, size = 0x12000, scoped, tag = 'internal scratch']
  %s0 = inlined_call_operand.hbm [shape: f32[2,8,1616], index: 0, kind: input, shape index: {}]
  %s1 = inlined_call_operand.hbm [shape: bf16[3,16,1616], index: 1, kind: input, shape index: {}]
  %s2 = inlined_call_operand.vmem [shape: f32[1,16], index: 2, kind: input, shape index: {}]
  %s3 = inlined_call_operand.hbm [shape: f32[3,16,50], index: 3, kind: input, shape index: {}]
  %s4 = inlined_call_operand.vmem [shape: f32[1,50], index: 4, kind: input, shape index: {}]
  %s5 = inlined_call_operand.hbm [shape: bf16[50,1616], index: 5, kind: input, shape index: {}]
  %s6 = inlined_call_operand.hbm [shape: f32[1,1616], index: 6, kind: input, shape index: {}]
  %s7 = inlined_call_operand.hbm [shape: f32[2,1616], index: 7, kind: output, shape index: {}]
  %s8 = sld [smem:[#allocation0]]
  $region58: #{cnn_forward.1} parent=0
    _
  %s10 = ssub.s32 1, %s8
  %s11 = scalar_select 0, %s10, %s8
  $region1: #{cnn_forward.1} parent=0
    #allocation2 [shape = 'u8[106496]{0}', space=vmem, size = 0x1a000, scoped, tag = 'input window, operand 0, single buffered']
    #allocation3 [shape = 's32[1]{0}', space=sflag, size = 0x4, scoped, tag = 'scoped memory for cnn_forward.1']
    #allocation4 [shape = 's32[1]{0}', space=sflag, size = 0x4, scoped, tag = 'scoped memory for cnn_forward.1']
    #allocation5 [shape = 'u8[159744]{0}', space=vmem, size = 0x27000, scoped, tag = 'input window, operand 1, single buffered']
    #allocation6 [shape = 's32[1]{0}', space=sflag, size = 0x4, scoped, tag = 'scoped memory for cnn_forward.1']
    #allocation7 [shape = 'u8[24576]{0}', space=vmem, size = 0x6000, scoped, tag = 'input window, operand 3, single buffered']
    #allocation8 [shape = 'u8[186368]{0}', space=vmem, size = 0x2d800, scoped, tag = 'input window, operand 5, single buffered']
    #allocation9 [shape = 's32[1]{0}', space=sflag, size = 0x4, scoped, tag = 'scoped memory for cnn_forward.1']
    #allocation10 [shape = 'u8[6656]{0}', space=vmem, size = 0x1c00, scoped, tag = 'input window, operand 6, single buffered']
    #allocation11 [shape = 'u8[13312]{0}', space=vmem, size = 0x3400, scoped, tag = 'output window, operand 0, single buffered']
    %12 = vsyncpa [#allocation3], 0
    %13 = vsyncpa [#allocation6], 0
    %14 = vsyncpa [#allocation9], 0
    %15 = vsyncpa [#allocation4], 0
    // Predicated region
    $region2: #{cnn_forward.1} parent=1 // pred_check
      _
    $region3: #{cnn_forward.1} parent=1 // pred_check_branch
      %17 = sbr.rel (0) target = $region5
    $region4: #{cnn_forward.1} parent=1 // pred_region
      %s19 = ssub.s32 3328, 3328
      %20 = vsyncadd [#allocation3], %s19
      %s21 = sshll.u32 [#allocation2], 4
      %s22 = int_to_ptr.vmem [resolvable:$true] %s21
      %27 = dma.hbm_to_vmem [thread:$0]  %s0, 3328, %s22, [#allocation3], 1664, 1664, 104
    $region5: #{cnn_forward.1} parent=1 // pred_fallthru
      _
    // Predicated region
    $region6: #{cnn_forward.1} parent=1 // pred_check
      _
    $region7: #{cnn_forward.1} parent=1 // pred_check_branch
      %29 = sbr.rel (0) target = $region9
    $region8: #{cnn_forward.1} parent=1 // pred_region
      %s31 = ssub.s32 4992, 4992
      %32 = vsyncadd [#allocation6], %s31
      %s33 = sshll.u32 [#allocation5], 4
      %s34 = int_to_ptr.vmem [resolvable:$true] %s33
      %39 = dma.hbm_to_vmem [thread:$0]  %s1, 4992, %s34, [#allocation6], 832, 832, 52
    $region9: #{cnn_forward.1} parent=1 // pred_fallthru
      _
    // Predicated region
    $region10: #{cnn_forward.1} parent=1 // pred_check
      _
    $region11: #{cnn_forward.1} parent=1 // pred_check_branch
      %41 = sbr.rel (0) target = $region13
    $region12: #{cnn_forward.1} parent=1 // pred_region
      _
    $region13: #{cnn_forward.1} parent=1 // pred_fallthru
      _
    // Predicated region
    $region14: #{cnn_forward.1} parent=1 // pred_check
      _
    $region15: #{cnn_forward.1} parent=1 // pred_check_branch
      %43 = sbr.rel (0) target = $region17
    $region16: #{cnn_forward.1} parent=1 // pred_region
      %s45 = ssub.s32 768, 768
      %46 = vsyncadd [#allocation6], %s45
      %s47 = sshll.u32 [#allocation7], 4
      %s48 = int_to_ptr.vmem [resolvable:$true] %s47
      %53 = dma.hbm_to_vmem [thread:$0]  %s3, 768, %s48, [#allocation6], 128, 128, 8
    $region17: #{cnn_forward.1} parent=1 // pred_fallthru
      _
    // Predicated region
    $region18: #{cnn_forward.1} parent=1 // pred_check
      _
    $region19: #{cnn_forward.1} parent=1 // pred_check_branch
      %55 = sbr.rel (0) target = $region21
    $region20: #{cnn_forward.1} parent=1 // pred_region
      _
    $region21: #{cnn_forward.1} parent=1 // pred_fallthru
      _
    // Predicated region
    $region22: #{cnn_forward.1} parent=1 // pred_check
      _
    $region23: #{cnn_forward.1} parent=1 // pred_check_branch
      %57 = sbr.rel (0) target = $region25
    $region24: #{cnn_forward.1} parent=1 // pred_region
      %s59 = ssub.s32 5824, 5824
      %60 = vsyncadd [#allocation9], %s59
      %s61 = sshll.u32 [#allocation8], 4
      %s62 = int_to_ptr.vmem [resolvable:$true] %s61
      %67 = dma.hbm_to_vmem [thread:$0]  %s5, 5824, %s62, [#allocation9], 832, 832, 52
    $region25: #{cnn_forward.1} parent=1 // pred_fallthru
      _
    // Predicated region
    $region26: #{cnn_forward.1} parent=1 // pred_check
      _
    $region27: #{cnn_forward.1} parent=1 // pred_check_branch
      %69 = sbr.rel (0) target = $region29
    $region28: #{cnn_forward.1} parent=1 // pred_region
      %s71 = ssub.s32 208, 208
      %72 = vsyncadd [#allocation9], %s71
      %s74 = sshll.u32 [#allocation10], 4
      %s75 = int_to_ptr.vmem [resolvable:$true] %s74
      %77 = dma.hbm_to_vmem [thread:$0]  %s6, 208, %s75, [#allocation9]
    $region29: #{cnn_forward.1} parent=1 // pred_fallthru
      _
    // Predicated region
    $region30: #{cnn_forward.1} parent=1 // pred_check
      _
    $region31: #{cnn_forward.1} parent=1 // pred_check_branch
      %79 = sbr.rel (0) target = $region33
    $region32: #{cnn_forward.1} parent=1 // pred_region
      %80 = dma.done [#allocation3], 3328
    $region33: #{cnn_forward.1} parent=1 // pred_fallthru
      _
    // Predicated region
    $region34: #{cnn_forward.1} parent=1 // pred_check
      _
    $region35: #{cnn_forward.1} parent=1 // pred_check_branch
      %82 = sbr.rel (0) target = $region37
    $region36: #{cnn_forward.1} parent=1 // pred_region
      %83 = dma.done [#allocation6], 4992
    $region37: #{cnn_forward.1} parent=1 // pred_fallthru
      _
    // Predicated region
    $region38: #{cnn_forward.1} parent=1 // pred_check
      _
    $region39: #{cnn_forward.1} parent=1 // pred_check_branch
      %85 = sbr.rel (0) target = $region41
    $region40: #{cnn_forward.1} parent=1 // pred_region
      %86 = dma.done [#allocation6], 768
    $region41: #{cnn_forward.1} parent=1 // pred_fallthru
      _
    // Predicated region
    $region42: #{cnn_forward.1} parent=1 // pred_check
      _
    $region43: #{cnn_forward.1} parent=1 // pred_check_branch
      %88 = sbr.rel (0) target = $region45
    $region44: #{cnn_forward.1} parent=1 // pred_region
      %89 = dma.done [#allocation9], 5824
    $region45: #{cnn_forward.1} parent=1 // pred_fallthru
      _
    // Predicated region
    $region46: #{cnn_forward.1} parent=1 // pred_check
      _
    $region47: #{cnn_forward.1} parent=1 // pred_check_branch
      %91 = sbr.rel (0) target = $region49
    $region48: #{cnn_forward.1} parent=1 // pred_region
      %92 = dma.done [#allocation9], 208
    $region49: #{cnn_forward.1} parent=1 // pred_fallthru
      _
    %v93 = vld [vmem:[%s2] sm:$0x1]
    %v94 = vld [vmem:[%s4] sm:$0x1]
    %v95 = vld [vmem:[#allocation5] sm:$0xff]
    %v96 = vld [vmem:[#allocation5 + $0x8] sm:$0xff]
    %v97 = vld [vmem:[#allocation5 + $0x10] sm:$0xff]
    %v98 = vld [vmem:[#allocation5 + $0x18] sm:$0xff]
    %v99 = vld [vmem:[#allocation5 + $0x20] sm:$0xff]
    %v100 = vld [vmem:[#allocation5 + $0x28] sm:$0xff]
    %v101 = vld [vmem:[#allocation5 + $0x30] sm:$0xf]
    %v102 = vld [vmem:[#allocation5 + $0x34] sm:$0xff]
    %v103 = vld [vmem:[#allocation5 + $0x3c] sm:$0xff]
    %v104 = vld [vmem:[#allocation5 + $0x44] sm:$0xff]
    %v105 = vld [vmem:[#allocation5 + $0x4c] sm:$0xff]
    %v106 = vld [vmem:[#allocation5 + $0x54] sm:$0xff]
    %v107 = vld [vmem:[#allocation5 + $0x5c] sm:$0xff]
    %v108 = vld [vmem:[#allocation5 + $0x64] sm:$0xf]
    %v109 = vunpack.c.l.bf16 %v95
    %v110 = vunpack.c.h.bf16 %v95
    %v111 = vunpack.c.l.bf16 %v96
    %v112 = vunpack.c.h.bf16 %v96
    %v113 = vunpack.c.l.bf16 %v97
    %v114 = vunpack.c.h.bf16 %v97
    %v115 = vunpack.c.l.bf16 %v98
    %v116 = vunpack.c.h.bf16 %v98
    %v117 = vunpack.c.l.bf16 %v99
    %v118 = vunpack.c.h.bf16 %v99
    %v119 = vunpack.c.l.bf16 %v100
    %v120 = vunpack.c.h.bf16 %v100
    %v121 = vunpack.c.l.bf16 %v101
    %v122 = vunpack.c.l.bf16 %v102
    %v123 = vunpack.c.h.bf16 %v102
    %v124 = vunpack.c.l.bf16 %v103
    %v125 = vunpack.c.h.bf16 %v103
    %v126 = vunpack.c.l.bf16 %v104
    %v127 = vunpack.c.h.bf16 %v104
    %v128 = vunpack.c.l.bf16 %v105
    %v129 = vunpack.c.h.bf16 %v105
    %v130 = vunpack.c.l.bf16 %v106
    %v131 = vunpack.c.h.bf16 %v106
    %v132 = vunpack.c.l.bf16 %v107
    %v133 = vunpack.c.h.bf16 %v107
    %v134 = vunpack.c.l.bf16 %v108
    %v135 = vld [vmem:[#allocation2] sm:$0x3f]
    %v136 = vld [vmem:[#allocation2 + $0x8] sm:$0x3f]
    %v137 = vld [vmem:[#allocation2 + $0x10] sm:$0x3f]
    %v138 = vld [vmem:[#allocation2 + $0x18] sm:$0x3f]
    %v139 = vld [vmem:[#allocation2 + $0x20] sm:$0x3f]
    %v140 = vld [vmem:[#allocation2 + $0x28] sm:$0x3f]
    %v141 = vld [vmem:[#allocation2 + $0x30] sm:$0x3f]
    %v142 = vld [vmem:[#allocation2 + $0x38] sm:$0x3f]
    %v143 = vld [vmem:[#allocation2 + $0x40] sm:$0x3f]
    %v144 = vld [vmem:[#allocation2 + $0x48] sm:$0x3f]
    %v145 = vld [vmem:[#allocation2 + $0x50] sm:$0x3f]
    %v146 = vld [vmem:[#allocation2 + $0x58] sm:$0x3f]
    %v147 = vld [vmem:[#allocation2 + $0x60] sm:$0x3f]
    %s148 = scalar_lea.vmem [#allocation2], 104
    %v149 = vld [vmem:[%s148] sm:$0x3f]
    %v150 = vld [vmem:[%s148 + $0x8] sm:$0x3f]
    %v151 = vld [vmem:[%s148 + $0x10] sm:$0x3f]
    %v152 = vld [vmem:[%s148 + $0x18] sm:$0x3f]
    %v153 = vld [vmem:[%s148 + $0x20] sm:$0x3f]
    %v154 = vld [vmem:[%s148 + $0x28] sm:$0x3f]
    %v155 = vld [vmem:[%s148 + $0x30] sm:$0x3f]
    %v156 = vld [vmem:[%s148 + $0x38] sm:$0x3f]
    %v157 = vld [vmem:[%s148 + $0x40] sm:$0x3f]
    %v158 = vld [vmem:[%s148 + $0x48] sm:$0x3f]
    %v159 = vld [vmem:[%s148 + $0x50] sm:$0x3f]
    %v160 = vld [vmem:[%s148 + $0x58] sm:$0x3f]
    %v161 = vld [vmem:[%s148 + $0x60] sm:$0x3f]
    %s162 = scalar_lea.vmem [#allocation5], 104
    %v163 = vld [vmem:[%s162] sm:$0xff]
    %v164 = vld [vmem:[%s162 + $0x8] sm:$0xff]
    %v165 = vld [vmem:[%s162 + $0x10] sm:$0xff]
    %v166 = vld [vmem:[%s162 + $0x18] sm:$0xff]
    %v167 = vld [vmem:[%s162 + $0x20] sm:$0xff]
    %v168 = vld [vmem:[%s162 + $0x28] sm:$0xff]
    %v169 = vld [vmem:[%s162 + $0x30] sm:$0xf]
    %v170 = vld [vmem:[%s162 + $0x34] sm:$0xff]
    %v171 = vld [vmem:[%s162 + $0x3c] sm:$0xff]
    %v172 = vld [vmem:[%s162 + $0x44] sm:$0xff]
    %v173 = vld [vmem:[%s162 + $0x4c] sm:$0xff]
    %v174 = vld [vmem:[%s162 + $0x54] sm:$0xff]
    %v175 = vld [vmem:[%s162 + $0x5c] sm:$0xff]
    %v176 = vld [vmem:[%s162 + $0x64] sm:$0xf]
    %v177 = vunpack.c.l.bf16 %v163
    %v178 = vunpack.c.h.bf16 %v163
    %v179 = vunpack.c.l.bf16 %v164
    %v180 = vunpack.c.h.bf16 %v164
    %v181 = vunpack.c.l.bf16 %v165
    %v182 = vunpack.c.h.bf16 %v165
    %v183 = vunpack.c.l.bf16 %v166
    %v184 = vunpack.c.h.bf16 %v166
    %v185 = vunpack.c.l.bf16 %v167
    %v186 = vunpack.c.h.bf16 %v167
    %v187 = vunpack.c.l.bf16 %v168
    %v188 = vunpack.c.h.bf16 %v168
    %v189 = vunpack.c.l.bf16 %v169
    %v190 = vunpack.c.l.bf16 %v170
    %v191 = vunpack.c.h.bf16 %v170
    %v192 = vunpack.c.l.bf16 %v171
    %v193 = vunpack.c.h.bf16 %v171
    %v194 = vunpack.c.l.bf16 %v172
    %v195 = vunpack.c.h.bf16 %v172
    %v196 = vunpack.c.l.bf16 %v173
    %v197 = vunpack.c.h.bf16 %v173
    %v198 = vunpack.c.l.bf16 %v174
    %v199 = vunpack.c.h.bf16 %v174
    %v200 = vunpack.c.l.bf16 %v175
    %v201 = vunpack.c.h.bf16 %v175
    %v202 = vunpack.c.l.bf16 %v176
    %v203 = vld [vmem:[#allocation2] sm:$0x7e]
    %v204 = vld [vmem:[#allocation2 + $0x8] sm:$0x7e]
    %v205 = vld [vmem:[#allocation2 + $0x10] sm:$0x7e]
    %v206 = vld [vmem:[#allocation2 + $0x18] sm:$0x7e]
    %v207 = vld [vmem:[#allocation2 + $0x20] sm:$0x7e]
    %v208 = vld [vmem:[#allocation2 + $0x28] sm:$0x7e]
    %v209 = vld [vmem:[#allocation2 + $0x30] sm:$0x7e]
    %v210 = vld [vmem:[#allocation2 + $0x38] sm:$0x7e]
    %v211 = vld [vmem:[#allocation2 + $0x40] sm:$0x7e]
    %v212 = vld [vmem:[#allocation2 + $0x48] sm:$0x7e]
    %v213 = vld [vmem:[#allocation2 + $0x50] sm:$0x7e]
    %v214 = vld [vmem:[#allocation2 + $0x58] sm:$0x7e]
    %v215 = vld [vmem:[#allocation2 + $0x60] sm:$0x7e]
    %v229 = vrot.slane %v203, 1
    %v230 = vrot.slane %v204, 1
    %v231 = vrot.slane %v205, 1
    %v232 = vrot.slane %v206, 1
    %v233 = vrot.slane %v207, 1
    %v234 = vrot.slane %v208, 1
    %v235 = vrot.slane %v209, 1
    %v236 = vrot.slane %v210, 1
    %v237 = vrot.slane %v211, 1
    %v238 = vrot.slane %v212, 1
    %v239 = vrot.slane %v213, 1
    %v240 = vrot.slane %v214, 1
    %v241 = vrot.slane %v215, 1
    %vm254 = vcmask 654336
    %v255 = vsel %vm254, %v241, 0
    %v258 = vsel %vm254, %v189, 0
    %v261 = vsel %vm254, %v202, 0
    %263 = vmatprep.subr.mxu0 0.0
    %264 = vmatpush1.xpose.msra.mxu0 0.0
    %265 = vmatprep.subr.mxu0 0.0
    %266 = vmatpush1.xpose.msra.mxu0 0.0
    %267 = vmatprep.subr.mxu0 0.0
    %268 = vmatpush1.xpose.msra.mxu0 0.0
    %269 = vmatprep.subr.mxu0 0.0
    %270 = vmatpush1.xpose.msra.mxu0 0.0
    %271 = vmatprep.subr.mxu0 0.0
    %272 = vmatpush1.xpose.msra.mxu0 0.0
    %273 = vmatprep.subr.mxu0 0.0
    %274 = vmatpush1.xpose.msra.mxu0 0.0
    %275 = vmatprep.subr.mxu0 0.0
    %276 = vmatpush1.xpose.msra.mxu0 0.0
    %277 = vmatprep.subr.mxu0 0.0
    %278 = vmatpush1.xpose.msra.mxu0 0.0
    %279 = vmatprep.subr.mxu0 0.0
    %280 = vmatpush1.xpose.msra.mxu0 0.0
    %281 = vmatprep.subr.mxu0 0.0
    %282 = vmatpush1.xpose.msra.mxu0 0.0
    %283 = vmatprep.subr.mxu0 0.0
    %284 = vmatpush1.xpose.msra.mxu0 0.0
    %285 = vmatprep.subr.mxu0 0.0
    %286 = vmatpush1.xpose.msra.mxu0 0.0
    %287 = vmatprep.subr.mxu0 0.0
    %288 = vmatpush1.xpose.msra.mxu0 0.0
    %289 = vmatprep.subr.mxu0 0.0
    %290 = vmatpush1.xpose.msra.mxu0 0.0
    %291 = vmatprep.subr.mxu0 %v191
    %292 = vmatpush1.xpose.msra.mxu0 %v190
    %293 = vmatprep.subr.mxu0 %v178
    %294 = vmatpush1.xpose.msra.mxu0 %v177
    %295 = vmatprep.subr.mxu0 0.0
    %296 = vmatpush2.xpose.msra.mxu0 0.0
    %297 = vmatprep.subr.mxu0 0.0
    %298 = vmatpush2.xpose.msra.mxu0 0.0
    %299 = vmatprep.subr.mxu0 0.0
    %300 = vmatpush2.xpose.msra.mxu0 0.0
    %301 = vmatprep.subr.mxu0 0.0
    %302 = vmatpush2.xpose.msra.mxu0 0.0
    %303 = vmatprep.subr.mxu0 0.0
    %304 = vmatpush2.xpose.msra.mxu0 0.0
    %305 = vmatprep.subr.mxu0 0.0
    %306 = vmatpush2.xpose.msra.mxu0 0.0
    %307 = vmatprep.subr.mxu0 0.0
    %308 = vmatpush2.xpose.msra.mxu0 0.0
    %309 = vmatprep.subr.mxu0 0.0
    %310 = vmatpush2.xpose.msra.mxu0 0.0
    %311 = vmatprep.subr.mxu0 0.0
    %312 = vmatpush2.xpose.msra.mxu0 0.0
    %313 = vmatprep.subr.mxu0 0.0
    %314 = vmatpush2.xpose.msra.mxu0 0.0
    %315 = vmatprep.subr.mxu0 0.0
    %316 = vmatpush2.xpose.msra.mxu0 0.0
    %317 = vmatprep.subr.mxu0 0.0
    %318 = vmatpush2.xpose.msra.mxu0 0.0
    %319 = vmatprep.subr.mxu0 0.0
    %320 = vmatpush2.xpose.msra.mxu0 0.0
    %321 = vmatprep.subr.mxu0 0.0
    %322 = vmatpush2.xpose.msra.mxu0 0.0
    %323 = vmatprep.subr.mxu0 0.0
    %324 = vmatpush2.xpose.msra.mxu0 0.0
    %325 = vmatprep.subr.mxu0 0.0
    %326 = vmatpush2.xpose.msra.mxu0 0.0
    %327 = vmatprep.mubr.f32.mxu0 %v230
    %328 = vmatmul.mubr.f32.gmra.mxu0 %v229
    %v329 = vpop.f32.mrf.mxu0
    %v330 = vadd.f32 0.0, %v329
    %v331 = vpop.f32.mrf.mxu0
    %332 = vdwg.mxu0
    %333 = vmatprep.subr.mxu0 0.0
    %334 = vmatpush1.xpose.msra.mxu0 0.0
    %335 = vmatprep.subr.mxu0 0.0
    %336 = vmatpush1.xpose.msra.mxu0 0.0
    %337 = vmatprep.subr.mxu0 0.0
    %338 = vmatpush1.xpose.msra.mxu0 0.0
    %339 = vmatprep.subr.mxu0 0.0
    %340 = vmatpush1.xpose.msra.mxu0 0.0
    %341 = vmatprep.subr.mxu0 0.0
    %342 = vmatpush1.xpose.msra.mxu0 0.0
    %343 = vmatprep.subr.mxu0 0.0
    %344 = vmatpush1.xpose.msra.mxu0 0.0
    %345 = vmatprep.subr.mxu0 0.0
    %346 = vmatpush1.xpose.msra.mxu0 0.0
    %347 = vmatprep.subr.mxu0 0.0
    %348 = vmatpush1.xpose.msra.mxu0 0.0
    %349 = vmatprep.subr.mxu0 0.0
    %350 = vmatpush1.xpose.msra.mxu0 0.0
    %351 = vmatprep.subr.mxu0 0.0
    %352 = vmatpush1.xpose.msra.mxu0 0.0
    %353 = vmatprep.subr.mxu0 0.0
    %354 = vmatpush1.xpose.msra.mxu0 0.0
    %355 = vmatprep.subr.mxu0 0.0
    %356 = vmatpush1.xpose.msra.mxu0 0.0
    %357 = vmatprep.subr.mxu0 0.0
    %358 = vmatpush1.xpose.msra.mxu0 0.0
    %359 = vmatprep.subr.mxu0 0.0
    %360 = vmatpush1.xpose.msra.mxu0 0.0
    %361 = vmatprep.subr.mxu0 %v193
    %362 = vmatpush1.xpose.msra.mxu0 %v192
    %363 = vmatprep.subr.mxu0 %v180
    %364 = vmatpush1.xpose.msra.mxu0 %v179
    %365 = vmatprep.subr.mxu0 0.0
    %366 = vmatpush2.xpose.msra.mxu0 0.0
    %367 = vmatprep.subr.mxu0 0.0
    %368 = vmatpush2.xpose.msra.mxu0 0.0
    %369 = vmatprep.subr.mxu0 0.0
    %370 = vmatpush2.xpose.msra.mxu0 0.0
    %371 = vmatprep.subr.mxu0 0.0
    %372 = vmatpush2.xpose.msra.mxu0 0.0
    %373 = vmatprep.subr.mxu0 0.0
    %374 = vmatpush2.xpose.msra.mxu0 0.0
    %375 = vmatprep.subr.mxu0 0.0
    %376 = vmatpush2.xpose.msra.mxu0 0.0
    %377 = vmatprep.subr.mxu0 0.0
    %378 = vmatpush2.xpose.msra.mxu0 0.0
    %379 = vmatprep.subr.mxu0 0.0
    %380 = vmatpush2.xpose.msra.mxu0 0.0
    %381 = vmatprep.subr.mxu0 0.0
    %382 = vmatpush2.xpose.msra.mxu0 0.0
    %383 = vmatprep.subr.mxu0 0.0
    %384 = vmatpush2.xpose.msra.mxu0 0.0
    %385 = vmatprep.subr.mxu0 0.0
    %386 = vmatpush2.xpose.msra.mxu0 0.0
    %387 = vmatprep.subr.mxu0 0.0
    %388 = vmatpush2.xpose.msra.mxu0 0.0
    %389 = vmatprep.subr.mxu0 0.0
    %390 = vmatpush2.xpose.msra.mxu0 0.0
    %391 = vmatprep.subr.mxu0 0.0
    %392 = vmatpush2.xpose.msra.mxu0 0.0
    %393 = vmatprep.subr.mxu0 0.0
    %394 = vmatpush2.xpose.msra.mxu0 0.0
    %395 = vmatprep.subr.mxu0 0.0
    %396 = vmatpush2.xpose.msra.mxu0 0.0
    %397 = vmatprep.mubr.f32.mxu0 %v232
    %398 = vmatmul.mubr.f32.gmra.mxu0 %v231
    %v399 = vpop.f32.mrf.mxu0
    %v400 = vadd.f32 %v330, %v399
    %v401 = vpop.f32.mrf.mxu0
    %402 = vdwg.mxu0
    %403 = vmatprep.subr.mxu0 0.0
    %404 = vmatpush1.xpose.msra.mxu0 0.0
    %405 = vmatprep.subr.mxu0 0.0
    %406 = vmatpush1.xpose.msra.mxu0 0.0
    %407 = vmatprep.subr.mxu0 0.0
    %408 = vmatpush1.xpose.msra.mxu0 0.0
    %409 = vmatprep.subr.mxu0 0.0
    %410 = vmatpush1.xpose.msra.mxu0 0.0
    %411 = vmatprep.subr.mxu0 0.0
    %412 = vmatpush1.xpose.msra.mxu0 0.0
    %413 = vmatprep.subr.mxu0 0.0
    %414 = vmatpush1.xpose.msra.mxu0 0.0
    %415 = vmatprep.subr.mxu0 0.0
    %416 = vmatpush1.xpose.msra.mxu0 0.0
    %417 = vmatprep.subr.mxu0 0.0
    %418 = vmatpush1.xpose.msra.mxu0 0.0
    %419 = vmatprep.subr.mxu0 0.0
    %420 = vmatpush1.xpose.msra.mxu0 0.0
    %421 = vmatprep.subr.mxu0 0.0
    %422 = vmatpush1.xpose.msra.mxu0 0.0
    %423 = vmatprep.subr.mxu0 0.0
    %424 = vmatpush1.xpose.msra.mxu0 0.0
    %425 = vmatprep.subr.mxu0 0.0
    %426 = vmatpush1.xpose.msra.mxu0 0.0
    %427 = vmatprep.subr.mxu0 0.0
    %428 = vmatpush1.xpose.msra.mxu0 0.0
    %429 = vmatprep.subr.mxu0 0.0
    %430 = vmatpush1.xpose.msra.mxu0 0.0
    %431 = vmatprep.subr.mxu0 %v195
    %432 = vmatpush1.xpose.msra.mxu0 %v194
    %433 = vmatprep.subr.mxu0 %v182
    %434 = vmatpush1.xpose.msra.mxu0 %v181
    %435 = vmatprep.subr.mxu0 0.0
    %436 = vmatpush2.xpose.msra.mxu0 0.0
    %437 = vmatprep.subr.mxu0 0.0
    %438 = vmatpush2.xpose.msra.mxu0 0.0
    %439 = vmatprep.subr.mxu0 0.0
    %440 = vmatpush2.xpose.msra.mxu0 0.0
    %441 = vmatprep.subr.mxu0 0.0
    %442 = vmatpush2.xpose.msra.mxu0 0.0
    %443 = vmatprep.subr.mxu0 0.0
    %444 = vmatpush2.xpose.msra.mxu0 0.0
    %445 = vmatprep.subr.mxu0 0.0
    %446 = vmatpush2.xpose.msra.mxu0 0.0
    %447 = vmatprep.subr.mxu0 0.0
    %448 = vmatpush2.xpose.msra.mxu0 0.0
    %449 = vmatprep.subr.mxu0 0.0
    %450 = vmatpush2.xpose.msra.mxu0 0.0
    %451 = vmatprep.subr.mxu0 0.0
    %452 = vmatpush2.xpose.msra.mxu0 0.0
    %453 = vmatprep.subr.mxu0 0.0
    %454 = vmatpush2.xpose.msra.mxu0 0.0
    %455 = vmatprep.subr.mxu0 0.0
    %456 = vmatpush2.xpose.msra.mxu0 0.0
    %457 = vmatprep.subr.mxu0 0.0
    %458 = vmatpush2.xpose.msra.mxu0 0.0
    %459 = vmatprep.subr.mxu0 0.0
    %460 = vmatpush2.xpose.msra.mxu0 0.0
    %461 = vmatprep.subr.mxu0 0.0
    %462 = vmatpush2.xpose.msra.mxu0 0.0
    %463 = vmatprep.subr.mxu0 0.0
    %464 = vmatpush2.xpose.msra.mxu0 0.0
    %465 = vmatprep.subr.mxu0 0.0
    %466 = vmatpush2.xpose.msra.mxu0 0.0
    %467 = vmatprep.mubr.f32.mxu0 %v234
    %468 = vmatmul.mubr.f32.gmra.mxu0 %v233
    %v469 = vpop.f32.mrf.mxu0
    %v470 = vadd.f32 %v400, %v469
    %v471 = vpop.f32.mrf.mxu0
    %472 = vdwg.mxu0
    %473 = vmatprep.subr.mxu0 0.0
    %474 = vmatpush1.xpose.msra.mxu0 0.0
    %475 = vmatprep.subr.mxu0 0.0
    %476 = vmatpush1.xpose.msra.mxu0 0.0
    %477 = vmatprep.subr.mxu0 0.0
    %478 = vmatpush1.xpose.msra.mxu0 0.0
    %479 = vmatprep.subr.mxu0 0.0
    %480 = vmatpush1.xpose.msra.mxu0 0.0
    %481 = vmatprep.subr.mxu0 0.0
    %482 = vmatpush1.xpose.msra.mxu0 0.0
    %483 = vmatprep.subr.mxu0 0.0
    %484 = vmatpush1.xpose.msra.mxu0 0.0
    %485 = vmatprep.subr.mxu0 0.0
    %486 = vmatpush1.xpose.msra.mxu0 0.0
    %487 = vmatprep.subr.mxu0 0.0
    %488 = vmatpush1.xpose.msra.mxu0 0.0
    %489 = vmatprep.subr.mxu0 0.0
    %490 = vmatpush1.xpose.msra.mxu0 0.0
    %491 = vmatprep.subr.mxu0 0.0
    %492 = vmatpush1.xpose.msra.mxu0 0.0
    %493 = vmatprep.subr.mxu0 0.0
    %494 = vmatpush1.xpose.msra.mxu0 0.0
    %495 = vmatprep.subr.mxu0 0.0
    %496 = vmatpush1.xpose.msra.mxu0 0.0
    %497 = vmatprep.subr.mxu0 0.0
    %498 = vmatpush1.xpose.msra.mxu0 0.0
    %499 = vmatprep.subr.mxu0 0.0
    %500 = vmatpush1.xpose.msra.mxu0 0.0
    %501 = vmatprep.subr.mxu0 %v197
    %502 = vmatpush1.xpose.msra.mxu0 %v196
    %503 = vmatprep.subr.mxu0 %v184
    %504 = vmatpush1.xpose.msra.mxu0 %v183
    %505 = vmatprep.subr.mxu0 0.0
    %506 = vmatpush2.xpose.msra.mxu0 0.0
    %507 = vmatprep.subr.mxu0 0.0
    %508 = vmatpush2.xpose.msra.mxu0 0.0
    %509 = vmatprep.subr.mxu0 0.0
    %510 = vmatpush2.xpose.msra.mxu0 0.0
    %511 = vmatprep.subr.mxu0 0.0
    %512 = vmatpush2.xpose.msra.mxu0 0.0
    %513 = vmatprep.subr.mxu0 0.0
    %514 = vmatpush2.xpose.msra.mxu0 0.0
    %515 = vmatprep.subr.mxu0 0.0
    %516 = vmatpush2.xpose.msra.mxu0 0.0
    %517 = vmatprep.subr.mxu0 0.0
    %518 = vmatpush2.xpose.msra.mxu0 0.0
    %519 = vmatprep.subr.mxu0 0.0
    %520 = vmatpush2.xpose.msra.mxu0 0.0
    %521 = vmatprep.subr.mxu0 0.0
    %522 = vmatpush2.xpose.msra.mxu0 0.0
    %523 = vmatprep.subr.mxu0 0.0
    %524 = vmatpush2.xpose.msra.mxu0 0.0
    %525 = vmatprep.subr.mxu0 0.0
    %526 = vmatpush2.xpose.msra.mxu0 0.0
    %527 = vmatprep.subr.mxu0 0.0
    %528 = vmatpush2.xpose.msra.mxu0 0.0
    %529 = vmatprep.subr.mxu0 0.0
    %530 = vmatpush2.xpose.msra.mxu0 0.0
    %531 = vmatprep.subr.mxu0 0.0
    %532 = vmatpush2.xpose.msra.mxu0 0.0
    %533 = vmatprep.subr.mxu0 0.0
    %534 = vmatpush2.xpose.msra.mxu0 0.0
    %535 = vmatprep.subr.mxu0 0.0
    %536 = vmatpush2.xpose.msra.mxu0 0.0
    %537 = vmatprep.mubr.f32.mxu0 %v236
    %538 = vmatmul.mubr.f32.gmra.mxu0 %v235
    %v539 = vpop.f32.mrf.mxu0
    %v540 = vadd.f32 %v470, %v539
    %v541 = vpop.f32.mrf.mxu0
    %542 = vdwg.mxu0
    %543 = vmatprep.subr.mxu0 0.0
    %544 = vmatpush1.xpose.msra.mxu0 0.0
    %545 = vmatprep.subr.mxu0 0.0
    %546 = vmatpush1.xpose.msra.mxu0 0.0
    %547 = vmatprep.subr.mxu0 0.0
    %548 = vmatpush1.xpose.msra.mxu0 0.0
    %549 = vmatprep.subr.mxu0 0.0
    %550 = vmatpush1.xpose.msra.mxu0 0.0
    %551 = vmatprep.subr.mxu0 0.0
    %552 = vmatpush1.xpose.msra.mxu0 0.0
    %553 = vmatprep.subr.mxu0 0.0
    %554 = vmatpush1.xpose.msra.mxu0 0.0
    %555 = vmatprep.subr.mxu0 0.0
    %556 = vmatpush1.xpose.msra.mxu0 0.0
    %557 = vmatprep.subr.mxu0 0.0
    %558 = vmatpush1.xpose.msra.mxu0 0.0
    %559 = vmatprep.subr.mxu0 0.0
    %560 = vmatpush1.xpose.msra.mxu0 0.0
    %561 = vmatprep.subr.mxu0 0.0
    %562 = vmatpush1.xpose.msra.mxu0 0.0
    %563 = vmatprep.subr.mxu0 0.0
    %564 = vmatpush1.xpose.msra.mxu0 0.0
    %565 = vmatprep.subr.mxu0 0.0
    %566 = vmatpush1.xpose.msra.mxu0 0.0
    %567 = vmatprep.subr.mxu0 0.0
    %568 = vmatpush1.xpose.msra.mxu0 0.0
    %569 = vmatprep.subr.mxu0 0.0
    %570 = vmatpush1.xpose.msra.mxu0 0.0
    %571 = vmatprep.subr.mxu0 %v199
    %572 = vmatpush1.xpose.msra.mxu0 %v198
    %573 = vmatprep.subr.mxu0 %v186
    %574 = vmatpush1.xpose.msra.mxu0 %v185
    %575 = vmatprep.subr.mxu0 0.0
    %576 = vmatpush2.xpose.msra.mxu0 0.0
    %577 = vmatprep.subr.mxu0 0.0
    %578 = vmatpush2.xpose.msra.mxu0 0.0
    %579 = vmatprep.subr.mxu0 0.0
    %580 = vmatpush2.xpose.msra.mxu0 0.0
    %581 = vmatprep.subr.mxu0 0.0
    %582 = vmatpush2.xpose.msra.mxu0 0.0
    %583 = vmatprep.subr.mxu0 0.0
    %584 = vmatpush2.xpose.msra.mxu0 0.0
    %585 = vmatprep.subr.mxu0 0.0
    %586 = vmatpush2.xpose.msra.mxu0 0.0
    %587 = vmatprep.subr.mxu0 0.0
    %588 = vmatpush2.xpose.msra.mxu0 0.0
    %589 = vmatprep.subr.mxu0 0.0
    %590 = vmatpush2.xpose.msra.mxu0 0.0
    %591 = vmatprep.subr.mxu0 0.0
    %592 = vmatpush2.xpose.msra.mxu0 0.0
    %593 = vmatprep.subr.mxu0 0.0
    %594 = vmatpush2.xpose.msra.mxu0 0.0
    %595 = vmatprep.subr.mxu0 0.0
    %596 = vmatpush2.xpose.msra.mxu0 0.0
    %597 = vmatprep.subr.mxu0 0.0
    %598 = vmatpush2.xpose.msra.mxu0 0.0
    %599 = vmatprep.subr.mxu0 0.0
    %600 = vmatpush2.xpose.msra.mxu0 0.0
    %601 = vmatprep.subr.mxu0 0.0
    %602 = vmatpush2.xpose.msra.mxu0 0.0
    %603 = vmatprep.subr.mxu0 0.0
    %604 = vmatpush2.xpose.msra.mxu0 0.0
    %605 = vmatprep.subr.mxu0 0.0
    %606 = vmatpush2.xpose.msra.mxu0 0.0
    %607 = vmatprep.mubr.f32.mxu0 %v238
    %608 = vmatmul.mubr.f32.gmra.mxu0 %v237
    %v609 = vpop.f32.mrf.mxu0
    %v610 = vadd.f32 %v540, %v609
    %v611 = vpop.f32.mrf.mxu0
    %612 = vdwg.mxu0
    %613 = vmatprep.subr.mxu0 0.0
    %614 = vmatpush1.xpose.msra.mxu0 0.0
    %615 = vmatprep.subr.mxu0 0.0
    %616 = vmatpush1.xpose.msra.mxu0 0.0
    %617 = vmatprep.subr.mxu0 0.0
    %618 = vmatpush1.xpose.msra.mxu0 0.0
    %619 = vmatprep.subr.mxu0 0.0
    %620 = vmatpush1.xpose.msra.mxu0 0.0
    %621 = vmatprep.subr.mxu0 0.0
    %622 = vmatpush1.xpose.msra.mxu0 0.0
    %623 = vmatprep.subr.mxu0 0.0
    %624 = vmatpush1.xpose.msra.mxu0 0.0
    %625 = vmatprep.subr.mxu0 0.0
    %626 = vmatpush1.xpose.msra.mxu0 0.0
    %627 = vmatprep.subr.mxu0 0.0
    %628 = vmatpush1.xpose.msra.mxu0 0.0
    %629 = vmatprep.subr.mxu0 0.0
    %630 = vmatpush1.xpose.msra.mxu0 0.0
    %631 = vmatprep.subr.mxu0 0.0
    %632 = vmatpush1.xpose.msra.mxu0 0.0
    %633 = vmatprep.subr.mxu0 0.0
    %634 = vmatpush1.xpose.msra.mxu0 0.0
    %635 = vmatprep.subr.mxu0 0.0
    %636 = vmatpush1.xpose.msra.mxu0 0.0
    %637 = vmatprep.subr.mxu0 0.0
    %638 = vmatpush1.xpose.msra.mxu0 0.0
    %639 = vmatprep.subr.mxu0 0.0
    %640 = vmatpush1.xpose.msra.mxu0 0.0
    %641 = vmatprep.subr.mxu0 %v201
    %642 = vmatpush1.xpose.msra.mxu0 %v200
    %643 = vmatprep.subr.mxu0 %v188
    %644 = vmatpush1.xpose.msra.mxu0 %v187
    %645 = vmatprep.subr.mxu0 0.0
    %646 = vmatpush2.xpose.msra.mxu0 0.0
    %647 = vmatprep.subr.mxu0 0.0
    %648 = vmatpush2.xpose.msra.mxu0 0.0
    %649 = vmatprep.subr.mxu0 0.0
    %650 = vmatpush2.xpose.msra.mxu0 0.0
    %651 = vmatprep.subr.mxu0 0.0
    %652 = vmatpush2.xpose.msra.mxu0 0.0
    %653 = vmatprep.subr.mxu0 0.0
    %654 = vmatpush2.xpose.msra.mxu0 0.0
    %655 = vmatprep.subr.mxu0 0.0
    %656 = vmatpush2.xpose.msra.mxu0 0.0
    %657 = vmatprep.subr.mxu0 0.0
    %658 = vmatpush2.xpose.msra.mxu0 0.0
    %659 = vmatprep.subr.mxu0 0.0
    %660 = vmatpush2.xpose.msra.mxu0 0.0
    %661 = vmatprep.subr.mxu0 0.0
    %662 = vmatpush2.xpose.msra.mxu0 0.0
    %663 = vmatprep.subr.mxu0 0.0
    %664 = vmatpush2.xpose.msra.mxu0 0.0
    %665 = vmatprep.subr.mxu0 0.0
    %666 = vmatpush2.xpose.msra.mxu0 0.0
    %667 = vmatprep.subr.mxu0 0.0
    %668 = vmatpush2.xpose.msra.mxu0 0.0
    %669 = vmatprep.subr.mxu0 0.0
    %670 = vmatpush2.xpose.msra.mxu0 0.0
    %671 = vmatprep.subr.mxu0 0.0
    %672 = vmatpush2.xpose.msra.mxu0 0.0
    %673 = vmatprep.subr.mxu0 0.0
    %674 = vmatpush2.xpose.msra.mxu0 0.0
    %675 = vmatprep.subr.mxu0 0.0
    %676 = vmatpush2.xpose.msra.mxu0 0.0
    %677 = vmatprep.mubr.f32.mxu0 %v240
    %678 = vmatmul.mubr.f32.gmra.mxu0 %v239
    %v679 = vpop.f32.mrf.mxu0
    %v680 = vadd.f32 %v610, %v679
    %v681 = vpop.f32.mrf.mxu0
    %682 = vdwg.mxu0
    %683 = vmatprep.subr.mxu0 0.0
    %684 = vmatpush1.xpose.msra.mxu0 0.0
    %685 = vmatprep.subr.mxu0 0.0
    %686 = vmatpush1.xpose.msra.mxu0 0.0
    %687 = vmatprep.subr.mxu0 0.0
    %688 = vmatpush1.xpose.msra.mxu0 0.0
    %689 = vmatprep.subr.mxu0 0.0
    %690 = vmatpush1.xpose.msra.mxu0 0.0
    %691 = vmatprep.subr.mxu0 0.0
    %692 = vmatpush1.xpose.msra.mxu0 0.0
    %693 = vmatprep.subr.mxu0 0.0
    %694 = vmatpush1.xpose.msra.mxu0 0.0
    %695 = vmatprep.subr.mxu0 0.0
    %696 = vmatpush1.xpose.msra.mxu0 0.0
    %697 = vmatprep.subr.mxu0 0.0
    %698 = vmatpush1.xpose.msra.mxu0 0.0
    %699 = vmatprep.subr.mxu0 0.0
    %700 = vmatpush1.xpose.msra.mxu0 0.0
    %701 = vmatprep.subr.mxu0 0.0
    %702 = vmatpush1.xpose.msra.mxu0 0.0
    %703 = vmatprep.subr.mxu0 0.0
    %704 = vmatpush1.xpose.msra.mxu0 0.0
    %705 = vmatprep.subr.mxu0 0.0
    %706 = vmatpush1.xpose.msra.mxu0 0.0
    %707 = vmatprep.subr.mxu0 0.0
    %708 = vmatpush1.xpose.msra.mxu0 0.0
    %709 = vmatprep.subr.mxu0 0.0
    %710 = vmatpush1.xpose.msra.mxu0 0.0
    %711 = vmatprep.subr.mxu0 0.0
    %712 = vmatpush1.xpose.msra.mxu0 %v261
    %713 = vmatprep.subr.mxu0 0.0
    %714 = vmatpush1.xpose.msra.mxu0 %v258
    %715 = vmatprep.subr.mxu0 0.0
    %716 = vmatpush2.xpose.msra.mxu0 0.0
    %717 = vmatprep.subr.mxu0 0.0
    %718 = vmatpush2.xpose.msra.mxu0 0.0
    %719 = vmatprep.subr.mxu0 0.0
    %720 = vmatpush2.xpose.msra.mxu0 0.0
    %721 = vmatprep.subr.mxu0 0.0
    %722 = vmatpush2.xpose.msra.mxu0 0.0
    %723 = vmatprep.subr.mxu0 0.0
    %724 = vmatpush2.xpose.msra.mxu0 0.0
    %725 = vmatprep.subr.mxu0 0.0
    %726 = vmatpush2.xpose.msra.mxu0 0.0
    %727 = vmatprep.subr.mxu0 0.0
    %728 = vmatpush2.xpose.msra.mxu0 0.0
    %729 = vmatprep.subr.mxu0 0.0
    %730 = vmatpush2.xpose.msra.mxu0 0.0
    %731 = vmatprep.subr.mxu0 0.0
    %732 = vmatpush2.xpose.msra.mxu0 0.0
    %733 = vmatprep.subr.mxu0 0.0
    %734 = vmatpush2.xpose.msra.mxu0 0.0
    %735 = vmatprep.subr.mxu0 0.0
    %736 = vmatpush2.xpose.msra.mxu0 0.0
    %737 = vmatprep.subr.mxu0 0.0
    %738 = vmatpush2.xpose.msra.mxu0 0.0
    %739 = vmatprep.subr.mxu0 0.0
    %740 = vmatpush2.xpose.msra.mxu0 0.0
    %741 = vmatprep.subr.mxu0 0.0
    %742 = vmatpush2.xpose.msra.mxu0 0.0
    %743 = vmatprep.subr.mxu0 0.0
    %744 = vmatpush2.xpose.msra.mxu0 0.0
    %745 = vmatprep.subr.mxu0 0.0
    %746 = vmatpush2.xpose.msra.mxu0 0.0
    %747 = vmatprep.mubr.f32.mxu0 0.0
    %748 = vmatmul.mubr.f32.gmra.mxu0 %v255
    %v749 = vpop.f32.mrf.mxu0
    %v750 = vadd.f32 %v680, %v749
    %v751 = vpop.f32.mrf.mxu0
    %752 = vdwg.mxu0
    %v754 = vsel %vm254, %v147, 0
    %v757 = vsel %vm254, %v121, 0
    %v760 = vsel %vm254, %v134, 0
    %762 = vmatprep.subr.mxu0 0.0
    %763 = vmatpush1.xpose.msra.mxu0 0.0
    %764 = vmatprep.subr.mxu0 0.0
    %765 = vmatpush1.xpose.msra.mxu0 0.0
    %766 = vmatprep.subr.mxu0 0.0
    %767 = vmatpush1.xpose.msra.mxu0 0.0
    %768 = vmatprep.subr.mxu0 0.0
    %769 = vmatpush1.xpose.msra.mxu0 0.0
    %770 = vmatprep.subr.mxu0 0.0
    %771 = vmatpush1.xpose.msra.mxu0 0.0
    %772 = vmatprep.subr.mxu0 0.0
    %773 = vmatpush1.xpose.msra.mxu0 0.0
    %774 = vmatprep.subr.mxu0 0.0
    %775 = vmatpush1.xpose.msra.mxu0 0.0
    %776 = vmatprep.subr.mxu0 0.0
    %777 = vmatpush1.xpose.msra.mxu0 0.0
    %778 = vmatprep.subr.mxu0 0.0
    %779 = vmatpush1.xpose.msra.mxu0 0.0
    %780 = vmatprep.subr.mxu0 0.0
    %781 = vmatpush1.xpose.msra.mxu0 0.0
    %782 = vmatprep.subr.mxu0 0.0
    %783 = vmatpush1.xpose.msra.mxu0 0.0
    %784 = vmatprep.subr.mxu0 0.0
    %785 = vmatpush1.xpose.msra.mxu0 0.0
    %786 = vmatprep.subr.mxu0 0.0
    %787 = vmatpush1.xpose.msra.mxu0 0.0
    %788 = vmatprep.subr.mxu0 0.0
    %789 = vmatpush1.xpose.msra.mxu0 0.0
    %790 = vmatprep.subr.mxu0 %v123
    %791 = vmatpush1.xpose.msra.mxu0 %v122
    %792 = vmatprep.subr.mxu0 %v110
    %793 = vmatpush1.xpose.msra.mxu0 %v109
    %794 = vmatprep.subr.mxu0 0.0
    %795 = vmatpush2.xpose.msra.mxu0 0.0
    %796 = vmatprep.subr.mxu0 0.0
    %797 = vmatpush2.xpose.msra.mxu0 0.0
    %798 = vmatprep.subr.mxu0 0.0
    %799 = vmatpush2.xpose.msra.mxu0 0.0
    %800 = vmatprep.subr.mxu0 0.0
    %801 = vmatpush2.xpose.msra.mxu0 0.0
    %802 = vmatprep.subr.mxu0 0.0
    %803 = vmatpush2.xpose.msra.mxu0 0.0
    %804 = vmatprep.subr.mxu0 0.0
    %805 = vmatpush2.xpose.msra.mxu0 0.0
    %806 = vmatprep.subr.mxu0 0.0
    %807 = vmatpush2.xpose.msra.mxu0 0.0
    %808 = vmatprep.subr.mxu0 0.0
    %809 = vmatpush2.xpose.msra.mxu0 0.0
    %810 = vmatprep.subr.mxu0 0.0
    %811 = vmatpush2.xpose.msra.mxu0 0.0
    %812 = vmatprep.subr.mxu0 0.0
    %813 = vmatpush2.xpose.msra.mxu0 0.0
    %814 = vmatprep.subr.mxu0 0.0
    %815 = vmatpush2.xpose.msra.mxu0 0.0
    %816 = vmatprep.subr.mxu0 0.0
    %817 = vmatpush2.xpose.msra.mxu0 0.0
    %818 = vmatprep.subr.mxu0 0.0
    %819 = vmatpush2.xpose.msra.mxu0 0.0
    %820 = vmatprep.subr.mxu0 0.0
    %821 = vmatpush2.xpose.msra.mxu0 0.0
    %822 = vmatprep.subr.mxu0 0.0
    %823 = vmatpush2.xpose.msra.mxu0 0.0
    %824 = vmatprep.subr.mxu0 0.0
    %825 = vmatpush2.xpose.msra.mxu0 0.0
    %826 = vmatprep.mubr.f32.mxu0 %v136
    %827 = vmatmul.mubr.f32.gmra.mxu0 %v135
    %v828 = vpop.f32.mrf.mxu0
    %v829 = vadd.f32 %v750, %v828
    %v830 = vpop.f32.mrf.mxu0
    %831 = vdwg.mxu0
    %832 = vmatprep.subr.mxu0 0.0
    %833 = vmatpush1.xpose.msra.mxu0 0.0
    %834 = vmatprep.subr.mxu0 0.0
    %835 = vmatpush1.xpose.msra.mxu0 0.0
    %836 = vmatprep.subr.mxu0 0.0
    %837 = vmatpush1.xpose.msra.mxu0 0.0
    %838 = vmatprep.subr.mxu0 0.0
    %839 = vmatpush1.xpose.msra.mxu0 0.0
    %840 = vmatprep.subr.mxu0 0.0
    %841 = vmatpush1.xpose.msra.mxu0 0.0
    %842 = vmatprep.subr.mxu0 0.0
    %843 = vmatpush1.xpose.msra.mxu0 0.0
    %844 = vmatprep.subr.mxu0 0.0
    %845 = vmatpush1.xpose.msra.mxu0 0.0
    %846 = vmatprep.subr.mxu0 0.0
    %847 = vmatpush1.xpose.msra.mxu0 0.0
    %848 = vmatprep.subr.mxu0 0.0
    %849 = vmatpush1.xpose.msra.mxu0 0.0
    %850 = vmatprep.subr.mxu0 0.0
    %851 = vmatpush1.xpose.msra.mxu0 0.0
    %852 = vmatprep.subr.mxu0 0.0
    %853 = vmatpush1.xpose.msra.mxu0 0.0
    %854 = vmatprep.subr.mxu0 0.0
    %855 = vmatpush1.xpose.msra.mxu0 0.0
    %856 = vmatprep.subr.mxu0 0.0
    %857 = vmatpush1.xpose.msra.mxu0 0.0
    %858 = vmatprep.subr.mxu0 0.0
    %859 = vmatpush1.xpose.msra.mxu0 0.0
    %860 = vmatprep.subr.mxu0 %v125
    %861 = vmatpush1.xpose.msra.mxu0 %v124
    %862 = vmatprep.subr.mxu0 %v112
    %863 = vmatpush1.xpose.msra.mxu0 %v111
    %864 = vmatprep.subr.mxu0 0.0
    %865 = vmatpush2.xpose.msra.mxu0 0.0
    %866 = vmatprep.subr.mxu0 0.0
    %867 = vmatpush2.xpose.msra.mxu0 0.0
    %868 = vmatprep.subr.mxu0 0.0
    %869 = vmatpush2.xpose.msra.mxu0 0.0
    %870 = vmatprep.subr.mxu0 0.0
    %871 = vmatpush2.xpose.msra.mxu0 0.0
    %872 = vmatprep.subr.mxu0 0.0
    %873 = vmatpush2.xpose.msra.mxu0 0.0
    %874 = vmatprep.subr.mxu0 0.0
    %875 = vmatpush2.xpose.msra.mxu0 0.0
    %876 = vmatprep.subr.mxu0 0.0
    %877 = vmatpush2.xpose.msra.mxu0 0.0
    %878 = vmatprep.subr.mxu0 0.0
    %879 = vmatpush2.xpose.msra.mxu0 0.0
    %880 = vmatprep.subr.mxu0 0.0
    %881 = vmatpush2.xpose.msra.mxu0 0.0
    %882 = vmatprep.subr.mxu0 0.0
    %883 = vmatpush2.xpose.msra.mxu0 0.0
    %884 = vmatprep.subr.mxu0 0.0
    %885 = vmatpush2.xpose.msra.mxu0 0.0
    %886 = vmatprep.subr.mxu0 0.0
    %887 = vmatpush2.xpose.msra.mxu0 0.0
    %888 = vmatprep.subr.mxu0 0.0
    %889 = vmatpush2.xpose.msra.mxu0 0.0
    %890 = vmatprep.subr.mxu0 0.0
    %891 = vmatpush2.xpose.msra.mxu0 0.0
    %892 = vmatprep.subr.mxu0 0.0
    %893 = vmatpush2.xpose.msra.mxu0 0.0
    %894 = vmatprep.subr.mxu0 0.0
    %895 = vmatpush2.xpose.msra.mxu0 0.0
    %896 = vmatprep.mubr.f32.mxu0 %v138
    %897 = vmatmul.mubr.f32.gmra.mxu0 %v137
    %v898 = vpop.f32.mrf.mxu0
    %v899 = vadd.f32 %v829, %v898
    %v900 = vpop.f32.mrf.mxu0
    %901 = vdwg.mxu0
    %902 = vmatprep.subr.mxu0 0.0
    %903 = vmatpush1.xpose.msra.mxu0 0.0
    %904 = vmatprep.subr.mxu0 0.0
    %905 = vmatpush1.xpose.msra.mxu0 0.0
    %906 = vmatprep.subr.mxu0 0.0
    %907 = vmatpush1.xpose.msra.mxu0 0.0
    %908 = vmatprep.subr.mxu0 0.0
    %909 = vmatpush1.xpose.msra.mxu0 0.0
    %910 = vmatprep.subr.mxu0 0.0
    %911 = vmatpush1.xpose.msra.mxu0 0.0
    %912 = vmatprep.subr.mxu0 0.0
    %913 = vmatpush1.xpose.msra.mxu0 0.0
    %914 = vmatprep.subr.mxu0 0.0
    %915 = vmatpush1.xpose.msra.mxu0 0.0
    %916 = vmatprep.subr.mxu0 0.0
    %917 = vmatpush1.xpose.msra.mxu0 0.0
    %918 = vmatprep.subr.mxu0 0.0
    %919 = vmatpush1.xpose.msra.mxu0 0.0
    %920 = vmatprep.subr.mxu0 0.0
    %921 = vmatpush1.xpose.msra.mxu0 0.0
    %922 = vmatprep.subr.mxu0 0.0
    %923 = vmatpush1.xpose.msra.mxu0 0.0
    %924 = vmatprep.subr.mxu0 0.0
    %925 = vmatpush1.xpose.msra.mxu0 0.0
    %926 = vmatprep.subr.mxu0 0.0
    %927 = vmatpush1.xpose.msra.mxu0 0.0
    %928 = vmatprep.subr.mxu0 0.0
    %929 = vmatpush1.xpose.msra.mxu0 0.0
    %930 = vmatprep.subr.mxu0 %v127
    %931 = vmatpush1.xpose.msra.mxu0 %v126
    %932 = vmatprep.subr.mxu0 %v114
    %933 = vmatpush1.xpose.msra.mxu0 %v113
    %934 = vmatprep.subr.mxu0 0.0
    %935 = vmatpush2.xpose.msra.mxu0 0.0
    %936 = vmatprep.subr.mxu0 0.0
    %937 = vmatpush2.xpose.msra.mxu0 0.0
    %938 = vmatprep.subr.mxu0 0.0
    %939 = vmatpush2.xpose.msra.mxu0 0.0
    %940 = vmatprep.subr.mxu0 0.0
    %941 = vmatpush2.xpose.msra.mxu0 0.0
    %942 = vmatprep.subr.mxu0 0.0
    %943 = vmatpush2.xpose.msra.mxu0 0.0
    %944 = vmatprep.subr.mxu0 0.0
    %945 = vmatpush2.xpose.msra.mxu0 0.0
    %946 = vmatprep.subr.mxu0 0.0
    %947 = vmatpush2.xpose.msra.mxu0 0.0
    %948 = vmatprep.subr.mxu0 0.0
    %949 = vmatpush2.xpose.msra.mxu0 0.0
    %950 = vmatprep.subr.mxu0 0.0
    %951 = vmatpush2.xpose.msra.mxu0 0.0
    %952 = vmatprep.subr.mxu0 0.0
    %953 = vmatpush2.xpose.msra.mxu0 0.0
    %954 = vmatprep.subr.mxu0 0.0
    %955 = vmatpush2.xpose.msra.mxu0 0.0
    %956 = vmatprep.subr.mxu0 0.0
    %957 = vmatpush2.xpose.msra.mxu0 0.0
    %958 = vmatprep.subr.mxu0 0.0
    %959 = vmatpush2.xpose.msra.mxu0 0.0
    %960 = vmatprep.subr.mxu0 0.0
    %961 = vmatpush2.xpose.msra.mxu0 0.0
    %962 = vmatprep.subr.mxu0 0.0
    %963 = vmatpush2.xpose.msra.mxu0 0.0
    %964 = vmatprep.subr.mxu0 0.0
    %965 = vmatpush2.xpose.msra.mxu0 0.0
    %966 = vmatprep.mubr.f32.mxu0 %v140
    %967 = vmatmul.mubr.f32.gmra.mxu0 %v139
    %v968 = vpop.f32.mrf.mxu0
    %v969 = vadd.f32 %v899, %v968
    %v970 = vpop.f32.mrf.mxu0
    %971 = vdwg.mxu0
    %972 = vmatprep.subr.mxu0 0.0
    %973 = vmatpush1.xpose.msra.mxu0 0.0
    %974 = vmatprep.subr.mxu0 0.0
    %975 = vmatpush1.xpose.msra.mxu0 0.0
    %976 = vmatprep.subr.mxu0 0.0
    %977 = vmatpush1.xpose.msra.mxu0 0.0
    %978 = vmatprep.subr.mxu0 0.0
    %979 = vmatpush1.xpose.msra.mxu0 0.0
    %980 = vmatprep.subr.mxu0 0.0
    %981 = vmatpush1.xpose.msra.mxu0 0.0
    %982 = vmatprep.subr.mxu0 0.0
    %983 = vmatpush1.xpose.msra.mxu0 0.0
    %984 = vmatprep.subr.mxu0 0.0
    %985 = vmatpush1.xpose.msra.mxu0 0.0
    %986 = vmatprep.subr.mxu0 0.0
    %987 = vmatpush1.xpose.msra.mxu0 0.0
    %988 = vmatprep.subr.mxu0 0.0
    %989 = vmatpush1.xpose.msra.mxu0 0.0
    %990 = vmatprep.subr.mxu0 0.0
    %991 = vmatpush1.xpose.msra.mxu0 0.0
    %992 = vmatprep.subr.mxu0 0.0
    %993 = vmatpush1.xpose.msra.mxu0 0.0
    %994 = vmatprep.subr.mxu0 0.0
    %995 = vmatpush1.xpose.msra.mxu0 0.0
    %996 = vmatprep.subr.mxu0 0.0
    %997 = vmatpush1.xpose.msra.mxu0 0.0
    %998 = vmatprep.subr.mxu0 0.0
    %999 = vmatpush1.xpose.msra.mxu0 0.0
    %1000 = vmatprep.subr.mxu0 %v129
    %1001 = vmatpush1.xpose.msra.mxu0 %v128
    %1002 = vmatprep.subr.mxu0 %v116
    %1003 = vmatpush1.xpose.msra.mxu0 %v115
    %1004 = vmatprep.subr.mxu0 0.0
    %1005 = vmatpush2.xpose.msra.mxu0 0.0
    %1006 = vmatprep.subr.mxu0 0.0
    %1007 = vmatpush2.xpose.msra.mxu0 0.0
    %1008 = vmatprep.subr.mxu0 0.0
    %1009 = vmatpush2.xpose.msra.mxu0 0.0
    %1010 = vmatprep.subr.mxu0 0.0
    %1011 = vmatpush2.xpose.msra.mxu0 0.0
    %1012 = vmatprep.subr.mxu0 0.0
    %1013 = vmatpush2.xpose.msra.mxu0 0.0
    %1014 = vmatprep.subr.mxu0 0.0
    %1015 = vmatpush2.xpose.msra.mxu0 0.0
    %1016 = vmatprep.subr.mxu0 0.0
    %1017 = vmatpush2.xpose.msra.mxu0 0.0
    %1018 = vmatprep.subr.mxu0 0.0
    %1019 = vmatpush2.xpose.msra.mxu0 0.0
    %1020 = vmatprep.subr.mxu0 0.0
    %1021 = vmatpush2.xpose.msra.mxu0 0.0
    %1022 = vmatprep.subr.mxu0 0.0
    %1023 = vmatpush2.xpose.msra.mxu0 0.0
    %1024 = vmatprep.subr.mxu0 0.0
    %1025 = vmatpush2.xpose.msra.mxu0 0.0
    %1026 = vmatprep.subr.mxu0 0.0
    %1027 = vmatpush2.xpose.msra.mxu0 0.0
    %1028 = vmatprep.subr.mxu0 0.0
    %1029 = vmatpush2.xpose.msra.mxu0 0.0
    %1030 = vmatprep.subr.mxu0 0.0
    %1031 = vmatpush2.xpose.msra.mxu0 0.0
    %1032 = vmatprep.subr.mxu0 0.0
    %1033 = vmatpush2.xpose.msra.mxu0 0.0
    %1034 = vmatprep.subr.mxu0 0.0
    %1035 = vmatpush2.xpose.msra.mxu0 0.0
    %1036 = vmatprep.mubr.f32.mxu0 %v142
    %1037 = vmatmul.mubr.f32.gmra.mxu0 %v141
    %v1038 = vpop.f32.mrf.mxu0
    %v1039 = vadd.f32 %v969, %v1038
    %v1040 = vpop.f32.mrf.mxu0
    %1041 = vdwg.mxu0
    %1042 = vmatprep.subr.mxu0 0.0
    %1043 = vmatpush1.xpose.msra.mxu0 0.0
    %1044 = vmatprep.subr.mxu0 0.0
    %1045 = vmatpush1.xpose.msra.mxu0 0.0
    %1046 = vmatprep.subr.mxu0 0.0
    %1047 = vmatpush1.xpose.msra.mxu0 0.0
    %1048 = vmatprep.subr.mxu0 0.0
    %1049 = vmatpush1.xpose.msra.mxu0 0.0
    %1050 = vmatprep.subr.mxu0 0.0
    %1051 = vmatpush1.xpose.msra.mxu0 0.0
    %1052 = vmatprep.subr.mxu0 0.0
    %1053 = vmatpush1.xpose.msra.mxu0 0.0
    %1054 = vmatprep.subr.mxu0 0.0
    %1055 = vmatpush1.xpose.msra.mxu0 0.0
    %1056 = vmatprep.subr.mxu0 0.0
    %1057 = vmatpush1.xpose.msra.mxu0 0.0
    %1058 = vmatprep.subr.mxu0 0.0
    %1059 = vmatpush1.xpose.msra.mxu0 0.0
    %1060 = vmatprep.subr.mxu0 0.0
    %1061 = vmatpush1.xpose.msra.mxu0 0.0
    %1062 = vmatprep.subr.mxu0 0.0
    %1063 = vmatpush1.xpose.msra.mxu0 0.0
    %1064 = vmatprep.subr.mxu0 0.0
    %1065 = vmatpush1.xpose.msra.mxu0 0.0
    %1066 = vmatprep.subr.mxu0 0.0
    %1067 = vmatpush1.xpose.msra.mxu0 0.0
    %1068 = vmatprep.subr.mxu0 0.0
    %1069 = vmatpush1.xpose.msra.mxu0 0.0
    %1070 = vmatprep.subr.mxu0 %v131
    %1071 = vmatpush1.xpose.msra.mxu0 %v130
    %1072 = vmatprep.subr.mxu0 %v118
    %1073 = vmatpush1.xpose.msra.mxu0 %v117
    %1074 = vmatprep.subr.mxu0 0.0
    %1075 = vmatpush2.xpose.msra.mxu0 0.0
    %1076 = vmatprep.subr.mxu0 0.0
    %1077 = vmatpush2.xpose.msra.mxu0 0.0
    %1078 = vmatprep.subr.mxu0 0.0
    %1079 = vmatpush2.xpose.msra.mxu0 0.0
    %1080 = vmatprep.subr.mxu0 0.0
    %1081 = vmatpush2.xpose.msra.mxu0 0.0
    %1082 = vmatprep.subr.mxu0 0.0
    %1083 = vmatpush2.xpose.msra.mxu0 0.0
    %1084 = vmatprep.subr.mxu0 0.0
    %1085 = vmatpush2.xpose.msra.mxu0 0.0
    %1086 = vmatprep.subr.mxu0 0.0
    %1087 = vmatpush2.xpose.msra.mxu0 0.0
    %1088 = vmatprep.subr.mxu0 0.0
    %1089 = vmatpush2.xpose.msra.mxu0 0.0
    %1090 = vmatprep.subr.mxu0 0.0
    %1091 = vmatpush2.xpose.msra.mxu0 0.0
    %1092 = vmatprep.subr.mxu0 0.0
    %1093 = vmatpush2.xpose.msra.mxu0 0.0
    %1094 = vmatprep.subr.mxu0 0.0
    %1095 = vmatpush2.xpose.msra.mxu0 0.0
    %1096 = vmatprep.subr.mxu0 0.0
    %1097 = vmatpush2.xpose.msra.mxu0 0.0
    %1098 = vmatprep.subr.mxu0 0.0
    %1099 = vmatpush2.xpose.msra.mxu0 0.0
    %1100 = vmatprep.subr.mxu0 0.0
    %1101 = vmatpush2.xpose.msra.mxu0 0.0
    %1102 = vmatprep.subr.mxu0 0.0
    %1103 = vmatpush2.xpose.msra.mxu0 0.0
    %1104 = vmatprep.subr.mxu0 0.0
    %1105 = vmatpush2.xpose.msra.mxu0 0.0
    %1106 = vmatprep.mubr.f32.mxu0 %v144
    %1107 = vmatmul.mubr.f32.gmra.mxu0 %v143
    %v1108 = vpop.f32.mrf.mxu0
    %v1109 = vadd.f32 %v1039, %v1108
    %v1110 = vpop.f32.mrf.mxu0
    %1111 = vdwg.mxu0
    %1112 = vmatprep.subr.mxu0 0.0
    %1113 = vmatpush1.xpose.msra.mxu0 0.0
    %1114 = vmatprep.subr.mxu0 0.0
    %1115 = vmatpush1.xpose.msra.mxu0 0.0
    %1116 = vmatprep.subr.mxu0 0.0
    %1117 = vmatpush1.xpose.msra.mxu0 0.0
    %1118 = vmatprep.subr.mxu0 0.0
    %1119 = vmatpush1.xpose.msra.mxu0 0.0
    %1120 = vmatprep.subr.mxu0 0.0
    %1121 = vmatpush1.xpose.msra.mxu0 0.0
    %1122 = vmatprep.subr.mxu0 0.0
    %1123 = vmatpush1.xpose.msra.mxu0 0.0
    %1124 = vmatprep.subr.mxu0 0.0
    %1125 = vmatpush1.xpose.msra.mxu0 0.0
    %1126 = vmatprep.subr.mxu0 0.0
    %1127 = vmatpush1.xpose.msra.mxu0 0.0
    %1128 = vmatprep.subr.mxu0 0.0
    %1129 = vmatpush1.xpose.msra.mxu0 0.0
    %1130 = vmatprep.subr.mxu0 0.0
    %1131 = vmatpush1.xpose.msra.mxu0 0.0
    %1132 = vmatprep.subr.mxu0 0.0
    %1133 = vmatpush1.xpose.msra.mxu0 0.0
    %1134 = vmatprep.subr.mxu0 0.0
    %1135 = vmatpush1.xpose.msra.mxu0 0.0
    %1136 = vmatprep.subr.mxu0 0.0
    %1137 = vmatpush1.xpose.msra.mxu0 0.0
    %1138 = vmatprep.subr.mxu0 0.0
    %1139 = vmatpush1.xpose.msra.mxu0 0.0
    %1140 = vmatprep.subr.mxu0 %v133
    %1141 = vmatpush1.xpose.msra.mxu0 %v132
    %1142 = vmatprep.subr.mxu0 %v120
    %1143 = vmatpush1.xpose.msra.mxu0 %v119
    %1144 = vmatprep.subr.mxu0 0.0
    %1145 = vmatpush2.xpose.msra.mxu0 0.0
    %1146 = vmatprep.subr.mxu0 0.0
    %1147 = vmatpush2.xpose.msra.mxu0 0.0
    %1148 = vmatprep.subr.mxu0 0.0
    %1149 = vmatpush2.xpose.msra.mxu0 0.0
    %1150 = vmatprep.subr.mxu0 0.0
    %1151 = vmatpush2.xpose.msra.mxu0 0.0
    %1152 = vmatprep.subr.mxu0 0.0
    %1153 = vmatpush2.xpose.msra.mxu0 0.0
    %1154 = vmatprep.subr.mxu0 0.0
    %1155 = vmatpush2.xpose.msra.mxu0 0.0
    %1156 = vmatprep.subr.mxu0 0.0
    %1157 = vmatpush2.xpose.msra.mxu0 0.0
    %1158 = vmatprep.subr.mxu0 0.0
    %1159 = vmatpush2.xpose.msra.mxu0 0.0
    %1160 = vmatprep.subr.mxu0 0.0
    %1161 = vmatpush2.xpose.msra.mxu0 0.0
    %1162 = vmatprep.subr.mxu0 0.0
    %1163 = vmatpush2.xpose.msra.mxu0 0.0
    %1164 = vmatprep.subr.mxu0 0.0
    %1165 = vmatpush2.xpose.msra.mxu0 0.0
    %1166 = vmatprep.subr.mxu0 0.0
    %1167 = vmatpush2.xpose.msra.mxu0 0.0
    %1168 = vmatprep.subr.mxu0 0.0
    %1169 = vmatpush2.xpose.msra.mxu0 0.0
    %1170 = vmatprep.subr.mxu0 0.0
    %1171 = vmatpush2.xpose.msra.mxu0 0.0
    %1172 = vmatprep.subr.mxu0 0.0
    %1173 = vmatpush2.xpose.msra.mxu0 0.0
    %1174 = vmatprep.subr.mxu0 0.0
    %1175 = vmatpush2.xpose.msra.mxu0 0.0
    %1176 = vmatprep.mubr.f32.mxu0 %v146
    %1177 = vmatmul.mubr.f32.gmra.mxu0 %v145
    %v1178 = vpop.f32.mrf.mxu0
    %v1179 = vadd.f32 %v1109, %v1178
    %v1180 = vpop.f32.mrf.mxu0
    %1181 = vdwg.mxu0
    %1182 = vmatprep.subr.mxu0 0.0
    %1183 = vmatpush1.xpose.msra.mxu0 0.0
    %1184 = vmatprep.subr.mxu0 0.0
    %1185 = vmatpush1.xpose.msra.mxu0 0.0
    %1186 = vmatprep.subr.mxu0 0.0
    %1187 = vmatpush1.xpose.msra.mxu0 0.0
    %1188 = vmatprep.subr.mxu0 0.0
    %1189 = vmatpush1.xpose.msra.mxu0 0.0
    %1190 = vmatprep.subr.mxu0 0.0
    %1191 = vmatpush1.xpose.msra.mxu0 0.0
    %1192 = vmatprep.subr.mxu0 0.0
    %1193 = vmatpush1.xpose.msra.mxu0 0.0
    %1194 = vmatprep.subr.mxu0 0.0
    %1195 = vmatpush1.xpose.msra.mxu0 0.0
    %1196 = vmatprep.subr.mxu0 0.0
    %1197 = vmatpush1.xpose.msra.mxu0 0.0
    %1198 = vmatprep.subr.mxu0 0.0
    %1199 = vmatpush1.xpose.msra.mxu0 0.0
    %1200 = vmatprep.subr.mxu0 0.0
    %1201 = vmatpush1.xpose.msra.mxu0 0.0
    %1202 = vmatprep.subr.mxu0 0.0
    %1203 = vmatpush1.xpose.msra.mxu0 0.0
    %1204 = vmatprep.subr.mxu0 0.0
    %1205 = vmatpush1.xpose.msra.mxu0 0.0
    %1206 = vmatprep.subr.mxu0 0.0
    %1207 = vmatpush1.xpose.msra.mxu0 0.0
    %1208 = vmatprep.subr.mxu0 0.0
    %1209 = vmatpush1.xpose.msra.mxu0 0.0
    %1210 = vmatprep.subr.mxu0 0.0
    %1211 = vmatpush1.xpose.msra.mxu0 %v760
    %1212 = vmatprep.subr.mxu0 0.0
    %1213 = vmatpush1.xpose.msra.mxu0 %v757
    %1214 = vmatprep.subr.mxu0 0.0
    %1215 = vmatpush2.xpose.msra.mxu0 0.0
    %1216 = vmatprep.subr.mxu0 0.0
    %1217 = vmatpush2.xpose.msra.mxu0 0.0
    %1218 = vmatprep.subr.mxu0 0.0
    %1219 = vmatpush2.xpose.msra.mxu0 0.0
    %1220 = vmatprep.subr.mxu0 0.0
    %1221 = vmatpush2.xpose.msra.mxu0 0.0
    %1222 = vmatprep.subr.mxu0 0.0
    %1223 = vmatpush2.xpose.msra.mxu0 0.0
    %1224 = vmatprep.subr.mxu0 0.0
    %1225 = vmatpush2.xpose.msra.mxu0 0.0
    %1226 = vmatprep.subr.mxu0 0.0
    %1227 = vmatpush2.xpose.msra.mxu0 0.0
    %1228 = vmatprep.subr.mxu0 0.0
    %1229 = vmatpush2.xpose.msra.mxu0 0.0
    %1230 = vmatprep.subr.mxu0 0.0
    %1231 = vmatpush2.xpose.msra.mxu0 0.0
    %1232 = vmatprep.subr.mxu0 0.0
    %1233 = vmatpush2.xpose.msra.mxu0 0.0
    %1234 = vmatprep.subr.mxu0 0.0
    %1235 = vmatpush2.xpose.msra.mxu0 0.0
    %1236 = vmatprep.subr.mxu0 0.0
    %1237 = vmatpush2.xpose.msra.mxu0 0.0
    %1238 = vmatprep.subr.mxu0 0.0
    %1239 = vmatpush2.xpose.msra.mxu0 0.0
    %1240 = vmatprep.subr.mxu0 0.0
    %1241 = vmatpush2.xpose.msra.mxu0 0.0
    %1242 = vmatprep.subr.mxu0 0.0
    %1243 = vmatpush2.xpose.msra.mxu0 0.0
    %1244 = vmatprep.subr.mxu0 0.0
    %1245 = vmatpush2.xpose.msra.mxu0 0.0
    %1246 = vmatprep.mubr.f32.mxu0 0.0
    %1247 = vmatmul.mubr.f32.gmra.mxu0 %v754
    %v1248 = vpop.f32.mrf.mxu0
    %v1249 = vadd.f32 %v1179, %v1248
    %v1250 = vpop.f32.mrf.mxu0
    %1251 = vdwg.mxu0
    %v1252 = vld [vmem:[%s148] sm:$0x7e]
    %v1253 = vld [vmem:[%s148 + $0x8] sm:$0x7e]
    %v1254 = vld [vmem:[%s148 + $0x10] sm:$0x7e]
    %v1255 = vld [vmem:[%s148 + $0x18] sm:$0x7e]
    %v1256 = vld [vmem:[%s148 + $0x20] sm:$0x7e]
    %v1257 = vld [vmem:[%s148 + $0x28] sm:$0x7e]
    %v1258 = vld [vmem:[%s148 + $0x30] sm:$0x7e]
    %v1259 = vld [vmem:[%s148 + $0x38] sm:$0x7e]
    %v1260 = vld [vmem:[%s148 + $0x40] sm:$0x7e]
    %v1261 = vld [vmem:[%s148 + $0x48] sm:$0x7e]
    %v1262 = vld [vmem:[%s148 + $0x50] sm:$0x7e]
    %v1263 = vld [vmem:[%s148 + $0x58] sm:$0x7e]
    %v1264 = vld [vmem:[%s148 + $0x60] sm:$0x7e]
    %v1278 = vrot.slane %v1252, 1
    %v1279 = vrot.slane %v1253, 1
    %v1280 = vrot.slane %v1254, 1
    %v1281 = vrot.slane %v1255, 1
    %v1282 = vrot.slane %v1256, 1
    %v1283 = vrot.slane %v1257, 1
    %v1284 = vrot.slane %v1258, 1
    %v1285 = vrot.slane %v1259, 1
    %v1286 = vrot.slane %v1260, 1
    %v1287 = vrot.slane %v1261, 1
    %v1288 = vrot.slane %v1262, 1
    %v1289 = vrot.slane %v1263, 1
    %v1290 = vrot.slane %v1264, 1
    %v1303 = vsel %vm254, %v1290, 0
    %1305 = vmatprep.subr.mxu0 0.0
    %1306 = vmatpush1.xpose.msra.mxu0 0.0
    %1307 = vmatprep.subr.mxu0 0.0
    %1308 = vmatpush1.xpose.msra.mxu0 0.0
    %1309 = vmatprep.subr.mxu0 0.0
    %1310 = vmatpush1.xpose.msra.mxu0 0.0
    %1311 = vmatprep.subr.mxu0 0.0
    %1312 = vmatpush1.xpose.msra.mxu0 0.0
    %1313 = vmatprep.subr.mxu0 0.0
    %1314 = vmatpush1.xpose.msra.mxu0 0.0
    %1315 = vmatprep.subr.mxu0 0.0
    %1316 = vmatpush1.xpose.msra.mxu0 0.0
    %1317 = vmatprep.subr.mxu0 0.0
    %1318 = vmatpush1.xpose.msra.mxu0 0.0
    %1319 = vmatprep.subr.mxu0 0.0
    %1320 = vmatpush1.xpose.msra.mxu0 0.0
    %1321 = vmatprep.subr.mxu0 0.0
    %1322 = vmatpush1.xpose.msra.mxu0 0.0
    %1323 = vmatprep.subr.mxu0 0.0
    %1324 = vmatpush1.xpose.msra.mxu0 0.0
    %1325 = vmatprep.subr.mxu0 0.0
    %1326 = vmatpush1.xpose.msra.mxu0 0.0
    %1327 = vmatprep.subr.mxu0 0.0
    %1328 = vmatpush1.xpose.msra.mxu0 0.0
    %1329 = vmatprep.subr.mxu0 0.0
    %1330 = vmatpush1.xpose.msra.mxu0 0.0
    %1331 = vmatprep.subr.mxu0 0.0
    %1332 = vmatpush1.xpose.msra.mxu0 0.0
    %1333 = vmatprep.subr.mxu0 %v191
    %1334 = vmatpush1.xpose.msra.mxu0 %v190
    %1335 = vmatprep.subr.mxu0 %v178
    %1336 = vmatpush1.xpose.msra.mxu0 %v177
    %1337 = vmatprep.subr.mxu0 0.0
    %1338 = vmatpush2.xpose.msra.mxu0 0.0
    %1339 = vmatprep.subr.mxu0 0.0
    %1340 = vmatpush2.xpose.msra.mxu0 0.0
    %1341 = vmatprep.subr.mxu0 0.0
    %1342 = vmatpush2.xpose.msra.mxu0 0.0
    %1343 = vmatprep.subr.mxu0 0.0
    %1344 = vmatpush2.xpose.msra.mxu0 0.0
    %1345 = vmatprep.subr.mxu0 0.0
    %1346 = vmatpush2.xpose.msra.mxu0 0.0
    %1347 = vmatprep.subr.mxu0 0.0
    %1348 = vmatpush2.xpose.msra.mxu0 0.0
    %1349 = vmatprep.subr.mxu0 0.0
    %1350 = vmatpush2.xpose.msra.mxu0 0.0
    %1351 = vmatprep.subr.mxu0 0.0
    %1352 = vmatpush2.xpose.msra.mxu0 0.0
    %1353 = vmatprep.subr.mxu0 0.0
    %1354 = vmatpush2.xpose.msra.mxu0 0.0
    %1355 = vmatprep.subr.mxu0 0.0
    %1356 = vmatpush2.xpose.msra.mxu0 0.0
    %1357 = vmatprep.subr.mxu0 0.0
    %1358 = vmatpush2.xpose.msra.mxu0 0.0
    %1359 = vmatprep.subr.mxu0 0.0
    %1360 = vmatpush2.xpose.msra.mxu0 0.0
    %1361 = vmatprep.subr.mxu0 0.0
    %1362 = vmatpush2.xpose.msra.mxu0 0.0
    %1363 = vmatprep.subr.mxu0 0.0
    %1364 = vmatpush2.xpose.msra.mxu0 0.0
    %1365 = vmatprep.subr.mxu0 0.0
    %1366 = vmatpush2.xpose.msra.mxu0 0.0
    %1367 = vmatprep.subr.mxu0 0.0
    %1368 = vmatpush2.xpose.msra.mxu0 0.0
    %1369 = vmatprep.mubr.f32.mxu0 %v1279
    %1370 = vmatmul.mubr.f32.gmra.mxu0 %v1278
    %v1371 = vpop.f32.mrf.mxu0
    %v1372 = vadd.f32 0.0, %v1371
    %v1373 = vpop.f32.mrf.mxu0
    %1374 = vdwg.mxu0
    %1375 = vmatprep.subr.mxu0 0.0
    %1376 = vmatpush1.xpose.msra.mxu0 0.0
    %1377 = vmatprep.subr.mxu0 0.0
    %1378 = vmatpush1.xpose.msra.mxu0 0.0
    %1379 = vmatprep.subr.mxu0 0.0
    %1380 = vmatpush1.xpose.msra.mxu0 0.0
    %1381 = vmatprep.subr.mxu0 0.0
    %1382 = vmatpush1.xpose.msra.mxu0 0.0
    %1383 = vmatprep.subr.mxu0 0.0
    %1384 = vmatpush1.xpose.msra.mxu0 0.0
    %1385 = vmatprep.subr.mxu0 0.0
    %1386 = vmatpush1.xpose.msra.mxu0 0.0
    %1387 = vmatprep.subr.mxu0 0.0
    %1388 = vmatpush1.xpose.msra.mxu0 0.0
    %1389 = vmatprep.subr.mxu0 0.0
    %1390 = vmatpush1.xpose.msra.mxu0 0.0
    %1391 = vmatprep.subr.mxu0 0.0
    %1392 = vmatpush1.xpose.msra.mxu0 0.0
    %1393 = vmatprep.subr.mxu0 0.0
    %1394 = vmatpush1.xpose.msra.mxu0 0.0
    %1395 = vmatprep.subr.mxu0 0.0
    %1396 = vmatpush1.xpose.msra.mxu0 0.0
    %1397 = vmatprep.subr.mxu0 0.0
    %1398 = vmatpush1.xpose.msra.mxu0 0.0
    %1399 = vmatprep.subr.mxu0 0.0
    %1400 = vmatpush1.xpose.msra.mxu0 0.0
    %1401 = vmatprep.subr.mxu0 0.0
    %1402 = vmatpush1.xpose.msra.mxu0 0.0
    %1403 = vmatprep.subr.mxu0 %v193
    %1404 = vmatpush1.xpose.msra.mxu0 %v192
    %1405 = vmatprep.subr.mxu0 %v180
    %1406 = vmatpush1.xpose.msra.mxu0 %v179
    %1407 = vmatprep.subr.mxu0 0.0
    %1408 = vmatpush2.xpose.msra.mxu0 0.0
    %1409 = vmatprep.subr.mxu0 0.0
    %1410 = vmatpush2.xpose.msra.mxu0 0.0
    %1411 = vmatprep.subr.mxu0 0.0
    %1412 = vmatpush2.xpose.msra.mxu0 0.0
    %1413 = vmatprep.subr.mxu0 0.0
    %1414 = vmatpush2.xpose.msra.mxu0 0.0
    %1415 = vmatprep.subr.mxu0 0.0
    %1416 = vmatpush2.xpose.msra.mxu0 0.0
    %1417 = vmatprep.subr.mxu0 0.0
    %1418 = vmatpush2.xpose.msra.mxu0 0.0
    %1419 = vmatprep.subr.mxu0 0.0
    %1420 = vmatpush2.xpose.msra.mxu0 0.0
    %1421 = vmatprep.subr.mxu0 0.0
    %1422 = vmatpush2.xpose.msra.mxu0 0.0
    %1423 = vmatprep.subr.mxu0 0.0
    %1424 = vmatpush2.xpose.msra.mxu0 0.0
    %1425 = vmatprep.subr.mxu0 0.0
    %1426 = vmatpush2.xpose.msra.mxu0 0.0
    %1427 = vmatprep.subr.mxu0 0.0
    %1428 = vmatpush2.xpose.msra.mxu0 0.0
    %1429 = vmatprep.subr.mxu0 0.0
    %1430 = vmatpush2.xpose.msra.mxu0 0.0
    %1431 = vmatprep.subr.mxu0 0.0
    %1432 = vmatpush2.xpose.msra.mxu0 0.0
    %1433 = vmatprep.subr.mxu0 0.0
    %1434 = vmatpush2.xpose.msra.mxu0 0.0
    %1435 = vmatprep.subr.mxu0 0.0
    %1436 = vmatpush2.xpose.msra.mxu0 0.0
    %1437 = vmatprep.subr.mxu0 0.0
    %1438 = vmatpush2.xpose.msra.mxu0 0.0
    %1439 = vmatprep.mubr.f32.mxu0 %v1281
    %1440 = vmatmul.mubr.f32.gmra.mxu0 %v1280
    %v1441 = vpop.f32.mrf.mxu0
    %v1442 = vadd.f32 %v1372, %v1441
    %v1443 = vpop.f32.mrf.mxu0
    %1444 = vdwg.mxu0
    %1445 = vmatprep.subr.mxu0 0.0
    %1446 = vmatpush1.xpose.msra.mxu0 0.0
    %1447 = vmatprep.subr.mxu0 0.0
    %1448 = vmatpush1.xpose.msra.mxu0 0.0
    %1449 = vmatprep.subr.mxu0 0.0
    %1450 = vmatpush1.xpose.msra.mxu0 0.0
    %1451 = vmatprep.subr.mxu0 0.0
    %1452 = vmatpush1.xpose.msra.mxu0 0.0
    %1453 = vmatprep.subr.mxu0 0.0
    %1454 = vmatpush1.xpose.msra.mxu0 0.0
    %1455 = vmatprep.subr.mxu0 0.0
    %1456 = vmatpush1.xpose.msra.mxu0 0.0
    %1457 = vmatprep.subr.mxu0 0.0
    %1458 = vmatpush1.xpose.msra.mxu0 0.0
    %1459 = vmatprep.subr.mxu0 0.0
    %1460 = vmatpush1.xpose.msra.mxu0 0.0
    %1461 = vmatprep.subr.mxu0 0.0
    %1462 = vmatpush1.xpose.msra.mxu0 0.0
    %1463 = vmatprep.subr.mxu0 0.0
    %1464 = vmatpush1.xpose.msra.mxu0 0.0
    %1465 = vmatprep.subr.mxu0 0.0
    %1466 = vmatpush1.xpose.msra.mxu0 0.0
    %1467 = vmatprep.subr.mxu0 0.0
    %1468 = vmatpush1.xpose.msra.mxu0 0.0
    %1469 = vmatprep.subr.mxu0 0.0
    %1470 = vmatpush1.xpose.msra.mxu0 0.0
    %1471 = vmatprep.subr.mxu0 0.0
    %1472 = vmatpush1.xpose.msra.mxu0 0.0
    %1473 = vmatprep.subr.mxu0 %v195
    %1474 = vmatpush1.xpose.msra.mxu0 %v194
    %1475 = vmatprep.subr.mxu0 %v182
    %1476 = vmatpush1.xpose.msra.mxu0 %v181
    %1477 = vmatprep.subr.mxu0 0.0
    %1478 = vmatpush2.xpose.msra.mxu0 0.0
    %1479 = vmatprep.subr.mxu0 0.0
    %1480 = vmatpush2.xpose.msra.mxu0 0.0
    %1481 = vmatprep.subr.mxu0 0.0
    %1482 = vmatpush2.xpose.msra.mxu0 0.0
    %1483 = vmatprep.subr.mxu0 0.0
    %1484 = vmatpush2.xpose.msra.mxu0 0.0
    %1485 = vmatprep.subr.mxu0 0.0
    %1486 = vmatpush2.xpose.msra.mxu0 0.0
    %1487 = vmatprep.subr.mxu0 0.0
    %1488 = vmatpush2.xpose.msra.mxu0 0.0
    %1489 = vmatprep.subr.mxu0 0.0
    %1490 = vmatpush2.xpose.msra.mxu0 0.0
    %1491 = vmatprep.subr.mxu0 0.0
    %1492 = vmatpush2.xpose.msra.mxu0 0.0
    %1493 = vmatprep.subr.mxu0 0.0
    %1494 = vmatpush2.xpose.msra.mxu0 0.0
    %1495 = vmatprep.subr.mxu0 0.0
    %1496 = vmatpush2.xpose.msra.mxu0 0.0
    %1497 = vmatprep.subr.mxu0 0.0
    %1498 = vmatpush2.xpose.msra.mxu0 0.0
    %1499 = vmatprep.subr.mxu0 0.0
    %1500 = vmatpush2.xpose.msra.mxu0 0.0
    %1501 = vmatprep.subr.mxu0 0.0
    %1502 = vmatpush2.xpose.msra.mxu0 0.0
    %1503 = vmatprep.subr.mxu0 0.0
    %1504 = vmatpush2.xpose.msra.mxu0 0.0
    %1505 = vmatprep.subr.mxu0 0.0
    %1506 = vmatpush2.xpose.msra.mxu0 0.0
    %1507 = vmatprep.subr.mxu0 0.0
    %1508 = vmatpush2.xpose.msra.mxu0 0.0
    %1509 = vmatprep.mubr.f32.mxu0 %v1283
    %1510 = vmatmul.mubr.f32.gmra.mxu0 %v1282
    %v1511 = vpop.f32.mrf.mxu0
    %v1512 = vadd.f32 %v1442, %v1511
    %v1513 = vpop.f32.mrf.mxu0
    %1514 = vdwg.mxu0
    %1515 = vmatprep.subr.mxu0 0.0
    %1516 = vmatpush1.xpose.msra.mxu0 0.0
    %1517 = vmatprep.subr.mxu0 0.0
    %1518 = vmatpush1.xpose.msra.mxu0 0.0
    %1519 = vmatprep.subr.mxu0 0.0
    %1520 = vmatpush1.xpose.msra.mxu0 0.0
    %1521 = vmatprep.subr.mxu0 0.0
    %1522 = vmatpush1.xpose.msra.mxu0 0.0
    %1523 = vmatprep.subr.mxu0 0.0
    %1524 = vmatpush1.xpose.msra.mxu0 0.0
    %1525 = vmatprep.subr.mxu0 0.0
    %1526 = vmatpush1.xpose.msra.mxu0 0.0
    %1527 = vmatprep.subr.mxu0 0.0
    %1528 = vmatpush1.xpose.msra.mxu0 0.0
    %1529 = vmatprep.subr.mxu0 0.0
    %1530 = vmatpush1.xpose.msra.mxu0 0.0
    %1531 = vmatprep.subr.mxu0 0.0
    %1532 = vmatpush1.xpose.msra.mxu0 0.0
    %1533 = vmatprep.subr.mxu0 0.0
    %1534 = vmatpush1.xpose.msra.mxu0 0.0
    %1535 = vmatprep.subr.mxu0 0.0
    %1536 = vmatpush1.xpose.msra.mxu0 0.0
    %1537 = vmatprep.subr.mxu0 0.0
    %1538 = vmatpush1.xpose.msra.mxu0 0.0
    %1539 = vmatprep.subr.mxu0 0.0
    %1540 = vmatpush1.xpose.msra.mxu0 0.0
    %1541 = vmatprep.subr.mxu0 0.0
    %1542 = vmatpush1.xpose.msra.mxu0 0.0
    %1543 = vmatprep.subr.mxu0 %v197
    %1544 = vmatpush1.xpose.msra.mxu0 %v196
    %1545 = vmatprep.subr.mxu0 %v184
    %1546 = vmatpush1.xpose.msra.mxu0 %v183
    %1547 = vmatprep.subr.mxu0 0.0
    %1548 = vmatpush2.xpose.msra.mxu0 0.0
    %1549 = vmatprep.subr.mxu0 0.0
    %1550 = vmatpush2.xpose.msra.mxu0 0.0
    %1551 = vmatprep.subr.mxu0 0.0
    %1552 = vmatpush2.xpose.msra.mxu0 0.0
    %1553 = vmatprep.subr.mxu0 0.0
    %1554 = vmatpush2.xpose.msra.mxu0 0.0
    %1555 = vmatprep.subr.mxu0 0.0
    %1556 = vmatpush2.xpose.msra.mxu0 0.0
    %1557 = vmatprep.subr.mxu0 0.0
    %1558 = vmatpush2.xpose.msra.mxu0 0.0
    %1559 = vmatprep.subr.mxu0 0.0
    %1560 = vmatpush2.xpose.msra.mxu0 0.0
    %1561 = vmatprep.subr.mxu0 0.0
    %1562 = vmatpush2.xpose.msra.mxu0 0.0
    %1563 = vmatprep.subr.mxu0 0.0
    %1564 = vmatpush2.xpose.msra.mxu0 0.0
    %1565 = vmatprep.subr.mxu0 0.0
    %1566 = vmatpush2.xpose.msra.mxu0 0.0
    %1567 = vmatprep.subr.mxu0 0.0
    %1568 = vmatpush2.xpose.msra.mxu0 0.0
    %1569 = vmatprep.subr.mxu0 0.0
    %1570 = vmatpush2.xpose.msra.mxu0 0.0
    %1571 = vmatprep.subr.mxu0 0.0
    %1572 = vmatpush2.xpose.msra.mxu0 0.0
    %1573 = vmatprep.subr.mxu0 0.0
    %1574 = vmatpush2.xpose.msra.mxu0 0.0
    %1575 = vmatprep.subr.mxu0 0.0
    %1576 = vmatpush2.xpose.msra.mxu0 0.0
    %1577 = vmatprep.subr.mxu0 0.0
    %1578 = vmatpush2.xpose.msra.mxu0 0.0
    %1579 = vmatprep.mubr.f32.mxu0 %v1285
    %1580 = vmatmul.mubr.f32.gmra.mxu0 %v1284
    %v1581 = vpop.f32.mrf.mxu0
    %v1582 = vadd.f32 %v1512, %v1581
    %v1583 = vpop.f32.mrf.mxu0
    %1584 = vdwg.mxu0
    %1585 = vmatprep.subr.mxu0 0.0
    %1586 = vmatpush1.xpose.msra.mxu0 0.0
    %1587 = vmatprep.subr.mxu0 0.0
    %1588 = vmatpush1.xpose.msra.mxu0 0.0
    %1589 = vmatprep.subr.mxu0 0.0
    %1590 = vmatpush1.xpose.msra.mxu0 0.0
    %1591 = vmatprep.subr.mxu0 0.0
    %1592 = vmatpush1.xpose.msra.mxu0 0.0
    %1593 = vmatprep.subr.mxu0 0.0
    %1594 = vmatpush1.xpose.msra.mxu0 0.0
    %1595 = vmatprep.subr.mxu0 0.0
    %1596 = vmatpush1.xpose.msra.mxu0 0.0
    %1597 = vmatprep.subr.mxu0 0.0
    %1598 = vmatpush1.xpose.msra.mxu0 0.0
    %1599 = vmatprep.subr.mxu0 0.0
    %1600 = vmatpush1.xpose.msra.mxu0 0.0
    %1601 = vmatprep.subr.mxu0 0.0
    %1602 = vmatpush1.xpose.msra.mxu0 0.0
    %1603 = vmatprep.subr.mxu0 0.0
    %1604 = vmatpush1.xpose.msra.mxu0 0.0
    %1605 = vmatprep.subr.mxu0 0.0
    %1606 = vmatpush1.xpose.msra.mxu0 0.0
    %1607 = vmatprep.subr.mxu0 0.0
    %1608 = vmatpush1.xpose.msra.mxu0 0.0
    %1609 = vmatprep.subr.mxu0 0.0
    %1610 = vmatpush1.xpose.msra.mxu0 0.0
    %1611 = vmatprep.subr.mxu0 0.0
    %1612 = vmatpush1.xpose.msra.mxu0 0.0
    %1613 = vmatprep.subr.mxu0 %v199
    %1614 = vmatpush1.xpose.msra.mxu0 %v198
    %1615 = vmatprep.subr.mxu0 %v186
    %1616 = vmatpush1.xpose.msra.mxu0 %v185
    %1617 = vmatprep.subr.mxu0 0.0
    %1618 = vmatpush2.xpose.msra.mxu0 0.0
    %1619 = vmatprep.subr.mxu0 0.0
    %1620 = vmatpush2.xpose.msra.mxu0 0.0
    %1621 = vmatprep.subr.mxu0 0.0
    %1622 = vmatpush2.xpose.msra.mxu0 0.0
    %1623 = vmatprep.subr.mxu0 0.0
    %1624 = vmatpush2.xpose.msra.mxu0 0.0
    %1625 = vmatprep.subr.mxu0 0.0
    %1626 = vmatpush2.xpose.msra.mxu0 0.0
    %1627 = vmatprep.subr.mxu0 0.0
    %1628 = vmatpush2.xpose.msra.mxu0 0.0
    %1629 = vmatprep.subr.mxu0 0.0
    %1630 = vmatpush2.xpose.msra.mxu0 0.0
    %1631 = vmatprep.subr.mxu0 0.0
    %1632 = vmatpush2.xpose.msra.mxu0 0.0
    %1633 = vmatprep.subr.mxu0 0.0
    %1634 = vmatpush2.xpose.msra.mxu0 0.0
    %1635 = vmatprep.subr.mxu0 0.0
    %1636 = vmatpush2.xpose.msra.mxu0 0.0
    %1637 = vmatprep.subr.mxu0 0.0
    %1638 = vmatpush2.xpose.msra.mxu0 0.0
    %1639 = vmatprep.subr.mxu0 0.0
    %1640 = vmatpush2.xpose.msra.mxu0 0.0
    %1641 = vmatprep.subr.mxu0 0.0
    %1642 = vmatpush2.xpose.msra.mxu0 0.0
    %1643 = vmatprep.subr.mxu0 0.0
    %1644 = vmatpush2.xpose.msra.mxu0 0.0
    %1645 = vmatprep.subr.mxu0 0.0
    %1646 = vmatpush2.xpose.msra.mxu0 0.0
    %1647 = vmatprep.subr.mxu0 0.0
    %1648 = vmatpush2.xpose.msra.mxu0 0.0
    %1649 = vmatprep.mubr.f32.mxu0 %v1287
    %1650 = vmatmul.mubr.f32.gmra.mxu0 %v1286
    %v1651 = vpop.f32.mrf.mxu0
    %v1652 = vadd.f32 %v1582, %v1651
    %v1653 = vpop.f32.mrf.mxu0
    %1654 = vdwg.mxu0
    %1655 = vmatprep.subr.mxu0 0.0
    %1656 = vmatpush1.xpose.msra.mxu0 0.0
    %1657 = vmatprep.subr.mxu0 0.0
    %1658 = vmatpush1.xpose.msra.mxu0 0.0
    %1659 = vmatprep.subr.mxu0 0.0
    %1660 = vmatpush1.xpose.msra.mxu0 0.0
    %1661 = vmatprep.subr.mxu0 0.0
    %1662 = vmatpush1.xpose.msra.mxu0 0.0
    %1663 = vmatprep.subr.mxu0 0.0
    %1664 = vmatpush1.xpose.msra.mxu0 0.0
    %1665 = vmatprep.subr.mxu0 0.0
    %1666 = vmatpush1.xpose.msra.mxu0 0.0
    %1667 = vmatprep.subr.mxu0 0.0
    %1668 = vmatpush1.xpose.msra.mxu0 0.0
    %1669 = vmatprep.subr.mxu0 0.0
    %1670 = vmatpush1.xpose.msra.mxu0 0.0
    %1671 = vmatprep.subr.mxu0 0.0
    %1672 = vmatpush1.xpose.msra.mxu0 0.0
    %1673 = vmatprep.subr.mxu0 0.0
    %1674 = vmatpush1.xpose.msra.mxu0 0.0
    %1675 = vmatprep.subr.mxu0 0.0
    %1676 = vmatpush1.xpose.msra.mxu0 0.0
    %1677 = vmatprep.subr.mxu0 0.0
    %1678 = vmatpush1.xpose.msra.mxu0 0.0
    %1679 = vmatprep.subr.mxu0 0.0
    %1680 = vmatpush1.xpose.msra.mxu0 0.0
    %1681 = vmatprep.subr.mxu0 0.0
    %1682 = vmatpush1.xpose.msra.mxu0 0.0
    %1683 = vmatprep.subr.mxu0 %v201
    %1684 = vmatpush1.xpose.msra.mxu0 %v200
    %1685 = vmatprep.subr.mxu0 %v188
    %1686 = vmatpush1.xpose.msra.mxu0 %v187
    %1687 = vmatprep.subr.mxu0 0.0
    %1688 = vmatpush2.xpose.msra.mxu0 0.0
    %1689 = vmatprep.subr.mxu0 0.0
    %1690 = vmatpush2.xpose.msra.mxu0 0.0
    %1691 = vmatprep.subr.mxu0 0.0
    %1692 = vmatpush2.xpose.msra.mxu0 0.0
    %1693 = vmatprep.subr.mxu0 0.0
    %1694 = vmatpush2.xpose.msra.mxu0 0.0
    %1695 = vmatprep.subr.mxu0 0.0
    %1696 = vmatpush2.xpose.msra.mxu0 0.0
    %1697 = vmatprep.subr.mxu0 0.0
    %1698 = vmatpush2.xpose.msra.mxu0 0.0
    %1699 = vmatprep.subr.mxu0 0.0
    %1700 = vmatpush2.xpose.msra.mxu0 0.0
    %1701 = vmatprep.subr.mxu0 0.0
    %1702 = vmatpush2.xpose.msra.mxu0 0.0
    %1703 = vmatprep.subr.mxu0 0.0
    %1704 = vmatpush2.xpose.msra.mxu0 0.0
    %1705 = vmatprep.subr.mxu0 0.0
    %1706 = vmatpush2.xpose.msra.mxu0 0.0
    %1707 = vmatprep.subr.mxu0 0.0
    %1708 = vmatpush2.xpose.msra.mxu0 0.0
    %1709 = vmatprep.subr.mxu0 0.0
    %1710 = vmatpush2.xpose.msra.mxu0 0.0
    %1711 = vmatprep.subr.mxu0 0.0
    %1712 = vmatpush2.xpose.msra.mxu0 0.0
    %1713 = vmatprep.subr.mxu0 0.0
    %1714 = vmatpush2.xpose.msra.mxu0 0.0
    %1715 = vmatprep.subr.mxu0 0.0
    %1716 = vmatpush2.xpose.msra.mxu0 0.0
    %1717 = vmatprep.subr.mxu0 0.0
    %1718 = vmatpush2.xpose.msra.mxu0 0.0
    %1719 = vmatprep.mubr.f32.mxu0 %v1289
    %1720 = vmatmul.mubr.f32.gmra.mxu0 %v1288
    %v1721 = vpop.f32.mrf.mxu0
    %v1722 = vadd.f32 %v1652, %v1721
    %v1723 = vpop.f32.mrf.mxu0
    %1724 = vdwg.mxu0
    %1725 = vmatprep.subr.mxu0 0.0
    %1726 = vmatpush1.xpose.msra.mxu0 0.0
    %1727 = vmatprep.subr.mxu0 0.0
    %1728 = vmatpush1.xpose.msra.mxu0 0.0
    %1729 = vmatprep.subr.mxu0 0.0
    %1730 = vmatpush1.xpose.msra.mxu0 0.0
    %1731 = vmatprep.subr.mxu0 0.0
    %1732 = vmatpush1.xpose.msra.mxu0 0.0
    %1733 = vmatprep.subr.mxu0 0.0
    %1734 = vmatpush1.xpose.msra.mxu0 0.0
    %1735 = vmatprep.subr.mxu0 0.0
    %1736 = vmatpush1.xpose.msra.mxu0 0.0
    %1737 = vmatprep.subr.mxu0 0.0
    %1738 = vmatpush1.xpose.msra.mxu0 0.0
    %1739 = vmatprep.subr.mxu0 0.0
    %1740 = vmatpush1.xpose.msra.mxu0 0.0
    %1741 = vmatprep.subr.mxu0 0.0
    %1742 = vmatpush1.xpose.msra.mxu0 0.0
    %1743 = vmatprep.subr.mxu0 0.0
    %1744 = vmatpush1.xpose.msra.mxu0 0.0
    %1745 = vmatprep.subr.mxu0 0.0
    %1746 = vmatpush1.xpose.msra.mxu0 0.0
    %1747 = vmatprep.subr.mxu0 0.0
    %1748 = vmatpush1.xpose.msra.mxu0 0.0
    %1749 = vmatprep.subr.mxu0 0.0
    %1750 = vmatpush1.xpose.msra.mxu0 0.0
    %1751 = vmatprep.subr.mxu0 0.0
    %1752 = vmatpush1.xpose.msra.mxu0 0.0
    %1753 = vmatprep.subr.mxu0 0.0
    %1754 = vmatpush1.xpose.msra.mxu0 %v261
    %1755 = vmatprep.subr.mxu0 0.0
    %1756 = vmatpush1.xpose.msra.mxu0 %v258
    %1757 = vmatprep.subr.mxu0 0.0
    %1758 = vmatpush2.xpose.msra.mxu0 0.0
    %1759 = vmatprep.subr.mxu0 0.0
    %1760 = vmatpush2.xpose.msra.mxu0 0.0
    %1761 = vmatprep.subr.mxu0 0.0
    %1762 = vmatpush2.xpose.msra.mxu0 0.0
    %1763 = vmatprep.subr.mxu0 0.0
    %1764 = vmatpush2.xpose.msra.mxu0 0.0
    %1765 = vmatprep.subr.mxu0 0.0
    %1766 = vmatpush2.xpose.msra.mxu0 0.0
    %1767 = vmatprep.subr.mxu0 0.0
    %1768 = vmatpush2.xpose.msra.mxu0 0.0
    %1769 = vmatprep.subr.mxu0 0.0
    %1770 = vmatpush2.xpose.msra.mxu0 0.0
    %1771 = vmatprep.subr.mxu0 0.0
    %1772 = vmatpush2.xpose.msra.mxu0 0.0
    %1773 = vmatprep.subr.mxu0 0.0
    %1774 = vmatpush2.xpose.msra.mxu0 0.0
    %1775 = vmatprep.subr.mxu0 0.0
    %1776 = vmatpush2.xpose.msra.mxu0 0.0
    %1777 = vmatprep.subr.mxu0 0.0
    %1778 = vmatpush2.xpose.msra.mxu0 0.0
    %1779 = vmatprep.subr.mxu0 0.0
    %1780 = vmatpush2.xpose.msra.mxu0 0.0
    %1781 = vmatprep.subr.mxu0 0.0
    %1782 = vmatpush2.xpose.msra.mxu0 0.0
    %1783 = vmatprep.subr.mxu0 0.0
    %1784 = vmatpush2.xpose.msra.mxu0 0.0
    %1785 = vmatprep.subr.mxu0 0.0
    %1786 = vmatpush2.xpose.msra.mxu0 0.0
    %1787 = vmatprep.subr.mxu0 0.0
    %1788 = vmatpush2.xpose.msra.mxu0 0.0
    %1789 = vmatprep.mubr.f32.mxu0 0.0
    %1790 = vmatmul.mubr.f32.gmra.mxu0 %v1303
    %v1791 = vpop.f32.mrf.mxu0
    %v1792 = vadd.f32 %v1722, %v1791
    %v1793 = vpop.f32.mrf.mxu0
    %1794 = vdwg.mxu0
    %v1796 = vsel %vm254, %v161, 0
    %1798 = vmatprep.subr.mxu0 0.0
    %1799 = vmatpush1.xpose.msra.mxu0 0.0
    %1800 = vmatprep.subr.mxu0 0.0
    %1801 = vmatpush1.xpose.msra.mxu0 0.0
    %1802 = vmatprep.subr.mxu0 0.0
    %1803 = vmatpush1.xpose.msra.mxu0 0.0
    %1804 = vmatprep.subr.mxu0 0.0
    %1805 = vmatpush1.xpose.msra.mxu0 0.0
    %1806 = vmatprep.subr.mxu0 0.0
    %1807 = vmatpush1.xpose.msra.mxu0 0.0
    %1808 = vmatprep.subr.mxu0 0.0
    %1809 = vmatpush1.xpose.msra.mxu0 0.0
    %1810 = vmatprep.subr.mxu0 0.0
    %1811 = vmatpush1.xpose.msra.mxu0 0.0
    %1812 = vmatprep.subr.mxu0 0.0
    %1813 = vmatpush1.xpose.msra.mxu0 0.0
    %1814 = vmatprep.subr.mxu0 0.0
    %1815 = vmatpush1.xpose.msra.mxu0 0.0
    %1816 = vmatprep.subr.mxu0 0.0
    %1817 = vmatpush1.xpose.msra.mxu0 0.0
    %1818 = vmatprep.subr.mxu0 0.0
    %1819 = vmatpush1.xpose.msra.mxu0 0.0
    %1820 = vmatprep.subr.mxu0 0.0
    %1821 = vmatpush1.xpose.msra.mxu0 0.0
    %1822 = vmatprep.subr.mxu0 0.0
    %1823 = vmatpush1.xpose.msra.mxu0 0.0
    %1824 = vmatprep.subr.mxu0 0.0
    %1825 = vmatpush1.xpose.msra.mxu0 0.0
    %1826 = vmatprep.subr.mxu0 %v123
    %1827 = vmatpush1.xpose.msra.mxu0 %v122
    %1828 = vmatprep.subr.mxu0 %v110
    %1829 = vmatpush1.xpose.msra.mxu0 %v109
    %1830 = vmatprep.subr.mxu0 0.0
    %1831 = vmatpush2.xpose.msra.mxu0 0.0
    %1832 = vmatprep.subr.mxu0 0.0
    %1833 = vmatpush2.xpose.msra.mxu0 0.0
    %1834 = vmatprep.subr.mxu0 0.0
    %1835 = vmatpush2.xpose.msra.mxu0 0.0
    %1836 = vmatprep.subr.mxu0 0.0
    %1837 = vmatpush2.xpose.msra.mxu0 0.0
    %1838 = vmatprep.subr.mxu0 0.0
    %1839 = vmatpush2.xpose.msra.mxu0 0.0
    %1840 = vmatprep.subr.mxu0 0.0
    %1841 = vmatpush2.xpose.msra.mxu0 0.0
    %1842 = vmatprep.subr.mxu0 0.0
    %1843 = vmatpush2.xpose.msra.mxu0 0.0
    %1844 = vmatprep.subr.mxu0 0.0
    %1845 = vmatpush2.xpose.msra.mxu0 0.0
    %1846 = vmatprep.subr.mxu0 0.0
    %1847 = vmatpush2.xpose.msra.mxu0 0.0
    %1848 = vmatprep.subr.mxu0 0.0
    %1849 = vmatpush2.xpose.msra.mxu0 0.0
    %1850 = vmatprep.subr.mxu0 0.0
    %1851 = vmatpush2.xpose.msra.mxu0 0.0
    %1852 = vmatprep.subr.mxu0 0.0
    %1853 = vmatpush2.xpose.msra.mxu0 0.0
    %1854 = vmatprep.subr.mxu0 0.0
    %1855 = vmatpush2.xpose.msra.mxu0 0.0
    %1856 = vmatprep.subr.mxu0 0.0
    %1857 = vmatpush2.xpose.msra.mxu0 0.0
    %1858 = vmatprep.subr.mxu0 0.0
    %1859 = vmatpush2.xpose.msra.mxu0 0.0
    %1860 = vmatprep.subr.mxu0 0.0
    %1861 = vmatpush2.xpose.msra.mxu0 0.0
    %1862 = vmatprep.mubr.f32.mxu0 %v150
    %1863 = vmatmul.mubr.f32.gmra.mxu0 %v149
    %v1864 = vpop.f32.mrf.mxu0
    %v1865 = vadd.f32 %v1792, %v1864
    %v1866 = vpop.f32.mrf.mxu0
    %1867 = vdwg.mxu0
    %1868 = vmatprep.subr.mxu0 0.0
    %1869 = vmatpush1.xpose.msra.mxu0 0.0
    %1870 = vmatprep.subr.mxu0 0.0
    %1871 = vmatpush1.xpose.msra.mxu0 0.0
    %1872 = vmatprep.subr.mxu0 0.0
    %1873 = vmatpush1.xpose.msra.mxu0 0.0
    %1874 = vmatprep.subr.mxu0 0.0
    %1875 = vmatpush1.xpose.msra.mxu0 0.0
    %1876 = vmatprep.subr.mxu0 0.0
    %1877 = vmatpush1.xpose.msra.mxu0 0.0
    %1878 = vmatprep.subr.mxu0 0.0
    %1879 = vmatpush1.xpose.msra.mxu0 0.0
    %1880 = vmatprep.subr.mxu0 0.0
    %1881 = vmatpush1.xpose.msra.mxu0 0.0
    %1882 = vmatprep.subr.mxu0 0.0
    %1883 = vmatpush1.xpose.msra.mxu0 0.0
    %1884 = vmatprep.subr.mxu0 0.0
    %1885 = vmatpush1.xpose.msra.mxu0 0.0
    %1886 = vmatprep.subr.mxu0 0.0
    %1887 = vmatpush1.xpose.msra.mxu0 0.0
    %1888 = vmatprep.subr.mxu0 0.0
    %1889 = vmatpush1.xpose.msra.mxu0 0.0
    %1890 = vmatprep.subr.mxu0 0.0
    %1891 = vmatpush1.xpose.msra.mxu0 0.0
    %1892 = vmatprep.subr.mxu0 0.0
    %1893 = vmatpush1.xpose.msra.mxu0 0.0
    %1894 = vmatprep.subr.mxu0 0.0
    %1895 = vmatpush1.xpose.msra.mxu0 0.0
    %1896 = vmatprep.subr.mxu0 %v125
    %1897 = vmatpush1.xpose.msra.mxu0 %v124
    %1898 = vmatprep.subr.mxu0 %v112
    %1899 = vmatpush1.xpose.msra.mxu0 %v111
    %1900 = vmatprep.subr.mxu0 0.0
    %1901 = vmatpush2.xpose.msra.mxu0 0.0
    %1902 = vmatprep.subr.mxu0 0.0
    %1903 = vmatpush2.xpose.msra.mxu0 0.0
    %1904 = vmatprep.subr.mxu0 0.0
    %1905 = vmatpush2.xpose.msra.mxu0 0.0
    %1906 = vmatprep.subr.mxu0 0.0
    %1907 = vmatpush2.xpose.msra.mxu0 0.0
    %1908 = vmatprep.subr.mxu0 0.0
    %1909 = vmatpush2.xpose.msra.mxu0 0.0
    %1910 = vmatprep.subr.mxu0 0.0
    %1911 = vmatpush2.xpose.msra.mxu0 0.0
    %1912 = vmatprep.subr.mxu0 0.0
    %1913 = vmatpush2.xpose.msra.mxu0 0.0
    %1914 = vmatprep.subr.mxu0 0.0
    %1915 = vmatpush2.xpose.msra.mxu0 0.0
    %1916 = vmatprep.subr.mxu0 0.0
    %1917 = vmatpush2.xpose.msra.mxu0 0.0
    %1918 = vmatprep.subr.mxu0 0.0
    %1919 = vmatpush2.xpose.msra.mxu0 0.0
    %1920 = vmatprep.subr.mxu0 0.0
    %1921 = vmatpush2.xpose.msra.mxu0 0.0
    %1922 = vmatprep.subr.mxu0 0.0
    %1923 = vmatpush2.xpose.msra.mxu0 0.0
    %1924 = vmatprep.subr.mxu0 0.0
    %1925 = vmatpush2.xpose.msra.mxu0 0.0
    %1926 = vmatprep.subr.mxu0 0.0
    %1927 = vmatpush2.xpose.msra.mxu0 0.0
    %1928 = vmatprep.subr.mxu0 0.0
    %1929 = vmatpush2.xpose.msra.mxu0 0.0
    %1930 = vmatprep.subr.mxu0 0.0
    %1931 = vmatpush2.xpose.msra.mxu0 0.0
    %1932 = vmatprep.mubr.f32.mxu0 %v152
    %1933 = vmatmul.mubr.f32.gmra.mxu0 %v151
    %v1934 = vpop.f32.mrf.mxu0
    %v1935 = vadd.f32 %v1865, %v1934
    %v1936 = vpop.f32.mrf.mxu0
    %1937 = vdwg.mxu0
    %1938 = vmatprep.subr.mxu0 0.0
    %1939 = vmatpush1.xpose.msra.mxu0 0.0
    %1940 = vmatprep.subr.mxu0 0.0
    %1941 = vmatpush1.xpose.msra.mxu0 0.0
    %1942 = vmatprep.subr.mxu0 0.0
    %1943 = vmatpush1.xpose.msra.mxu0 0.0
    %1944 = vmatprep.subr.mxu0 0.0
    %1945 = vmatpush1.xpose.msra.mxu0 0.0
    %1946 = vmatprep.subr.mxu0 0.0
    %1947 = vmatpush1.xpose.msra.mxu0 0.0
    %1948 = vmatprep.subr.mxu0 0.0
    %1949 = vmatpush1.xpose.msra.mxu0 0.0
    %1950 = vmatprep.subr.mxu0 0.0
    %1951 = vmatpush1.xpose.msra.mxu0 0.0
    %1952 = vmatprep.subr.mxu0 0.0
    %1953 = vmatpush1.xpose.msra.mxu0 0.0
    %1954 = vmatprep.subr.mxu0 0.0
    %1955 = vmatpush1.xpose.msra.mxu0 0.0
    %1956 = vmatprep.subr.mxu0 0.0
    %1957 = vmatpush1.xpose.msra.mxu0 0.0
    %1958 = vmatprep.subr.mxu0 0.0
    %1959 = vmatpush1.xpose.msra.mxu0 0.0
    %1960 = vmatprep.subr.mxu0 0.0
    %1961 = vmatpush1.xpose.msra.mxu0 0.0
    %1962 = vmatprep.subr.mxu0 0.0
    %1963 = vmatpush1.xpose.msra.mxu0 0.0
    %1964 = vmatprep.subr.mxu0 0.0
    %1965 = vmatpush1.xpose.msra.mxu0 0.0
    %1966 = vmatprep.subr.mxu0 %v127
    %1967 = vmatpush1.xpose.msra.mxu0 %v126
    %1968 = vmatprep.subr.mxu0 %v114
    %1969 = vmatpush1.xpose.msra.mxu0 %v113
    %1970 = vmatprep.subr.mxu0 0.0
    %1971 = vmatpush2.xpose.msra.mxu0 0.0
    %1972 = vmatprep.subr.mxu0 0.0
    %1973 = vmatpush2.xpose.msra.mxu0 0.0
    %1974 = vmatprep.subr.mxu0 0.0
    %1975 = vmatpush2.xpose.msra.mxu0 0.0
    %1976 = vmatprep.subr.mxu0 0.0
    %1977 = vmatpush2.xpose.msra.mxu0 0.0
    %1978 = vmatprep.subr.mxu0 0.0
    %1979 = vmatpush2.xpose.msra.mxu0 0.0
    %1980 = vmatprep.subr.mxu0 0.0
    %1981 = vmatpush2.xpose.msra.mxu0 0.0
    %1982 = vmatprep.subr.mxu0 0.0
    %1983 = vmatpush2.xpose.msra.mxu0 0.0
    %1984 = vmatprep.subr.mxu0 0.0
    %1985 = vmatpush2.xpose.msra.mxu0 0.0
    %1986 = vmatprep.subr.mxu0 0.0
    %1987 = vmatpush2.xpose.msra.mxu0 0.0
    %1988 = vmatprep.subr.mxu0 0.0
    %1989 = vmatpush2.xpose.msra.mxu0 0.0
    %1990 = vmatprep.subr.mxu0 0.0
    %1991 = vmatpush2.xpose.msra.mxu0 0.0
    %1992 = vmatprep.subr.mxu0 0.0
    %1993 = vmatpush2.xpose.msra.mxu0 0.0
    %1994 = vmatprep.subr.mxu0 0.0
    %1995 = vmatpush2.xpose.msra.mxu0 0.0
    %1996 = vmatprep.subr.mxu0 0.0
    %1997 = vmatpush2.xpose.msra.mxu0 0.0
    %1998 = vmatprep.subr.mxu0 0.0
    %1999 = vmatpush2.xpose.msra.mxu0 0.0
    %2000 = vmatprep.subr.mxu0 0.0
    %2001 = vmatpush2.xpose.msra.mxu0 0.0
    %2002 = vmatprep.mubr.f32.mxu0 %v154
    %2003 = vmatmul.mubr.f32.gmra.mxu0 %v153
    %v2004 = vpop.f32.mrf.mxu0
    %v2005 = vadd.f32 %v1935, %v2004
    %v2006 = vpop.f32.mrf.mxu0
    %2007 = vdwg.mxu0
    %2008 = vmatprep.subr.mxu0 0.0
    %2009 = vmatpush1.xpose.msra.mxu0 0.0
    %2010 = vmatprep.subr.mxu0 0.0
    %2011 = vmatpush1.xpose.msra.mxu0 0.0
    %2012 = vmatprep.subr.mxu0 0.0
    %2013 = vmatpush1.xpose.msra.mxu0 0.0
    %2014 = vmatprep.subr.mxu0 0.0
    %2015 = vmatpush1.xpose.msra.mxu0 0.0
    %2016 = vmatprep.subr.mxu0 0.0
    %2017 = vmatpush1.xpose.msra.mxu0 0.0
    %2018 = vmatprep.subr.mxu0 0.0
    %2019 = vmatpush1.xpose.msra.mxu0 0.0
    %2020 = vmatprep.subr.mxu0 0.0
    %2021 = vmatpush1.xpose.msra.mxu0 0.0
    %2022 = vmatprep.subr.mxu0 0.0
    %2023 = vmatpush1.xpose.msra.mxu0 0.0
    %2024 = vmatprep.subr.mxu0 0.0
    %2025 = vmatpush1.xpose.msra.mxu0 0.0
    %2026 = vmatprep.subr.mxu0 0.0
    %2027 = vmatpush1.xpose.msra.mxu0 0.0
    %2028 = vmatprep.subr.mxu0 0.0
    %2029 = vmatpush1.xpose.msra.mxu0 0.0
    %2030 = vmatprep.subr.mxu0 0.0
    %2031 = vmatpush1.xpose.msra.mxu0 0.0
    %2032 = vmatprep.subr.mxu0 0.0
    %2033 = vmatpush1.xpose.msra.mxu0 0.0
    %2034 = vmatprep.subr.mxu0 0.0
    %2035 = vmatpush1.xpose.msra.mxu0 0.0
    %2036 = vmatprep.subr.mxu0 %v129
    %2037 = vmatpush1.xpose.msra.mxu0 %v128
    %2038 = vmatprep.subr.mxu0 %v116
    %2039 = vmatpush1.xpose.msra.mxu0 %v115
    %2040 = vmatprep.subr.mxu0 0.0
    %2041 = vmatpush2.xpose.msra.mxu0 0.0
    %2042 = vmatprep.subr.mxu0 0.0
    %2043 = vmatpush2.xpose.msra.mxu0 0.0
    %2044 = vmatprep.subr.mxu0 0.0
    %2045 = vmatpush2.xpose.msra.mxu0 0.0
    %2046 = vmatprep.subr.mxu0 0.0
    %2047 = vmatpush2.xpose.msra.mxu0 0.0
    %2048 = vmatprep.subr.mxu0 0.0
    %2049 = vmatpush2.xpose.msra.mxu0 0.0
    %2050 = vmatprep.subr.mxu0 0.0
    %2051 = vmatpush2.xpose.msra.mxu0 0.0
    %2052 = vmatprep.subr.mxu0 0.0
    %2053 = vmatpush2.xpose.msra.mxu0 0.0
    %2054 = vmatprep.subr.mxu0 0.0
    %2055 = vmatpush2.xpose.msra.mxu0 0.0
    %2056 = vmatprep.subr.mxu0 0.0
    %2057 = vmatpush2.xpose.msra.mxu0 0.0
    %2058 = vmatprep.subr.mxu0 0.0
    %2059 = vmatpush2.xpose.msra.mxu0 0.0
    %2060 = vmatprep.subr.mxu0 0.0
    %2061 = vmatpush2.xpose.msra.mxu0 0.0
    %2062 = vmatprep.subr.mxu0 0.0
    %2063 = vmatpush2.xpose.msra.mxu0 0.0
    %2064 = vmatprep.subr.mxu0 0.0
    %2065 = vmatpush2.xpose.msra.mxu0 0.0
    %2066 = vmatprep.subr.mxu0 0.0
    %2067 = vmatpush2.xpose.msra.mxu0 0.0
    %2068 = vmatprep.subr.mxu0 0.0
    %2069 = vmatpush2.xpose.msra.mxu0 0.0
    %2070 = vmatprep.subr.mxu0 0.0
    %2071 = vmatpush2.xpose.msra.mxu0 0.0
    %2072 = vmatprep.mubr.f32.mxu0 %v156
    %2073 = vmatmul.mubr.f32.gmra.mxu0 %v155
    %v2074 = vpop.f32.mrf.mxu0
    %v2075 = vadd.f32 %v2005, %v2074
    %v2076 = vpop.f32.mrf.mxu0
    %2077 = vdwg.mxu0
    %2078 = vmatprep.subr.mxu0 0.0
    %2079 = vmatpush1.xpose.msra.mxu0 0.0
    %2080 = vmatprep.subr.mxu0 0.0
    %2081 = vmatpush1.xpose.msra.mxu0 0.0
    %2082 = vmatprep.subr.mxu0 0.0
    %2083 = vmatpush1.xpose.msra.mxu0 0.0
    %2084 = vmatprep.subr.mxu0 0.0
    %2085 = vmatpush1.xpose.msra.mxu0 0.0
    %2086 = vmatprep.subr.mxu0 0.0
    %2087 = vmatpush1.xpose.msra.mxu0 0.0
    %2088 = vmatprep.subr.mxu0 0.0
    %2089 = vmatpush1.xpose.msra.mxu0 0.0
    %2090 = vmatprep.subr.mxu0 0.0
    %2091 = vmatpush1.xpose.msra.mxu0 0.0
    %2092 = vmatprep.subr.mxu0 0.0
    %2093 = vmatpush1.xpose.msra.mxu0 0.0
    %2094 = vmatprep.subr.mxu0 0.0
    %2095 = vmatpush1.xpose.msra.mxu0 0.0
    %2096 = vmatprep.subr.mxu0 0.0
    %2097 = vmatpush1.xpose.msra.mxu0 0.0
    %2098 = vmatprep.subr.mxu0 0.0
    %2099 = vmatpush1.xpose.msra.mxu0 0.0
    %2100 = vmatprep.subr.mxu0 0.0
    %2101 = vmatpush1.xpose.msra.mxu0 0.0
    %2102 = vmatprep.subr.mxu0 0.0
    %2103 = vmatpush1.xpose.msra.mxu0 0.0
    %2104 = vmatprep.subr.mxu0 0.0
    %2105 = vmatpush1.xpose.msra.mxu0 0.0
    %2106 = vmatprep.subr.mxu0 %v131
    %2107 = vmatpush1.xpose.msra.mxu0 %v130
    %2108 = vmatprep.subr.mxu0 %v118
    %2109 = vmatpush1.xpose.msra.mxu0 %v117
    %2110 = vmatprep.subr.mxu0 0.0
    %2111 = vmatpush2.xpose.msra.mxu0 0.0
    %2112 = vmatprep.subr.mxu0 0.0
    %2113 = vmatpush2.xpose.msra.mxu0 0.0
    %2114 = vmatprep.subr.mxu0 0.0
    %2115 = vmatpush2.xpose.msra.mxu0 0.0
    %2116 = vmatprep.subr.mxu0 0.0
    %2117 = vmatpush2.xpose.msra.mxu0 0.0
    %2118 = vmatprep.subr.mxu0 0.0
    %2119 = vmatpush2.xpose.msra.mxu0 0.0
    %2120 = vmatprep.subr.mxu0 0.0
    %2121 = vmatpush2.xpose.msra.mxu0 0.0
    %2122 = vmatprep.subr.mxu0 0.0
    %2123 = vmatpush2.xpose.msra.mxu0 0.0
    %2124 = vmatprep.subr.mxu0 0.0
    %2125 = vmatpush2.xpose.msra.mxu0 0.0
    %2126 = vmatprep.subr.mxu0 0.0
    %2127 = vmatpush2.xpose.msra.mxu0 0.0
    %2128 = vmatprep.subr.mxu0 0.0
    %2129 = vmatpush2.xpose.msra.mxu0 0.0
    %2130 = vmatprep.subr.mxu0 0.0
    %2131 = vmatpush2.xpose.msra.mxu0 0.0
    %2132 = vmatprep.subr.mxu0 0.0
    %2133 = vmatpush2.xpose.msra.mxu0 0.0
    %2134 = vmatprep.subr.mxu0 0.0
    %2135 = vmatpush2.xpose.msra.mxu0 0.0
    %2136 = vmatprep.subr.mxu0 0.0
    %2137 = vmatpush2.xpose.msra.mxu0 0.0
    %2138 = vmatprep.subr.mxu0 0.0
    %2139 = vmatpush2.xpose.msra.mxu0 0.0
    %2140 = vmatprep.subr.mxu0 0.0
    %2141 = vmatpush2.xpose.msra.mxu0 0.0
    %2142 = vmatprep.mubr.f32.mxu0 %v158
    %2143 = vmatmul.mubr.f32.gmra.mxu0 %v157
    %v2144 = vpop.f32.mrf.mxu0
    %v2145 = vadd.f32 %v2075, %v2144
    %v2146 = vpop.f32.mrf.mxu0
    %2147 = vdwg.mxu0
    %2148 = vmatprep.subr.mxu0 0.0
    %2149 = vmatpush1.xpose.msra.mxu0 0.0
    %2150 = vmatprep.subr.mxu0 0.0
    %2151 = vmatpush1.xpose.msra.mxu0 0.0
    %2152 = vmatprep.subr.mxu0 0.0
    %2153 = vmatpush1.xpose.msra.mxu0 0.0
    %2154 = vmatprep.subr.mxu0 0.0
    %2155 = vmatpush1.xpose.msra.mxu0 0.0
    %2156 = vmatprep.subr.mxu0 0.0
    %2157 = vmatpush1.xpose.msra.mxu0 0.0
    %2158 = vmatprep.subr.mxu0 0.0
    %2159 = vmatpush1.xpose.msra.mxu0 0.0
    %2160 = vmatprep.subr.mxu0 0.0
    %2161 = vmatpush1.xpose.msra.mxu0 0.0
    %2162 = vmatprep.subr.mxu0 0.0
    %2163 = vmatpush1.xpose.msra.mxu0 0.0
    %2164 = vmatprep.subr.mxu0 0.0
    %2165 = vmatpush1.xpose.msra.mxu0 0.0
    %2166 = vmatprep.subr.mxu0 0.0
    %2167 = vmatpush1.xpose.msra.mxu0 0.0
    %2168 = vmatprep.subr.mxu0 0.0
    %2169 = vmatpush1.xpose.msra.mxu0 0.0
    %2170 = vmatprep.subr.mxu0 0.0
    %2171 = vmatpush1.xpose.msra.mxu0 0.0
    %2172 = vmatprep.subr.mxu0 0.0
    %2173 = vmatpush1.xpose.msra.mxu0 0.0
    %2174 = vmatprep.subr.mxu0 0.0
    %2175 = vmatpush1.xpose.msra.mxu0 0.0
    %2176 = vmatprep.subr.mxu0 %v133
    %2177 = vmatpush1.xpose.msra.mxu0 %v132
    %2178 = vmatprep.subr.mxu0 %v120
    %2179 = vmatpush1.xpose.msra.mxu0 %v119
    %2180 = vmatprep.subr.mxu0 0.0
    %2181 = vmatpush2.xpose.msra.mxu0 0.0
    %2182 = vmatprep.subr.mxu0 0.0
    %2183 = vmatpush2.xpose.msra.mxu0 0.0
    %2184 = vmatprep.subr.mxu0 0.0
    %2185 = vmatpush2.xpose.msra.mxu0 0.0
    %2186 = vmatprep.subr.mxu0 0.0
    %2187 = vmatpush2.xpose.msra.mxu0 0.0
    %2188 = vmatprep.subr.mxu0 0.0
    %2189 = vmatpush2.xpose.msra.mxu0 0.0
    %2190 = vmatprep.subr.mxu0 0.0
    %2191 = vmatpush2.xpose.msra.mxu0 0.0
    %2192 = vmatprep.subr.mxu0 0.0
    %2193 = vmatpush2.xpose.msra.mxu0 0.0
    %2194 = vmatprep.subr.mxu0 0.0
    %2195 = vmatpush2.xpose.msra.mxu0 0.0
    %2196 = vmatprep.subr.mxu0 0.0
    %2197 = vmatpush2.xpose.msra.mxu0 0.0
    %2198 = vmatprep.subr.mxu0 0.0
    %2199 = vmatpush2.xpose.msra.mxu0 0.0
    %2200 = vmatprep.subr.mxu0 0.0
    %2201 = vmatpush2.xpose.msra.mxu0 0.0
    %2202 = vmatprep.subr.mxu0 0.0
    %2203 = vmatpush2.xpose.msra.mxu0 0.0
    %2204 = vmatprep.subr.mxu0 0.0
    %2205 = vmatpush2.xpose.msra.mxu0 0.0
    %2206 = vmatprep.subr.mxu0 0.0
    %2207 = vmatpush2.xpose.msra.mxu0 0.0
    %2208 = vmatprep.subr.mxu0 0.0
    %2209 = vmatpush2.xpose.msra.mxu0 0.0
    %2210 = vmatprep.subr.mxu0 0.0
    %2211 = vmatpush2.xpose.msra.mxu0 0.0
    %2212 = vmatprep.mubr.f32.mxu0 %v160
    %2213 = vmatmul.mubr.f32.gmra.mxu0 %v159
    %v2214 = vpop.f32.mrf.mxu0
    %v2215 = vadd.f32 %v2145, %v2214
    %v2216 = vpop.f32.mrf.mxu0
    %2217 = vdwg.mxu0
    %2218 = vmatprep.subr.mxu0 0.0
    %2219 = vmatpush1.xpose.msra.mxu0 0.0
    %2220 = vmatprep.subr.mxu0 0.0
    %2221 = vmatpush1.xpose.msra.mxu0 0.0
    %2222 = vmatprep.subr.mxu0 0.0
    %2223 = vmatpush1.xpose.msra.mxu0 0.0
    %2224 = vmatprep.subr.mxu0 0.0
    %2225 = vmatpush1.xpose.msra.mxu0 0.0
    %2226 = vmatprep.subr.mxu0 0.0
    %2227 = vmatpush1.xpose.msra.mxu0 0.0
    %2228 = vmatprep.subr.mxu0 0.0
    %2229 = vmatpush1.xpose.msra.mxu0 0.0
    %2230 = vmatprep.subr.mxu0 0.0
    %2231 = vmatpush1.xpose.msra.mxu0 0.0
    %2232 = vmatprep.subr.mxu0 0.0
    %2233 = vmatpush1.xpose.msra.mxu0 0.0
    %2234 = vmatprep.subr.mxu0 0.0
    %2235 = vmatpush1.xpose.msra.mxu0 0.0
    %2236 = vmatprep.subr.mxu0 0.0
    %2237 = vmatpush1.xpose.msra.mxu0 0.0
    %2238 = vmatprep.subr.mxu0 0.0
    %2239 = vmatpush1.xpose.msra.mxu0 0.0
    %2240 = vmatprep.subr.mxu0 0.0
    %2241 = vmatpush1.xpose.msra.mxu0 0.0
    %2242 = vmatprep.subr.mxu0 0.0
    %2243 = vmatpush1.xpose.msra.mxu0 0.0
    %2244 = vmatprep.subr.mxu0 0.0
    %2245 = vmatpush1.xpose.msra.mxu0 0.0
    %2246 = vmatprep.subr.mxu0 0.0
    %2247 = vmatpush1.xpose.msra.mxu0 %v760
    %2248 = vmatprep.subr.mxu0 0.0
    %2249 = vmatpush1.xpose.msra.mxu0 %v757
    %2250 = vmatprep.subr.mxu0 0.0
    %2251 = vmatpush2.xpose.msra.mxu0 0.0
    %2252 = vmatprep.subr.mxu0 0.0
    %2253 = vmatpush2.xpose.msra.mxu0 0.0
    %2254 = vmatprep.subr.mxu0 0.0
    %2255 = vmatpush2.xpose.msra.mxu0 0.0
    %2256 = vmatprep.subr.mxu0 0.0
    %2257 = vmatpush2.xpose.msra.mxu0 0.0
    %2258 = vmatprep.subr.mxu0 0.0
    %2259 = vmatpush2.xpose.msra.mxu0 0.0
    %2260 = vmatprep.subr.mxu0 0.0
    %2261 = vmatpush2.xpose.msra.mxu0 0.0
    %2262 = vmatprep.subr.mxu0 0.0
    %2263 = vmatpush2.xpose.msra.mxu0 0.0
    %2264 = vmatprep.subr.mxu0 0.0
    %2265 = vmatpush2.xpose.msra.mxu0 0.0
    %2266 = vmatprep.subr.mxu0 0.0
    %2267 = vmatpush2.xpose.msra.mxu0 0.0
    %2268 = vmatprep.subr.mxu0 0.0
    %2269 = vmatpush2.xpose.msra.mxu0 0.0
    %2270 = vmatprep.subr.mxu0 0.0
    %2271 = vmatpush2.xpose.msra.mxu0 0.0
    %2272 = vmatprep.subr.mxu0 0.0
    %2273 = vmatpush2.xpose.msra.mxu0 0.0
    %2274 = vmatprep.subr.mxu0 0.0
    %2275 = vmatpush2.xpose.msra.mxu0 0.0
    %2276 = vmatprep.subr.mxu0 0.0
    %2277 = vmatpush2.xpose.msra.mxu0 0.0
    %2278 = vmatprep.subr.mxu0 0.0
    %2279 = vmatpush2.xpose.msra.mxu0 0.0
    %2280 = vmatprep.subr.mxu0 0.0
    %2281 = vmatpush2.xpose.msra.mxu0 0.0
    %2282 = vmatprep.mubr.f32.mxu0 0.0
    %2283 = vmatmul.mubr.f32.gmra.mxu0 %v1796
    %v2284 = vpop.f32.mrf.mxu0
    %v2285 = vadd.f32 %v2215, %v2284
    %v2286 = vpop.f32.mrf.mxu0
    %2287 = vdwg.mxu0
    %s2288 = scalar_lea.vmem [#allocation5], 208
    %v2289 = vld [vmem:[%s2288] sm:$0xff]
    %v2290 = vld [vmem:[%s2288 + $0x8] sm:$0xff]
    %v2291 = vld [vmem:[%s2288 + $0x10] sm:$0xff]
    %v2292 = vld [vmem:[%s2288 + $0x18] sm:$0xff]
    %v2293 = vld [vmem:[%s2288 + $0x20] sm:$0xff]
    %v2294 = vld [vmem:[%s2288 + $0x28] sm:$0xff]
    %v2295 = vld [vmem:[%s2288 + $0x30] sm:$0xf]
    %v2296 = vld [vmem:[%s2288 + $0x34] sm:$0xff]
    %v2297 = vld [vmem:[%s2288 + $0x3c] sm:$0xff]
    %v2298 = vld [vmem:[%s2288 + $0x44] sm:$0xff]
    %v2299 = vld [vmem:[%s2288 + $0x4c] sm:$0xff]
    %v2300 = vld [vmem:[%s2288 + $0x54] sm:$0xff]
    %v2301 = vld [vmem:[%s2288 + $0x5c] sm:$0xff]
    %v2302 = vld [vmem:[%s2288 + $0x64] sm:$0xf]
    %v2303 = vunpack.c.l.bf16 %v2289
    %v2304 = vunpack.c.h.bf16 %v2289
    %v2305 = vunpack.c.l.bf16 %v2290
    %v2306 = vunpack.c.h.bf16 %v2290
    %v2307 = vunpack.c.l.bf16 %v2291
    %v2308 = vunpack.c.h.bf16 %v2291
    %v2309 = vunpack.c.l.bf16 %v2292
    %v2310 = vunpack.c.h.bf16 %v2292
    %v2311 = vunpack.c.l.bf16 %v2293
    %v2312 = vunpack.c.h.bf16 %v2293
    %v2313 = vunpack.c.l.bf16 %v2294
    %v2314 = vunpack.c.h.bf16 %v2294
    %v2315 = vunpack.c.l.bf16 %v2295
    %v2316 = vunpack.c.l.bf16 %v2296
    %v2317 = vunpack.c.h.bf16 %v2296
    %v2318 = vunpack.c.l.bf16 %v2297
    %v2319 = vunpack.c.h.bf16 %v2297
    %v2320 = vunpack.c.l.bf16 %v2298
    %v2321 = vunpack.c.h.bf16 %v2298
    %v2322 = vunpack.c.l.bf16 %v2299
    %v2323 = vunpack.c.h.bf16 %v2299
    %v2324 = vunpack.c.l.bf16 %v2300
    %v2325 = vunpack.c.h.bf16 %v2300
    %v2326 = vunpack.c.l.bf16 %v2301
    %v2327 = vunpack.c.h.bf16 %v2301
    %v2328 = vunpack.c.l.bf16 %v2302
    %v2329 = vld [vmem:[#allocation2] sm:$0xfc]
    %v2330 = vld [vmem:[#allocation2 + $0x8] sm:$0xfc]
    %v2331 = vld [vmem:[#allocation2 + $0x10] sm:$0xfc]
    %v2332 = vld [vmem:[#allocation2 + $0x18] sm:$0xfc]
    %v2333 = vld [vmem:[#allocation2 + $0x20] sm:$0xfc]
    %v2334 = vld [vmem:[#allocation2 + $0x28] sm:$0xfc]
    %v2335 = vld [vmem:[#allocation2 + $0x30] sm:$0xfc]
    %v2336 = vld [vmem:[#allocation2 + $0x38] sm:$0xfc]
    %v2337 = vld [vmem:[#allocation2 + $0x40] sm:$0xfc]
    %v2338 = vld [vmem:[#allocation2 + $0x48] sm:$0xfc]
    %v2339 = vld [vmem:[#allocation2 + $0x50] sm:$0xfc]
    %v2340 = vld [vmem:[#allocation2 + $0x58] sm:$0xfc]
    %v2341 = vld [vmem:[#allocation2 + $0x60] sm:$0xfc]
    %v2355 = vrot.slane %v2329, 2
    %v2356 = vrot.slane %v2330, 2
    %v2357 = vrot.slane %v2331, 2
    %v2358 = vrot.slane %v2332, 2
    %v2359 = vrot.slane %v2333, 2
    %v2360 = vrot.slane %v2334, 2
    %v2361 = vrot.slane %v2335, 2
    %v2362 = vrot.slane %v2336, 2
    %v2363 = vrot.slane %v2337, 2
    %v2364 = vrot.slane %v2338, 2
    %v2365 = vrot.slane %v2339, 2
    %v2366 = vrot.slane %v2340, 2
    %v2367 = vrot.slane %v2341, 2
    %v2380 = vsel %vm254, %v2367, 0
    %v2383 = vsel %vm254, %v2315, 0
    %v2386 = vsel %vm254, %v2328, 0
    %2388 = vmatprep.subr.mxu0 0.0
    %2389 = vmatpush1.xpose.msra.mxu0 0.0
    %2390 = vmatprep.subr.mxu0 0.0
    %2391 = vmatpush1.xpose.msra.mxu0 0.0
    %2392 = vmatprep.subr.mxu0 0.0
    %2393 = vmatpush1.xpose.msra.mxu0 0.0
    %2394 = vmatprep.subr.mxu0 0.0
    %2395 = vmatpush1.xpose.msra.mxu0 0.0
    %2396 = vmatprep.subr.mxu0 0.0
    %2397 = vmatpush1.xpose.msra.mxu0 0.0
    %2398 = vmatprep.subr.mxu0 0.0
    %2399 = vmatpush1.xpose.msra.mxu0 0.0
    %2400 = vmatprep.subr.mxu0 0.0
    %2401 = vmatpush1.xpose.msra.mxu0 0.0
    %2402 = vmatprep.subr.mxu0 0.0
    %2403 = vmatpush1.xpose.msra.mxu0 0.0
    %2404 = vmatprep.subr.mxu0 0.0
    %2405 = vmatpush1.xpose.msra.mxu0 0.0
    %2406 = vmatprep.subr.mxu0 0.0
    %2407 = vmatpush1.xpose.msra.mxu0 0.0
    %2408 = vmatprep.subr.mxu0 0.0
    %2409 = vmatpush1.xpose.msra.mxu0 0.0
    %2410 = vmatprep.subr.mxu0 0.0
    %2411 = vmatpush1.xpose.msra.mxu0 0.0
    %2412 = vmatprep.subr.mxu0 0.0
    %2413 = vmatpush1.xpose.msra.mxu0 0.0
    %2414 = vmatprep.subr.mxu0 0.0
    %2415 = vmatpush1.xpose.msra.mxu0 0.0
    %2416 = vmatprep.subr.mxu0 %v2317
    %2417 = vmatpush1.xpose.msra.mxu0 %v2316
    %2418 = vmatprep.subr.mxu0 %v2304
    %2419 = vmatpush1.xpose.msra.mxu0 %v2303
    %2420 = vmatprep.subr.mxu0 0.0
    %2421 = vmatpush2.xpose.msra.mxu0 0.0
    %2422 = vmatprep.subr.mxu0 0.0
    %2423 = vmatpush2.xpose.msra.mxu0 0.0
    %2424 = vmatprep.subr.mxu0 0.0
    %2425 = vmatpush2.xpose.msra.mxu0 0.0
    %2426 = vmatprep.subr.mxu0 0.0
    %2427 = vmatpush2.xpose.msra.mxu0 0.0
    %2428 = vmatprep.subr.mxu0 0.0
    %2429 = vmatpush2.xpose.msra.mxu0 0.0
    %2430 = vmatprep.subr.mxu0 0.0
    %2431 = vmatpush2.xpose.msra.mxu0 0.0
    %2432 = vmatprep.subr.mxu0 0.0
    %2433 = vmatpush2.xpose.msra.mxu0 0.0
    %2434 = vmatprep.subr.mxu0 0.0
    %2435 = vmatpush2.xpose.msra.mxu0 0.0
    %2436 = vmatprep.subr.mxu0 0.0
    %2437 = vmatpush2.xpose.msra.mxu0 0.0
    %2438 = vmatprep.subr.mxu0 0.0
    %2439 = vmatpush2.xpose.msra.mxu0 0.0
    %2440 = vmatprep.subr.mxu0 0.0
    %2441 = vmatpush2.xpose.msra.mxu0 0.0
    %2442 = vmatprep.subr.mxu0 0.0
    %2443 = vmatpush2.xpose.msra.mxu0 0.0
    %2444 = vmatprep.subr.mxu0 0.0
    %2445 = vmatpush2.xpose.msra.mxu0 0.0
    %2446 = vmatprep.subr.mxu0 0.0
    %2447 = vmatpush2.xpose.msra.mxu0 0.0
    %2448 = vmatprep.subr.mxu0 0.0
    %2449 = vmatpush2.xpose.msra.mxu0 0.0
    %2450 = vmatprep.subr.mxu0 0.0
    %2451 = vmatpush2.xpose.msra.mxu0 0.0
    %2452 = vmatprep.mubr.f32.mxu0 %v2356
    %2453 = vmatmul.mubr.f32.gmra.mxu0 %v2355
    %v2454 = vpop.f32.mrf.mxu0
    %v2455 = vadd.f32 0.0, %v2454
    %v2456 = vpop.f32.mrf.mxu0
    %2457 = vdwg.mxu0
    %2458 = vmatprep.subr.mxu0 0.0
    %2459 = vmatpush1.xpose.msra.mxu0 0.0
    %2460 = vmatprep.subr.mxu0 0.0
    %2461 = vmatpush1.xpose.msra.mxu0 0.0
    %2462 = vmatprep.subr.mxu0 0.0
    %2463 = vmatpush1.xpose.msra.mxu0 0.0
    %2464 = vmatprep.subr.mxu0 0.0
    %2465 = vmatpush1.xpose.msra.mxu0 0.0
    %2466 = vmatprep.subr.mxu0 0.0
    %2467 = vmatpush1.xpose.msra.mxu0 0.0
    %2468 = vmatprep.subr.mxu0 0.0
    %2469 = vmatpush1.xpose.msra.mxu0 0.0
    %2470 = vmatprep.subr.mxu0 0.0
    %2471 = vmatpush1.xpose.msra.mxu0 0.0
    %2472 = vmatprep.subr.mxu0 0.0
    %2473 = vmatpush1.xpose.msra.mxu0 0.0
    %2474 = vmatprep.subr.mxu0 0.0
    %2475 = vmatpush1.xpose.msra.mxu0 0.0
    %2476 = vmatprep.subr.mxu0 0.0
    %2477 = vmatpush1.xpose.msra.mxu0 0.0
    %2478 = vmatprep.subr.mxu0 0.0
    %2479 = vmatpush1.xpose.msra.mxu0 0.0
    %2480 = vmatprep.subr.mxu0 0.0
    %2481 = vmatpush1.xpose.msra.mxu0 0.0
    %2482 = vmatprep.subr.mxu0 0.0
    %2483 = vmatpush1.xpose.msra.mxu0 0.0
    %2484 = vmatprep.subr.mxu0 0.0
    %2485 = vmatpush1.xpose.msra.mxu0 0.0
    %2486 = vmatprep.subr.mxu0 %v2319
    %2487 = vmatpush1.xpose.msra.mxu0 %v2318
    %2488 = vmatprep.subr.mxu0 %v2306
    %2489 = vmatpush1.xpose.msra.mxu0 %v2305
    %2490 = vmatprep.subr.mxu0 0.0
    %2491 = vmatpush2.xpose.msra.mxu0 0.0
    %2492 = vmatprep.subr.mxu0 0.0
    %2493 = vmatpush2.xpose.msra.mxu0 0.0
    %2494 = vmatprep.subr.mxu0 0.0
    %2495 = vmatpush2.xpose.msra.mxu0 0.0
    %2496 = vmatprep.subr.mxu0 0.0
    %2497 = vmatpush2.xpose.msra.mxu0 0.0
    %2498 = vmatprep.subr.mxu0 0.0
    %2499 = vmatpush2.xpose.msra.mxu0 0.0
    %2500 = vmatprep.subr.mxu0 0.0
    %2501 = vmatpush2.xpose.msra.mxu0 0.0
    %2502 = vmatprep.subr.mxu0 0.0
    %2503 = vmatpush2.xpose.msra.mxu0 0.0
    %2504 = vmatprep.subr.mxu0 0.0
    %2505 = vmatpush2.xpose.msra.mxu0 0.0
    %2506 = vmatprep.subr.mxu0 0.0
    %2507 = vmatpush2.xpose.msra.mxu0 0.0
    %2508 = vmatprep.subr.mxu0 0.0
    %2509 = vmatpush2.xpose.msra.mxu0 0.0
    %2510 = vmatprep.subr.mxu0 0.0
    %2511 = vmatpush2.xpose.msra.mxu0 0.0
    %2512 = vmatprep.subr.mxu0 0.0
    %2513 = vmatpush2.xpose.msra.mxu0 0.0
    %2514 = vmatprep.subr.mxu0 0.0
    %2515 = vmatpush2.xpose.msra.mxu0 0.0
    %2516 = vmatprep.subr.mxu0 0.0
    %2517 = vmatpush2.xpose.msra.mxu0 0.0
    %2518 = vmatprep.subr.mxu0 0.0
    %2519 = vmatpush2.xpose.msra.mxu0 0.0
    %2520 = vmatprep.subr.mxu0 0.0
    %2521 = vmatpush2.xpose.msra.mxu0 0.0
    %2522 = vmatprep.mubr.f32.mxu0 %v2358
    %2523 = vmatmul.mubr.f32.gmra.mxu0 %v2357
    %v2524 = vpop.f32.mrf.mxu0
    %v2525 = vadd.f32 %v2455, %v2524
    %v2526 = vpop.f32.mrf.mxu0
    %2527 = vdwg.mxu0
    %2528 = vmatprep.subr.mxu0 0.0
    %2529 = vmatpush1.xpose.msra.mxu0 0.0
    %2530 = vmatprep.subr.mxu0 0.0
    %2531 = vmatpush1.xpose.msra.mxu0 0.0
    %2532 = vmatprep.subr.mxu0 0.0
    %2533 = vmatpush1.xpose.msra.mxu0 0.0
    %2534 = vmatprep.subr.mxu0 0.0
    %2535 = vmatpush1.xpose.msra.mxu0 0.0
    %2536 = vmatprep.subr.mxu0 0.0
    %2537 = vmatpush1.xpose.msra.mxu0 0.0
    %2538 = vmatprep.subr.mxu0 0.0
    %2539 = vmatpush1.xpose.msra.mxu0 0.0
    %2540 = vmatprep.subr.mxu0 0.0
    %2541 = vmatpush1.xpose.msra.mxu0 0.0
    %2542 = vmatprep.subr.mxu0 0.0
    %2543 = vmatpush1.xpose.msra.mxu0 0.0
    %2544 = vmatprep.subr.mxu0 0.0
    %2545 = vmatpush1.xpose.msra.mxu0 0.0
    %2546 = vmatprep.subr.mxu0 0.0
    %2547 = vmatpush1.xpose.msra.mxu0 0.0
    %2548 = vmatprep.subr.mxu0 0.0
    %2549 = vmatpush1.xpose.msra.mxu0 0.0
    %2550 = vmatprep.subr.mxu0 0.0
    %2551 = vmatpush1.xpose.msra.mxu0 0.0
    %2552 = vmatprep.subr.mxu0 0.0
    %2553 = vmatpush1.xpose.msra.mxu0 0.0
    %2554 = vmatprep.subr.mxu0 0.0
    %2555 = vmatpush1.xpose.msra.mxu0 0.0
    %2556 = vmatprep.subr.mxu0 %v2321
    %2557 = vmatpush1.xpose.msra.mxu0 %v2320
    %2558 = vmatprep.subr.mxu0 %v2308
    %2559 = vmatpush1.xpose.msra.mxu0 %v2307
    %2560 = vmatprep.subr.mxu0 0.0
    %2561 = vmatpush2.xpose.msra.mxu0 0.0
    %2562 = vmatprep.subr.mxu0 0.0
    %2563 = vmatpush2.xpose.msra.mxu0 0.0
    %2564 = vmatprep.subr.mxu0 0.0
    %2565 = vmatpush2.xpose.msra.mxu0 0.0
    %2566 = vmatprep.subr.mxu0 0.0
    %2567 = vmatpush2.xpose.msra.mxu0 0.0
    %2568 = vmatprep.subr.mxu0 0.0
    %2569 = vmatpush2.xpose.msra.mxu0 0.0
    %2570 = vmatprep.subr.mxu0 0.0
    %2571 = vmatpush2.xpose.msra.mxu0 0.0
    %2572 = vmatprep.subr.mxu0 0.0
    %2573 = vmatpush2.xpose.msra.mxu0 0.0
    %2574 = vmatprep.subr.mxu0 0.0
    %2575 = vmatpush2.xpose.msra.mxu0 0.0
    %2576 = vmatprep.subr.mxu0 0.0
    %2577 = vmatpush2.xpose.msra.mxu0 0.0
    %2578 = vmatprep.subr.mxu0 0.0
    %2579 = vmatpush2.xpose.msra.mxu0 0.0
    %2580 = vmatprep.subr.mxu0 0.0
    %2581 = vmatpush2.xpose.msra.mxu0 0.0
    %2582 = vmatprep.subr.mxu0 0.0
    %2583 = vmatpush2.xpose.msra.mxu0 0.0
    %2584 = vmatprep.subr.mxu0 0.0
    %2585 = vmatpush2.xpose.msra.mxu0 0.0
    %2586 = vmatprep.subr.mxu0 0.0
    %2587 = vmatpush2.xpose.msra.mxu0 0.0
    %2588 = vmatprep.subr.mxu0 0.0
    %2589 = vmatpush2.xpose.msra.mxu0 0.0
    %2590 = vmatprep.subr.mxu0 0.0
    %2591 = vmatpush2.xpose.msra.mxu0 0.0
    %2592 = vmatprep.mubr.f32.mxu0 %v2360
    %2593 = vmatmul.mubr.f32.gmra.mxu0 %v2359
    %v2594 = vpop.f32.mrf.mxu0
    %v2595 = vadd.f32 %v2525, %v2594
    %v2596 = vpop.f32.mrf.mxu0
    %2597 = vdwg.mxu0
    %2598 = vmatprep.subr.mxu0 0.0
    %2599 = vmatpush1.xpose.msra.mxu0 0.0
    %2600 = vmatprep.subr.mxu0 0.0
    %2601 = vmatpush1.xpose.msra.mxu0 0.0
    %2602 = vmatprep.subr.mxu0 0.0
    %2603 = vmatpush1.xpose.msra.mxu0 0.0
    %2604 = vmatprep.subr.mxu0 0.0
    %2605 = vmatpush1.xpose.msra.mxu0 0.0
    %2606 = vmatprep.subr.mxu0 0.0
    %2607 = vmatpush1.xpose.msra.mxu0 0.0
    %2608 = vmatprep.subr.mxu0 0.0
    %2609 = vmatpush1.xpose.msra.mxu0 0.0
    %2610 = vmatprep.subr.mxu0 0.0
    %2611 = vmatpush1.xpose.msra.mxu0 0.0
    %2612 = vmatprep.subr.mxu0 0.0
    %2613 = vmatpush1.xpose.msra.mxu0 0.0
    %2614 = vmatprep.subr.mxu0 0.0
    %2615 = vmatpush1.xpose.msra.mxu0 0.0
    %2616 = vmatprep.subr.mxu0 0.0
    %2617 = vmatpush1.xpose.msra.mxu0 0.0
    %2618 = vmatprep.subr.mxu0 0.0
    %2619 = vmatpush1.xpose.msra.mxu0 0.0
    %2620 = vmatprep.subr.mxu0 0.0
    %2621 = vmatpush1.xpose.msra.mxu0 0.0
    %2622 = vmatprep.subr.mxu0 0.0
    %2623 = vmatpush1.xpose.msra.mxu0 0.0
    %2624 = vmatprep.subr.mxu0 0.0
    %2625 = vmatpush1.xpose.msra.mxu0 0.0
    %2626 = vmatprep.subr.mxu0 %v2323
    %2627 = vmatpush1.xpose.msra.mxu0 %v2322
    %2628 = vmatprep.subr.mxu0 %v2310
    %2629 = vmatpush1.xpose.msra.mxu0 %v2309
    %2630 = vmatprep.subr.mxu0 0.0
    %2631 = vmatpush2.xpose.msra.mxu0 0.0
    %2632 = vmatprep.subr.mxu0 0.0
    %2633 = vmatpush2.xpose.msra.mxu0 0.0
    %2634 = vmatprep.subr.mxu0 0.0
    %2635 = vmatpush2.xpose.msra.mxu0 0.0
    %2636 = vmatprep.subr.mxu0 0.0
    %2637 = vmatpush2.xpose.msra.mxu0 0.0
    %2638 = vmatprep.subr.mxu0 0.0
    %2639 = vmatpush2.xpose.msra.mxu0 0.0
    %2640 = vmatprep.subr.mxu0 0.0
    %2641 = vmatpush2.xpose.msra.mxu0 0.0
    %2642 = vmatprep.subr.mxu0 0.0
    %2643 = vmatpush2.xpose.msra.mxu0 0.0
    %2644 = vmatprep.subr.mxu0 0.0
    %2645 = vmatpush2.xpose.msra.mxu0 0.0
    %2646 = vmatprep.subr.mxu0 0.0
    %2647 = vmatpush2.xpose.msra.mxu0 0.0
    %2648 = vmatprep.subr.mxu0 0.0
    %2649 = vmatpush2.xpose.msra.mxu0 0.0
    %2650 = vmatprep.subr.mxu0 0.0
    %2651 = vmatpush2.xpose.msra.mxu0 0.0
    %2652 = vmatprep.subr.mxu0 0.0
    %2653 = vmatpush2.xpose.msra.mxu0 0.0
    %2654 = vmatprep.subr.mxu0 0.0
    %2655 = vmatpush2.xpose.msra.mxu0 0.0
    %2656 = vmatprep.subr.mxu0 0.0
    %2657 = vmatpush2.xpose.msra.mxu0 0.0
    %2658 = vmatprep.subr.mxu0 0.0
    %2659 = vmatpush2.xpose.msra.mxu0 0.0
    %2660 = vmatprep.subr.mxu0 0.0
    %2661 = vmatpush2.xpose.msra.mxu0 0.0
    %2662 = vmatprep.mubr.f32.mxu0 %v2362
    %2663 = vmatmul.mubr.f32.gmra.mxu0 %v2361
    %v2664 = vpop.f32.mrf.mxu0
    %v2665 = vadd.f32 %v2595, %v2664
    %v2666 = vpop.f32.mrf.mxu0
    %2667 = vdwg.mxu0
    %2668 = vmatprep.subr.mxu0 0.0
    %2669 = vmatpush1.xpose.msra.mxu0 0.0
    %2670 = vmatprep.subr.mxu0 0.0
    %2671 = vmatpush1.xpose.msra.mxu0 0.0
    %2672 = vmatprep.subr.mxu0 0.0
    %2673 = vmatpush1.xpose.msra.mxu0 0.0
    %2674 = vmatprep.subr.mxu0 0.0
    %2675 = vmatpush1.xpose.msra.mxu0 0.0
    %2676 = vmatprep.subr.mxu0 0.0
    %2677 = vmatpush1.xpose.msra.mxu0 0.0
    %2678 = vmatprep.subr.mxu0 0.0
    %2679 = vmatpush1.xpose.msra.mxu0 0.0
    %2680 = vmatprep.subr.mxu0 0.0
    %2681 = vmatpush1.xpose.msra.mxu0 0.0
    %2682 = vmatprep.subr.mxu0 0.0
    %2683 = vmatpush1.xpose.msra.mxu0 0.0
    %2684 = vmatprep.subr.mxu0 0.0
    %2685 = vmatpush1.xpose.msra.mxu0 0.0
    %2686 = vmatprep.subr.mxu0 0.0
    %2687 = vmatpush1.xpose.msra.mxu0 0.0
    %2688 = vmatprep.subr.mxu0 0.0
    %2689 = vmatpush1.xpose.msra.mxu0 0.0
    %2690 = vmatprep.subr.mxu0 0.0
    %2691 = vmatpush1.xpose.msra.mxu0 0.0
    %2692 = vmatprep.subr.mxu0 0.0
    %2693 = vmatpush1.xpose.msra.mxu0 0.0
    %2694 = vmatprep.subr.mxu0 0.0
    %2695 = vmatpush1.xpose.msra.mxu0 0.0
    %2696 = vmatprep.subr.mxu0 %v2325
    %2697 = vmatpush1.xpose.msra.mxu0 %v2324
    %2698 = vmatprep.subr.mxu0 %v2312
    %2699 = vmatpush1.xpose.msra.mxu0 %v2311
    %2700 = vmatprep.subr.mxu0 0.0
    %2701 = vmatpush2.xpose.msra.mxu0 0.0
    %2702 = vmatprep.subr.mxu0 0.0
    %2703 = vmatpush2.xpose.msra.mxu0 0.0
    %2704 = vmatprep.subr.mxu0 0.0
    %2705 = vmatpush2.xpose.msra.mxu0 0.0
    %2706 = vmatprep.subr.mxu0 0.0
    %2707 = vmatpush2.xpose.msra.mxu0 0.0
    %2708 = vmatprep.subr.mxu0 0.0
    %2709 = vmatpush2.xpose.msra.mxu0 0.0
    %2710 = vmatprep.subr.mxu0 0.0
    %2711 = vmatpush2.xpose.msra.mxu0 0.0
    %2712 = vmatprep.subr.mxu0 0.0
    %2713 = vmatpush2.xpose.msra.mxu0 0.0
    %2714 = vmatprep.subr.mxu0 0.0
    %2715 = vmatpush2.xpose.msra.mxu0 0.0
    %2716 = vmatprep.subr.mxu0 0.0
    %2717 = vmatpush2.xpose.msra.mxu0 0.0
    %2718 = vmatprep.subr.mxu0 0.0
    %2719 = vmatpush2.xpose.msra.mxu0 0.0
    %2720 = vmatprep.subr.mxu0 0.0
    %2721 = vmatpush2.xpose.msra.mxu0 0.0
    %2722 = vmatprep.subr.mxu0 0.0
    %2723 = vmatpush2.xpose.msra.mxu0 0.0
    %2724 = vmatprep.subr.mxu0 0.0
    %2725 = vmatpush2.xpose.msra.mxu0 0.0
    %2726 = vmatprep.subr.mxu0 0.0
    %2727 = vmatpush2.xpose.msra.mxu0 0.0
    %2728 = vmatprep.subr.mxu0 0.0
    %2729 = vmatpush2.xpose.msra.mxu0 0.0
    %2730 = vmatprep.subr.mxu0 0.0
    %2731 = vmatpush2.xpose.msra.mxu0 0.0
    %2732 = vmatprep.mubr.f32.mxu0 %v2364
    %2733 = vmatmul.mubr.f32.gmra.mxu0 %v2363
    %v2734 = vpop.f32.mrf.mxu0
    %v2735 = vadd.f32 %v2665, %v2734
    %v2736 = vpop.f32.mrf.mxu0
    %2737 = vdwg.mxu0
    %2738 = vmatprep.subr.mxu0 0.0
    %2739 = vmatpush1.xpose.msra.mxu0 0.0
    %2740 = vmatprep.subr.mxu0 0.0
    %2741 = vmatpush1.xpose.msra.mxu0 0.0
    %2742 = vmatprep.subr.mxu0 0.0
    %2743 = vmatpush1.xpose.msra.mxu0 0.0
    %2744 = vmatprep.subr.mxu0 0.0
    %2745 = vmatpush1.xpose.msra.mxu0 0.0
    %2746 = vmatprep.subr.mxu0 0.0
    %2747 = vmatpush1.xpose.msra.mxu0 0.0
    %2748 = vmatprep.subr.mxu0 0.0
    %2749 = vmatpush1.xpose.msra.mxu0 0.0
    %2750 = vmatprep.subr.mxu0 0.0
    %2751 = vmatpush1.xpose.msra.mxu0 0.0
    %2752 = vmatprep.subr.mxu0 0.0
    %2753 = vmatpush1.xpose.msra.mxu0 0.0
    %2754 = vmatprep.subr.mxu0 0.0
    %2755 = vmatpush1.xpose.msra.mxu0 0.0
    %2756 = vmatprep.subr.mxu0 0.0
    %2757 = vmatpush1.xpose.msra.mxu0 0.0
    %2758 = vmatprep.subr.mxu0 0.0
    %2759 = vmatpush1.xpose.msra.mxu0 0.0
    %2760 = vmatprep.subr.mxu0 0.0
    %2761 = vmatpush1.xpose.msra.mxu0 0.0
    %2762 = vmatprep.subr.mxu0 0.0
    %2763 = vmatpush1.xpose.msra.mxu0 0.0
    %2764 = vmatprep.subr.mxu0 0.0
    %2765 = vmatpush1.xpose.msra.mxu0 0.0
    %2766 = vmatprep.subr.mxu0 %v2327
    %2767 = vmatpush1.xpose.msra.mxu0 %v2326
    %2768 = vmatprep.subr.mxu0 %v2314
    %2769 = vmatpush1.xpose.msra.mxu0 %v2313
    %2770 = vmatprep.subr.mxu0 0.0
    %2771 = vmatpush2.xpose.msra.mxu0 0.0
    %2772 = vmatprep.subr.mxu0 0.0
    %2773 = vmatpush2.xpose.msra.mxu0 0.0
    %2774 = vmatprep.subr.mxu0 0.0
    %2775 = vmatpush2.xpose.msra.mxu0 0.0
    %2776 = vmatprep.subr.mxu0 0.0
    %2777 = vmatpush2.xpose.msra.mxu0 0.0
    %2778 = vmatprep.subr.mxu0 0.0
    %2779 = vmatpush2.xpose.msra.mxu0 0.0
    %2780 = vmatprep.subr.mxu0 0.0
    %2781 = vmatpush2.xpose.msra.mxu0 0.0
    %2782 = vmatprep.subr.mxu0 0.0
    %2783 = vmatpush2.xpose.msra.mxu0 0.0
    %2784 = vmatprep.subr.mxu0 0.0
    %2785 = vmatpush2.xpose.msra.mxu0 0.0
    %2786 = vmatprep.subr.mxu0 0.0
    %2787 = vmatpush2.xpose.msra.mxu0 0.0
    %2788 = vmatprep.subr.mxu0 0.0
    %2789 = vmatpush2.xpose.msra.mxu0 0.0
    %2790 = vmatprep.subr.mxu0 0.0
    %2791 = vmatpush2.xpose.msra.mxu0 0.0
    %2792 = vmatprep.subr.mxu0 0.0
    %2793 = vmatpush2.xpose.msra.mxu0 0.0
    %2794 = vmatprep.subr.mxu0 0.0
    %2795 = vmatpush2.xpose.msra.mxu0 0.0
    %2796 = vmatprep.subr.mxu0 0.0
    %2797 = vmatpush2.xpose.msra.mxu0 0.0
    %2798 = vmatprep.subr.mxu0 0.0
    %2799 = vmatpush2.xpose.msra.mxu0 0.0
    %2800 = vmatprep.subr.mxu0 0.0
    %2801 = vmatpush2.xpose.msra.mxu0 0.0
    %2802 = vmatprep.mubr.f32.mxu0 %v2366
    %2803 = vmatmul.mubr.f32.gmra.mxu0 %v2365
    %v2804 = vpop.f32.mrf.mxu0
    %v2805 = vadd.f32 %v2735, %v2804
    %v2806 = vpop.f32.mrf.mxu0
    %2807 = vdwg.mxu0
    %2808 = vmatprep.subr.mxu0 0.0
    %2809 = vmatpush1.xpose.msra.mxu0 0.0
    %2810 = vmatprep.subr.mxu0 0.0
    %2811 = vmatpush1.xpose.msra.mxu0 0.0
    %2812 = vmatprep.subr.mxu0 0.0
    %2813 = vmatpush1.xpose.msra.mxu0 0.0
    %2814 = vmatprep.subr.mxu0 0.0
    %2815 = vmatpush1.xpose.msra.mxu0 0.0
    %2816 = vmatprep.subr.mxu0 0.0
    %2817 = vmatpush1.xpose.msra.mxu0 0.0
    %2818 = vmatprep.subr.mxu0 0.0
    %2819 = vmatpush1.xpose.msra.mxu0 0.0
    %2820 = vmatprep.subr.mxu0 0.0
    %2821 = vmatpush1.xpose.msra.mxu0 0.0
    %2822 = vmatprep.subr.mxu0 0.0
    %2823 = vmatpush1.xpose.msra.mxu0 0.0
    %2824 = vmatprep.subr.mxu0 0.0
    %2825 = vmatpush1.xpose.msra.mxu0 0.0
    %2826 = vmatprep.subr.mxu0 0.0
    %2827 = vmatpush1.xpose.msra.mxu0 0.0
    %2828 = vmatprep.subr.mxu0 0.0
    %2829 = vmatpush1.xpose.msra.mxu0 0.0
    %2830 = vmatprep.subr.mxu0 0.0
    %2831 = vmatpush1.xpose.msra.mxu0 0.0
    %2832 = vmatprep.subr.mxu0 0.0
    %2833 = vmatpush1.xpose.msra.mxu0 0.0
    %2834 = vmatprep.subr.mxu0 0.0
    %2835 = vmatpush1.xpose.msra.mxu0 0.0
    %2836 = vmatprep.subr.mxu0 0.0
    %2837 = vmatpush1.xpose.msra.mxu0 %v2386
    %2838 = vmatprep.subr.mxu0 0.0
    %2839 = vmatpush1.xpose.msra.mxu0 %v2383
    %2840 = vmatprep.subr.mxu0 0.0
    %2841 = vmatpush2.xpose.msra.mxu0 0.0
    %2842 = vmatprep.subr.mxu0 0.0
    %2843 = vmatpush2.xpose.msra.mxu0 0.0
    %2844 = vmatprep.subr.mxu0 0.0
    %2845 = vmatpush2.xpose.msra.mxu0 0.0
    %2846 = vmatprep.subr.mxu0 0.0
    %2847 = vmatpush2.xpose.msra.mxu0 0.0
    %2848 = vmatprep.subr.mxu0 0.0
    %2849 = vmatpush2.xpose.msra.mxu0 0.0
    %2850 = vmatprep.subr.mxu0 0.0
    %2851 = vmatpush2.xpose.msra.mxu0 0.0
    %2852 = vmatprep.subr.mxu0 0.0
    %2853 = vmatpush2.xpose.msra.mxu0 0.0
    %2854 = vmatprep.subr.mxu0 0.0
    %2855 = vmatpush2.xpose.msra.mxu0 0.0
    %2856 = vmatprep.subr.mxu0 0.0
    %2857 = vmatpush2.xpose.msra.mxu0 0.0
    %2858 = vmatprep.subr.mxu0 0.0
    %2859 = vmatpush2.xpose.msra.mxu0 0.0
    %2860 = vmatprep.subr.mxu0 0.0
    %2861 = vmatpush2.xpose.msra.mxu0 0.0
    %2862 = vmatprep.subr.mxu0 0.0
    %2863 = vmatpush2.xpose.msra.mxu0 0.0
    %2864 = vmatprep.subr.mxu0 0.0
    %2865 = vmatpush2.xpose.msra.mxu0 0.0
    %2866 = vmatprep.subr.mxu0 0.0
    %2867 = vmatpush2.xpose.msra.mxu0 0.0
    %2868 = vmatprep.subr.mxu0 0.0
    %2869 = vmatpush2.xpose.msra.mxu0 0.0
    %2870 = vmatprep.subr.mxu0 0.0
    %2871 = vmatpush2.xpose.msra.mxu0 0.0
    %2872 = vmatprep.mubr.f32.mxu0 0.0
    %2873 = vmatmul.mubr.f32.gmra.mxu0 %v2380
    %v2874 = vpop.f32.mrf.mxu0
    %v2875 = vadd.f32 %v2805, %v2874
    %v2876 = vpop.f32.mrf.mxu0
    %2877 = vdwg.mxu0
    %v2878 = vadd.f32 %v1249, %v2875
    %v2879 = vld [vmem:[%s148] sm:$0xfc]
    %v2880 = vld [vmem:[%s148 + $0x8] sm:$0xfc]
    %v2881 = vld [vmem:[%s148 + $0x10] sm:$0xfc]
    %v2882 = vld [vmem:[%s148 + $0x18] sm:$0xfc]
    %v2883 = vld [vmem:[%s148 + $0x20] sm:$0xfc]
    %v2884 = vld [vmem:[%s148 + $0x28] sm:$0xfc]
    %v2885 = vld [vmem:[%s148 + $0x30] sm:$0xfc]
    %v2886 = vld [vmem:[%s148 + $0x38] sm:$0xfc]
    %v2887 = vld [vmem:[%s148 + $0x40] sm:$0xfc]
    %v2888 = vld [vmem:[%s148 + $0x48] sm:$0xfc]
    %v2889 = vld [vmem:[%s148 + $0x50] sm:$0xfc]
    %v2890 = vld [vmem:[%s148 + $0x58] sm:$0xfc]
    %v2891 = vld [vmem:[%s148 + $0x60] sm:$0xfc]
    %v2905 = vrot.slane %v2879, 2
    %v2906 = vrot.slane %v2880, 2
    %v2907 = vrot.slane %v2881, 2
    %v2908 = vrot.slane %v2882, 2
    %v2909 = vrot.slane %v2883, 2
    %v2910 = vrot.slane %v2884, 2
    %v2911 = vrot.slane %v2885, 2
    %v2912 = vrot.slane %v2886, 2
    %v2913 = vrot.slane %v2887, 2
    %v2914 = vrot.slane %v2888, 2
    %v2915 = vrot.slane %v2889, 2
    %v2916 = vrot.slane %v2890, 2
    %v2917 = vrot.slane %v2891, 2
    %v2930 = vsel %vm254, %v2917, 0
    %2932 = vmatprep.subr.mxu0 0.0
    %2933 = vmatpush1.xpose.msra.mxu0 0.0
    %2934 = vmatprep.subr.mxu0 0.0
    %2935 = vmatpush1.xpose.msra.mxu0 0.0
    %2936 = vmatprep.subr.mxu0 0.0
    %2937 = vmatpush1.xpose.msra.mxu0 0.0
    %2938 = vmatprep.subr.mxu0 0.0
    %2939 = vmatpush1.xpose.msra.mxu0 0.0
    %2940 = vmatprep.subr.mxu0 0.0
    %2941 = vmatpush1.xpose.msra.mxu0 0.0
    %2942 = vmatprep.subr.mxu0 0.0
    %2943 = vmatpush1.xpose.msra.mxu0 0.0
    %2944 = vmatprep.subr.mxu0 0.0
    %2945 = vmatpush1.xpose.msra.mxu0 0.0
    %2946 = vmatprep.subr.mxu0 0.0
    %2947 = vmatpush1.xpose.msra.mxu0 0.0
    %2948 = vmatprep.subr.mxu0 0.0
    %2949 = vmatpush1.xpose.msra.mxu0 0.0
    %2950 = vmatprep.subr.mxu0 0.0
    %2951 = vmatpush1.xpose.msra.mxu0 0.0
    %2952 = vmatprep.subr.mxu0 0.0
    %2953 = vmatpush1.xpose.msra.mxu0 0.0
    %2954 = vmatprep.subr.mxu0 0.0
    %2955 = vmatpush1.xpose.msra.mxu0 0.0
    %2956 = vmatprep.subr.mxu0 0.0
    %2957 = vmatpush1.xpose.msra.mxu0 0.0
    %2958 = vmatprep.subr.mxu0 0.0
    %2959 = vmatpush1.xpose.msra.mxu0 0.0
    %2960 = vmatprep.subr.mxu0 %v2317
    %2961 = vmatpush1.xpose.msra.mxu0 %v2316
    %2962 = vmatprep.subr.mxu0 %v2304
    %2963 = vmatpush1.xpose.msra.mxu0 %v2303
    %2964 = vmatprep.subr.mxu0 0.0
    %2965 = vmatpush2.xpose.msra.mxu0 0.0
    %2966 = vmatprep.subr.mxu0 0.0
    %2967 = vmatpush2.xpose.msra.mxu0 0.0
    %2968 = vmatprep.subr.mxu0 0.0
    %2969 = vmatpush2.xpose.msra.mxu0 0.0
    %2970 = vmatprep.subr.mxu0 0.0
    %2971 = vmatpush2.xpose.msra.mxu0 0.0
    %2972 = vmatprep.subr.mxu0 0.0
    %2973 = vmatpush2.xpose.msra.mxu0 0.0
    %2974 = vmatprep.subr.mxu0 0.0
    %2975 = vmatpush2.xpose.msra.mxu0 0.0
    %2976 = vmatprep.subr.mxu0 0.0
    %2977 = vmatpush2.xpose.msra.mxu0 0.0
    %2978 = vmatprep.subr.mxu0 0.0
    %2979 = vmatpush2.xpose.msra.mxu0 0.0
    %2980 = vmatprep.subr.mxu0 0.0
    %2981 = vmatpush2.xpose.msra.mxu0 0.0
    %2982 = vmatprep.subr.mxu0 0.0
    %2983 = vmatpush2.xpose.msra.mxu0 0.0
    %2984 = vmatprep.subr.mxu0 0.0
    %2985 = vmatpush2.xpose.msra.mxu0 0.0
    %2986 = vmatprep.subr.mxu0 0.0
    %2987 = vmatpush2.xpose.msra.mxu0 0.0
    %2988 = vmatprep.subr.mxu0 0.0
    %2989 = vmatpush2.xpose.msra.mxu0 0.0
    %2990 = vmatprep.subr.mxu0 0.0
    %2991 = vmatpush2.xpose.msra.mxu0 0.0
    %2992 = vmatprep.subr.mxu0 0.0
    %2993 = vmatpush2.xpose.msra.mxu0 0.0
    %2994 = vmatprep.subr.mxu0 0.0
    %2995 = vmatpush2.xpose.msra.mxu0 0.0
    %2996 = vmatprep.mubr.f32.mxu0 %v2906
    %2997 = vmatmul.mubr.f32.gmra.mxu0 %v2905
    %v2998 = vpop.f32.mrf.mxu0
    %v2999 = vadd.f32 0.0, %v2998
    %v3000 = vpop.f32.mrf.mxu0
    %3001 = vdwg.mxu0
    %3002 = vmatprep.subr.mxu0 0.0
    %3003 = vmatpush1.xpose.msra.mxu0 0.0
    %3004 = vmatprep.subr.mxu0 0.0
    %3005 = vmatpush1.xpose.msra.mxu0 0.0
    %3006 = vmatprep.subr.mxu0 0.0
    %3007 = vmatpush1.xpose.msra.mxu0 0.0
    %3008 = vmatprep.subr.mxu0 0.0
    %3009 = vmatpush1.xpose.msra.mxu0 0.0
    %3010 = vmatprep.subr.mxu0 0.0
    %3011 = vmatpush1.xpose.msra.mxu0 0.0
    %3012 = vmatprep.subr.mxu0 0.0
    %3013 = vmatpush1.xpose.msra.mxu0 0.0
    %3014 = vmatprep.subr.mxu0 0.0
    %3015 = vmatpush1.xpose.msra.mxu0 0.0
    %3016 = vmatprep.subr.mxu0 0.0
    %3017 = vmatpush1.xpose.msra.mxu0 0.0
    %3018 = vmatprep.subr.mxu0 0.0
    %3019 = vmatpush1.xpose.msra.mxu0 0.0
    %3020 = vmatprep.subr.mxu0 0.0
    %3021 = vmatpush1.xpose.msra.mxu0 0.0
    %3022 = vmatprep.subr.mxu0 0.0
    %3023 = vmatpush1.xpose.msra.mxu0 0.0
    %3024 = vmatprep.subr.mxu0 0.0
    %3025 = vmatpush1.xpose.msra.mxu0 0.0
    %3026 = vmatprep.subr.mxu0 0.0
    %3027 = vmatpush1.xpose.msra.mxu0 0.0
    %3028 = vmatprep.subr.mxu0 0.0
    %3029 = vmatpush1.xpose.msra.mxu0 0.0
    %3030 = vmatprep.subr.mxu0 %v2319
    %3031 = vmatpush1.xpose.msra.mxu0 %v2318
    %3032 = vmatprep.subr.mxu0 %v2306
    %3033 = vmatpush1.xpose.msra.mxu0 %v2305
    %3034 = vmatprep.subr.mxu0 0.0
    %3035 = vmatpush2.xpose.msra.mxu0 0.0
    %3036 = vmatprep.subr.mxu0 0.0
    %3037 = vmatpush2.xpose.msra.mxu0 0.0
    %3038 = vmatprep.subr.mxu0 0.0
    %3039 = vmatpush2.xpose.msra.mxu0 0.0
    %3040 = vmatprep.subr.mxu0 0.0
    %3041 = vmatpush2.xpose.msra.mxu0 0.0
    %3042 = vmatprep.subr.mxu0 0.0
    %3043 = vmatpush2.xpose.msra.mxu0 0.0
    %3044 = vmatprep.subr.mxu0 0.0
    %3045 = vmatpush2.xpose.msra.mxu0 0.0
    %3046 = vmatprep.subr.mxu0 0.0
    %3047 = vmatpush2.xpose.msra.mxu0 0.0
    %3048 = vmatprep.subr.mxu0 0.0
    %3049 = vmatpush2.xpose.msra.mxu0 0.0
    %3050 = vmatprep.subr.mxu0 0.0
    %3051 = vmatpush2.xpose.msra.mxu0 0.0
    %3052 = vmatprep.subr.mxu0 0.0
    %3053 = vmatpush2.xpose.msra.mxu0 0.0
    %3054 = vmatprep.subr.mxu0 0.0
    %3055 = vmatpush2.xpose.msra.mxu0 0.0
    %3056 = vmatprep.subr.mxu0 0.0
    %3057 = vmatpush2.xpose.msra.mxu0 0.0
    %3058 = vmatprep.subr.mxu0 0.0
    %3059 = vmatpush2.xpose.msra.mxu0 0.0
    %3060 = vmatprep.subr.mxu0 0.0
    %3061 = vmatpush2.xpose.msra.mxu0 0.0
    %3062 = vmatprep.subr.mxu0 0.0
    %3063 = vmatpush2.xpose.msra.mxu0 0.0
    %3064 = vmatprep.subr.mxu0 0.0
    %3065 = vmatpush2.xpose.msra.mxu0 0.0
    %3066 = vmatprep.mubr.f32.mxu0 %v2908
    %3067 = vmatmul.mubr.f32.gmra.mxu0 %v2907
    %v3068 = vpop.f32.mrf.mxu0
    %v3069 = vadd.f32 %v2999, %v3068
    %v3070 = vpop.f32.mrf.mxu0
    %3071 = vdwg.mxu0
    %3072 = vmatprep.subr.mxu0 0.0
    %3073 = vmatpush1.xpose.msra.mxu0 0.0
    %3074 = vmatprep.subr.mxu0 0.0
    %3075 = vmatpush1.xpose.msra.mxu0 0.0
    %3076 = vmatprep.subr.mxu0 0.0
    %3077 = vmatpush1.xpose.msra.mxu0 0.0
    %3078 = vmatprep.subr.mxu0 0.0
    %3079 = vmatpush1.xpose.msra.mxu0 0.0
    %3080 = vmatprep.subr.mxu0 0.0
    %3081 = vmatpush1.xpose.msra.mxu0 0.0
    %3082 = vmatprep.subr.mxu0 0.0
    %3083 = vmatpush1.xpose.msra.mxu0 0.0
    %3084 = vmatprep.subr.mxu0 0.0
    %3085 = vmatpush1.xpose.msra.mxu0 0.0
    %3086 = vmatprep.subr.mxu0 0.0
    %3087 = vmatpush1.xpose.msra.mxu0 0.0
    %3088 = vmatprep.subr.mxu0 0.0
    %3089 = vmatpush1.xpose.msra.mxu0 0.0
    %3090 = vmatprep.subr.mxu0 0.0
    %3091 = vmatpush1.xpose.msra.mxu0 0.0
    %3092 = vmatprep.subr.mxu0 0.0
    %3093 = vmatpush1.xpose.msra.mxu0 0.0
    %3094 = vmatprep.subr.mxu0 0.0
    %3095 = vmatpush1.xpose.msra.mxu0 0.0
    %3096 = vmatprep.subr.mxu0 0.0
    %3097 = vmatpush1.xpose.msra.mxu0 0.0
    %3098 = vmatprep.subr.mxu0 0.0
    %3099 = vmatpush1.xpose.msra.mxu0 0.0
    %3100 = vmatprep.subr.mxu0 %v2321
    %3101 = vmatpush1.xpose.msra.mxu0 %v2320
    %3102 = vmatprep.subr.mxu0 %v2308
    %3103 = vmatpush1.xpose.msra.mxu0 %v2307
    %3104 = vmatprep.subr.mxu0 0.0
    %3105 = vmatpush2.xpose.msra.mxu0 0.0
    %3106 = vmatprep.subr.mxu0 0.0
    %3107 = vmatpush2.xpose.msra.mxu0 0.0
    %3108 = vmatprep.subr.mxu0 0.0
    %3109 = vmatpush2.xpose.msra.mxu0 0.0
    %3110 = vmatprep.subr.mxu0 0.0
    %3111 = vmatpush2.xpose.msra.mxu0 0.0
    %3112 = vmatprep.subr.mxu0 0.0
    %3113 = vmatpush2.xpose.msra.mxu0 0.0
    %3114 = vmatprep.subr.mxu0 0.0
    %3115 = vmatpush2.xpose.msra.mxu0 0.0
    %3116 = vmatprep.subr.mxu0 0.0
    %3117 = vmatpush2.xpose.msra.mxu0 0.0
    %3118 = vmatprep.subr.mxu0 0.0
    %3119 = vmatpush2.xpose.msra.mxu0 0.0
    %3120 = vmatprep.subr.mxu0 0.0
    %3121 = vmatpush2.xpose.msra.mxu0 0.0
    %3122 = vmatprep.subr.mxu0 0.0
    %3123 = vmatpush2.xpose.msra.mxu0 0.0
    %3124 = vmatprep.subr.mxu0 0.0
    %3125 = vmatpush2.xpose.msra.mxu0 0.0
    %3126 = vmatprep.subr.mxu0 0.0
    %3127 = vmatpush2.xpose.msra.mxu0 0.0
    %3128 = vmatprep.subr.mxu0 0.0
    %3129 = vmatpush2.xpose.msra.mxu0 0.0
    %3130 = vmatprep.subr.mxu0 0.0
    %3131 = vmatpush2.xpose.msra.mxu0 0.0
    %3132 = vmatprep.subr.mxu0 0.0
    %3133 = vmatpush2.xpose.msra.mxu0 0.0
    %3134 = vmatprep.subr.mxu0 0.0
    %3135 = vmatpush2.xpose.msra.mxu0 0.0
    %3136 = vmatprep.mubr.f32.mxu0 %v2910
    %3137 = vmatmul.mubr.f32.gmra.mxu0 %v2909
    %v3138 = vpop.f32.mrf.mxu0
    %v3139 = vadd.f32 %v3069, %v3138
    %v3140 = vpop.f32.mrf.mxu0
    %3141 = vdwg.mxu0
    %3142 = vmatprep.subr.mxu0 0.0
    %3143 = vmatpush1.xpose.msra.mxu0 0.0
    %3144 = vmatprep.subr.mxu0 0.0
    %3145 = vmatpush1.xpose.msra.mxu0 0.0
    %3146 = vmatprep.subr.mxu0 0.0
    %3147 = vmatpush1.xpose.msra.mxu0 0.0
    %3148 = vmatprep.subr.mxu0 0.0
    %3149 = vmatpush1.xpose.msra.mxu0 0.0
    %3150 = vmatprep.subr.mxu0 0.0
    %3151 = vmatpush1.xpose.msra.mxu0 0.0
    %3152 = vmatprep.subr.mxu0 0.0
    %3153 = vmatpush1.xpose.msra.mxu0 0.0
    %3154 = vmatprep.subr.mxu0 0.0
    %3155 = vmatpush1.xpose.msra.mxu0 0.0
    %3156 = vmatprep.subr.mxu0 0.0
    %3157 = vmatpush1.xpose.msra.mxu0 0.0
    %3158 = vmatprep.subr.mxu0 0.0
    %3159 = vmatpush1.xpose.msra.mxu0 0.0
    %3160 = vmatprep.subr.mxu0 0.0
    %3161 = vmatpush1.xpose.msra.mxu0 0.0
    %3162 = vmatprep.subr.mxu0 0.0
    %3163 = vmatpush1.xpose.msra.mxu0 0.0
    %3164 = vmatprep.subr.mxu0 0.0
    %3165 = vmatpush1.xpose.msra.mxu0 0.0
    %3166 = vmatprep.subr.mxu0 0.0
    %3167 = vmatpush1.xpose.msra.mxu0 0.0
    %3168 = vmatprep.subr.mxu0 0.0
    %3169 = vmatpush1.xpose.msra.mxu0 0.0
    %3170 = vmatprep.subr.mxu0 %v2323
    %3171 = vmatpush1.xpose.msra.mxu0 %v2322
    %3172 = vmatprep.subr.mxu0 %v2310
    %3173 = vmatpush1.xpose.msra.mxu0 %v2309
    %3174 = vmatprep.subr.mxu0 0.0
    %3175 = vmatpush2.xpose.msra.mxu0 0.0
    %3176 = vmatprep.subr.mxu0 0.0
    %3177 = vmatpush2.xpose.msra.mxu0 0.0
    %3178 = vmatprep.subr.mxu0 0.0
    %3179 = vmatpush2.xpose.msra.mxu0 0.0
    %3180 = vmatprep.subr.mxu0 0.0
    %3181 = vmatpush2.xpose.msra.mxu0 0.0
    %3182 = vmatprep.subr.mxu0 0.0
    %3183 = vmatpush2.xpose.msra.mxu0 0.0
    %3184 = vmatprep.subr.mxu0 0.0
    %3185 = vmatpush2.xpose.msra.mxu0 0.0
    %3186 = vmatprep.subr.mxu0 0.0
    %3187 = vmatpush2.xpose.msra.mxu0 0.0
    %3188 = vmatprep.subr.mxu0 0.0
    %3189 = vmatpush2.xpose.msra.mxu0 0.0
    %3190 = vmatprep.subr.mxu0 0.0
    %3191 = vmatpush2.xpose.msra.mxu0 0.0
    %3192 = vmatprep.subr.mxu0 0.0
    %3193 = vmatpush2.xpose.msra.mxu0 0.0
    %3194 = vmatprep.subr.mxu0 0.0
    %3195 = vmatpush2.xpose.msra.mxu0 0.0
    %3196 = vmatprep.subr.mxu0 0.0
    %3197 = vmatpush2.xpose.msra.mxu0 0.0
    %3198 = vmatprep.subr.mxu0 0.0
    %3199 = vmatpush2.xpose.msra.mxu0 0.0
    %3200 = vmatprep.subr.mxu0 0.0
    %3201 = vmatpush2.xpose.msra.mxu0 0.0
    %3202 = vmatprep.subr.mxu0 0.0
    %3203 = vmatpush2.xpose.msra.mxu0 0.0
    %3204 = vmatprep.subr.mxu0 0.0
    %3205 = vmatpush2.xpose.msra.mxu0 0.0
    %3206 = vmatprep.mubr.f32.mxu0 %v2912
    %3207 = vmatmul.mubr.f32.gmra.mxu0 %v2911
    %v3208 = vpop.f32.mrf.mxu0
    %v3209 = vadd.f32 %v3139, %v3208
    %v3210 = vpop.f32.mrf.mxu0
    %3211 = vdwg.mxu0
    %3212 = vmatprep.subr.mxu0 0.0
    %3213 = vmatpush1.xpose.msra.mxu0 0.0
    %3214 = vmatprep.subr.mxu0 0.0
    %3215 = vmatpush1.xpose.msra.mxu0 0.0
    %3216 = vmatprep.subr.mxu0 0.0
    %3217 = vmatpush1.xpose.msra.mxu0 0.0
    %3218 = vmatprep.subr.mxu0 0.0
    %3219 = vmatpush1.xpose.msra.mxu0 0.0
    %3220 = vmatprep.subr.mxu0 0.0
    %3221 = vmatpush1.xpose.msra.mxu0 0.0
    %3222 = vmatprep.subr.mxu0 0.0
    %3223 = vmatpush1.xpose.msra.mxu0 0.0
    %3224 = vmatprep.subr.mxu0 0.0
    %3225 = vmatpush1.xpose.msra.mxu0 0.0
    %3226 = vmatprep.subr.mxu0 0.0
    %3227 = vmatpush1.xpose.msra.mxu0 0.0
    %3228 = vmatprep.subr.mxu0 0.0
    %3229 = vmatpush1.xpose.msra.mxu0 0.0
    %3230 = vmatprep.subr.mxu0 0.0
    %3231 = vmatpush1.xpose.msra.mxu0 0.0
    %3232 = vmatprep.subr.mxu0 0.0
    %3233 = vmatpush1.xpose.msra.mxu0 0.0
    %3234 = vmatprep.subr.mxu0 0.0
    %3235 = vmatpush1.xpose.msra.mxu0 0.0
    %3236 = vmatprep.subr.mxu0 0.0
    %3237 = vmatpush1.xpose.msra.mxu0 0.0
    %3238 = vmatprep.subr.mxu0 0.0
    %3239 = vmatpush1.xpose.msra.mxu0 0.0
    %3240 = vmatprep.subr.mxu0 %v2325
    %3241 = vmatpush1.xpose.msra.mxu0 %v2324
    %3242 = vmatprep.subr.mxu0 %v2312
    %3243 = vmatpush1.xpose.msra.mxu0 %v2311
    %3244 = vmatprep.subr.mxu0 0.0
    %3245 = vmatpush2.xpose.msra.mxu0 0.0
    %3246 = vmatprep.subr.mxu0 0.0
    %3247 = vmatpush2.xpose.msra.mxu0 0.0
    %3248 = vmatprep.subr.mxu0 0.0
    %3249 = vmatpush2.xpose.msra.mxu0 0.0
    %3250 = vmatprep.subr.mxu0 0.0
    %3251 = vmatpush2.xpose.msra.mxu0 0.0
    %3252 = vmatprep.subr.mxu0 0.0
    %3253 = vmatpush2.xpose.msra.mxu0 0.0
    %3254 = vmatprep.subr.mxu0 0.0
    %3255 = vmatpush2.xpose.msra.mxu0 0.0
    %3256 = vmatprep.subr.mxu0 0.0
    %3257 = vmatpush2.xpose.msra.mxu0 0.0
    %3258 = vmatprep.subr.mxu0 0.0
    %3259 = vmatpush2.xpose.msra.mxu0 0.0
    %3260 = vmatprep.subr.mxu0 0.0
    %3261 = vmatpush2.xpose.msra.mxu0 0.0
    %3262 = vmatprep.subr.mxu0 0.0
    %3263 = vmatpush2.xpose.msra.mxu0 0.0
    %3264 = vmatprep.subr.mxu0 0.0
    %3265 = vmatpush2.xpose.msra.mxu0 0.0
    %3266 = vmatprep.subr.mxu0 0.0
    %3267 = vmatpush2.xpose.msra.mxu0 0.0
    %3268 = vmatprep.subr.mxu0 0.0
    %3269 = vmatpush2.xpose.msra.mxu0 0.0
    %3270 = vmatprep.subr.mxu0 0.0
    %3271 = vmatpush2.xpose.msra.mxu0 0.0
    %3272 = vmatprep.subr.mxu0 0.0
    %3273 = vmatpush2.xpose.msra.mxu0 0.0
    %3274 = vmatprep.subr.mxu0 0.0
    %3275 = vmatpush2.xpose.msra.mxu0 0.0
    %3276 = vmatprep.mubr.f32.mxu0 %v2914
    %3277 = vmatmul.mubr.f32.gmra.mxu0 %v2913
    %v3278 = vpop.f32.mrf.mxu0
    %v3279 = vadd.f32 %v3209, %v3278
    %v3280 = vpop.f32.mrf.mxu0
    %3281 = vdwg.mxu0
    %3282 = vmatprep.subr.mxu0 0.0
    %3283 = vmatpush1.xpose.msra.mxu0 0.0
    %3284 = vmatprep.subr.mxu0 0.0
    %3285 = vmatpush1.xpose.msra.mxu0 0.0
    %3286 = vmatprep.subr.mxu0 0.0
    %3287 = vmatpush1.xpose.msra.mxu0 0.0
    %3288 = vmatprep.subr.mxu0 0.0
    %3289 = vmatpush1.xpose.msra.mxu0 0.0
    %3290 = vmatprep.subr.mxu0 0.0
    %3291 = vmatpush1.xpose.msra.mxu0 0.0
    %3292 = vmatprep.subr.mxu0 0.0
    %3293 = vmatpush1.xpose.msra.mxu0 0.0
    %3294 = vmatprep.subr.mxu0 0.0
    %3295 = vmatpush1.xpose.msra.mxu0 0.0
    %3296 = vmatprep.subr.mxu0 0.0
    %3297 = vmatpush1.xpose.msra.mxu0 0.0
    %3298 = vmatprep.subr.mxu0 0.0
    %3299 = vmatpush1.xpose.msra.mxu0 0.0
    %3300 = vmatprep.subr.mxu0 0.0
    %3301 = vmatpush1.xpose.msra.mxu0 0.0
    %3302 = vmatprep.subr.mxu0 0.0
    %3303 = vmatpush1.xpose.msra.mxu0 0.0
    %3304 = vmatprep.subr.mxu0 0.0
    %3305 = vmatpush1.xpose.msra.mxu0 0.0
    %3306 = vmatprep.subr.mxu0 0.0
    %3307 = vmatpush1.xpose.msra.mxu0 0.0
    %3308 = vmatprep.subr.mxu0 0.0
    %3309 = vmatpush1.xpose.msra.mxu0 0.0
    %3310 = vmatprep.subr.mxu0 %v2327
    %3311 = vmatpush1.xpose.msra.mxu0 %v2326
    %3312 = vmatprep.subr.mxu0 %v2314
    %3313 = vmatpush1.xpose.msra.mxu0 %v2313
    %3314 = vmatprep.subr.mxu0 0.0
    %3315 = vmatpush2.xpose.msra.mxu0 0.0
    %3316 = vmatprep.subr.mxu0 0.0
    %3317 = vmatpush2.xpose.msra.mxu0 0.0
    %3318 = vmatprep.subr.mxu0 0.0
    %3319 = vmatpush2.xpose.msra.mxu0 0.0
    %3320 = vmatprep.subr.mxu0 0.0
    %3321 = vmatpush2.xpose.msra.mxu0 0.0
    %3322 = vmatprep.subr.mxu0 0.0
    %3323 = vmatpush2.xpose.msra.mxu0 0.0
    %3324 = vmatprep.subr.mxu0 0.0
    %3325 = vmatpush2.xpose.msra.mxu0 0.0
    %3326 = vmatprep.subr.mxu0 0.0
    %3327 = vmatpush2.xpose.msra.mxu0 0.0
    %3328 = vmatprep.subr.mxu0 0.0
    %3329 = vmatpush2.xpose.msra.mxu0 0.0
    %3330 = vmatprep.subr.mxu0 0.0
    %3331 = vmatpush2.xpose.msra.mxu0 0.0
    %3332 = vmatprep.subr.mxu0 0.0
    %3333 = vmatpush2.xpose.msra.mxu0 0.0
    %3334 = vmatprep.subr.mxu0 0.0
    %3335 = vmatpush2.xpose.msra.mxu0 0.0
    %3336 = vmatprep.subr.mxu0 0.0
    %3337 = vmatpush2.xpose.msra.mxu0 0.0
    %3338 = vmatprep.subr.mxu0 0.0
    %3339 = vmatpush2.xpose.msra.mxu0 0.0
    %3340 = vmatprep.subr.mxu0 0.0
    %3341 = vmatpush2.xpose.msra.mxu0 0.0
    %3342 = vmatprep.subr.mxu0 0.0
    %3343 = vmatpush2.xpose.msra.mxu0 0.0
    %3344 = vmatprep.subr.mxu0 0.0
    %3345 = vmatpush2.xpose.msra.mxu0 0.0
    %3346 = vmatprep.mubr.f32.mxu0 %v2916
    %3347 = vmatmul.mubr.f32.gmra.mxu0 %v2915
    %v3348 = vpop.f32.mrf.mxu0
    %v3349 = vadd.f32 %v3279, %v3348
    %v3350 = vpop.f32.mrf.mxu0
    %3351 = vdwg.mxu0
    %3352 = vmatprep.subr.mxu0 0.0
    %3353 = vmatpush1.xpose.msra.mxu0 0.0
    %3354 = vmatprep.subr.mxu0 0.0
    %3355 = vmatpush1.xpose.msra.mxu0 0.0
    %3356 = vmatprep.subr.mxu0 0.0
    %3357 = vmatpush1.xpose.msra.mxu0 0.0
    %3358 = vmatprep.subr.mxu0 0.0
    %3359 = vmatpush1.xpose.msra.mxu0 0.0
    %3360 = vmatprep.subr.mxu0 0.0
    %3361 = vmatpush1.xpose.msra.mxu0 0.0
    %3362 = vmatprep.subr.mxu0 0.0
    %3363 = vmatpush1.xpose.msra.mxu0 0.0
    %3364 = vmatprep.subr.mxu0 0.0
    %3365 = vmatpush1.xpose.msra.mxu0 0.0
    %3366 = vmatprep.subr.mxu0 0.0
    %3367 = vmatpush1.xpose.msra.mxu0 0.0
    %3368 = vmatprep.subr.mxu0 0.0
    %3369 = vmatpush1.xpose.msra.mxu0 0.0
    %3370 = vmatprep.subr.mxu0 0.0
    %3371 = vmatpush1.xpose.msra.mxu0 0.0
    %3372 = vmatprep.subr.mxu0 0.0
    %3373 = vmatpush1.xpose.msra.mxu0 0.0
    %3374 = vmatprep.subr.mxu0 0.0
    %3375 = vmatpush1.xpose.msra.mxu0 0.0
    %3376 = vmatprep.subr.mxu0 0.0
    %3377 = vmatpush1.xpose.msra.mxu0 0.0
    %3378 = vmatprep.subr.mxu0 0.0
    %3379 = vmatpush1.xpose.msra.mxu0 0.0
    %3380 = vmatprep.subr.mxu0 0.0
    %3381 = vmatpush1.xpose.msra.mxu0 %v2386
    %3382 = vmatprep.subr.mxu0 0.0
    %3383 = vmatpush1.xpose.msra.mxu0 %v2383
    %3384 = vmatprep.subr.mxu0 0.0
    %3385 = vmatpush2.xpose.msra.mxu0 0.0
    %3386 = vmatprep.subr.mxu0 0.0
    %3387 = vmatpush2.xpose.msra.mxu0 0.0
    %3388 = vmatprep.subr.mxu0 0.0
    %3389 = vmatpush2.xpose.msra.mxu0 0.0
    %3390 = vmatprep.subr.mxu0 0.0
    %3391 = vmatpush2.xpose.msra.mxu0 0.0
    %3392 = vmatprep.subr.mxu0 0.0
    %3393 = vmatpush2.xpose.msra.mxu0 0.0
    %3394 = vmatprep.subr.mxu0 0.0
    %3395 = vmatpush2.xpose.msra.mxu0 0.0
    %3396 = vmatprep.subr.mxu0 0.0
    %3397 = vmatpush2.xpose.msra.mxu0 0.0
    %3398 = vmatprep.subr.mxu0 0.0
    %3399 = vmatpush2.xpose.msra.mxu0 0.0
    %3400 = vmatprep.subr.mxu0 0.0
    %3401 = vmatpush2.xpose.msra.mxu0 0.0
    %3402 = vmatprep.subr.mxu0 0.0
    %3403 = vmatpush2.xpose.msra.mxu0 0.0
    %3404 = vmatprep.subr.mxu0 0.0
    %3405 = vmatpush2.xpose.msra.mxu0 0.0
    %3406 = vmatprep.subr.mxu0 0.0
    %3407 = vmatpush2.xpose.msra.mxu0 0.0
    %3408 = vmatprep.subr.mxu0 0.0
    %3409 = vmatpush2.xpose.msra.mxu0 0.0
    %3410 = vmatprep.subr.mxu0 0.0
    %3411 = vmatpush2.xpose.msra.mxu0 0.0
    %3412 = vmatprep.subr.mxu0 0.0
    %3413 = vmatpush2.xpose.msra.mxu0 0.0
    %3414 = vmatprep.subr.mxu0 0.0
    %3415 = vmatpush2.xpose.msra.mxu0 0.0
    %3416 = vmatprep.mubr.f32.mxu0 0.0
    %3417 = vmatmul.mubr.f32.gmra.mxu0 %v2930
    %v3418 = vpop.f32.mrf.mxu0
    %v3419 = vadd.f32 %v3349, %v3418
    %v3420 = vpop.f32.mrf.mxu0
    %3421 = vdwg.mxu0
    %v3422 = vadd.f32 %v2285, %v3419
    %v3424 = vlaneseq
    %v3425 = vshrl.u32 %v3424, 7
    %v3426 = vsub.s32 0, %v3425
    %v3427 = vrot.slane %v93, %v3426
    %v3429 = vadd.f32 %v2878, %v3427
    %v3430 = vmax.f32 %v3429, 0.0
    %vm3431 = vcmask 123904
    %v3432 = vsel %vm3431, %v3430, -inf
    %v3433 = vrot.slane %v3432, 4
    %v3434 = vmax.f32 %v3432, %v3433
    %v3435 = vrot.slane %v3434, 2
    %v3436 = vmax.f32 %v3434, %v3435
    %v3437 = vrot.slane %v3436, 1
    %v3438 = vmax.f32 %v3436, %v3437
    %v3439 = vld [vmem:[#allocation7] sm:$0xff]
    %v3440 = vld [vmem:[#allocation7 + $0x8] sm:$0xff]
    %vm3441 = vcmask 130048
    %v3443 = vsel %vm3441, %v3438, 0
    %3445 = vmatprep.subr.mxu0 0.0
    %3446 = vmatpush1.msra.mxu0 0.0
    %3447 = vmatprep.subr.mxu0 0.0
    %3448 = vmatpush1.msra.mxu0 0.0
    %3449 = vmatprep.subr.mxu0 0.0
    %3450 = vmatpush1.msra.mxu0 0.0
    %3451 = vmatprep.subr.mxu0 0.0
    %3452 = vmatpush1.msra.mxu0 0.0
    %3453 = vmatprep.subr.mxu0 0.0
    %3454 = vmatpush1.msra.mxu0 0.0
    %3455 = vmatprep.subr.mxu0 0.0
    %3456 = vmatpush1.msra.mxu0 0.0
    %3457 = vmatprep.subr.mxu0 0.0
    %3458 = vmatpush1.msra.mxu0 0.0
    %3459 = vmatprep.subr.mxu0 0.0
    %3460 = vmatpush1.msra.mxu0 0.0
    %3461 = vmatprep.subr.mxu0 0.0
    %3462 = vmatpush1.msra.mxu0 0.0
    %3463 = vmatprep.subr.mxu0 0.0
    %3464 = vmatpush1.msra.mxu0 0.0
    %3465 = vmatprep.subr.mxu0 0.0
    %3466 = vmatpush1.msra.mxu0 0.0
    %3467 = vmatprep.subr.mxu0 0.0
    %3468 = vmatpush1.msra.mxu0 0.0
    %3469 = vmatprep.subr.mxu0 0.0
    %3470 = vmatpush1.msra.mxu0 0.0
    %3471 = vmatprep.subr.mxu0 0.0
    %3472 = vmatpush1.msra.mxu0 0.0
    %3473 = vmatprep.subr.mxu0 0.0
    %3474 = vmatpush1.msra.mxu0 %v3440
    %3475 = vmatprep.subr.mxu0 0.0
    %3476 = vmatpush1.msra.mxu0 %v3439
    %3477 = vmatprep.subr.mxu0 0.0
    %3478 = vmatpush2.msra.mxu0 0.0
    %3479 = vmatprep.subr.mxu0 0.0
    %3480 = vmatpush2.msra.mxu0 0.0
    %3481 = vmatprep.subr.mxu0 0.0
    %3482 = vmatpush2.msra.mxu0 0.0
    %3483 = vmatprep.subr.mxu0 0.0
    %3484 = vmatpush2.msra.mxu0 0.0
    %3485 = vmatprep.subr.mxu0 0.0
    %3486 = vmatpush2.msra.mxu0 0.0
    %3487 = vmatprep.subr.mxu0 0.0
    %3488 = vmatpush2.msra.mxu0 0.0
    %3489 = vmatprep.subr.mxu0 0.0
    %3490 = vmatpush2.msra.mxu0 0.0
    %3491 = vmatprep.subr.mxu0 0.0
    %3492 = vmatpush2.msra.mxu0 0.0
    %3493 = vmatprep.subr.mxu0 0.0
    %3494 = vmatpush2.msra.mxu0 0.0
    %3495 = vmatprep.subr.mxu0 0.0
    %3496 = vmatpush2.msra.mxu0 0.0
    %3497 = vmatprep.subr.mxu0 0.0
    %3498 = vmatpush2.msra.mxu0 0.0
    %3499 = vmatprep.subr.mxu0 0.0
    %3500 = vmatpush2.msra.mxu0 0.0
    %3501 = vmatprep.subr.mxu0 0.0
    %3502 = vmatpush2.msra.mxu0 0.0
    %3503 = vmatprep.subr.mxu0 0.0
    %3504 = vmatpush2.msra.mxu0 0.0
    %3505 = vmatprep.subr.mxu0 0.0
    %3506 = vmatpush2.msra.mxu0 0.0
    %3507 = vmatprep.subr.mxu0 0.0
    %3508 = vmatpush2.msra.mxu0 0.0
    %3509 = vmatprep.mubr.f32.mxu0 0.0
    %3510 = vmatmul.mubr.f32.gmra.mxu0 %v3443
    %v3511 = vpop.f32.mrf.mxu0
    %v3512 = vadd.f32 0.0, %v3511
    %v3513 = vpop.f32.mrf.mxu0
    %3514 = vdwg.mxu0
    %v3515 = vadd.f32 %v94, %v3512
    %vm3516 = vcmask 125954
    %v3517 = vsel %vm3516, %v3430, -inf
    %v3518 = vrot.slane %v3517, 4
    %v3519 = vmax.f32 %v3517, %v3518
    %v3520 = vrot.slane %v3519, 2
    %v3521 = vmax.f32 %v3519, %v3520
    %v3522 = vrot.slane %v3521, 1
    %v3523 = vmax.f32 %v3521, %v3522
    %s3524 = scalar_lea.vmem [#allocation7], 16
    %v3525 = vld [vmem:[%s3524] sm:$0xff]
    %v3526 = vld [vmem:[%s3524 + $0x8] sm:$0xff]
    %v3528 = vsel %vm3441, %v3523, 0
    %3530 = vmatprep.subr.mxu0 0.0
    %3531 = vmatpush1.msra.mxu0 0.0
    %3532 = vmatprep.subr.mxu0 0.0
    %3533 = vmatpush1.msra.mxu0 0.0
    %3534 = vmatprep.subr.mxu0 0.0
    %3535 = vmatpush1.msra.mxu0 0.0
    %3536 = vmatprep.subr.mxu0 0.0
    %3537 = vmatpush1.msra.mxu0 0.0
    %3538 = vmatprep.subr.mxu0 0.0
    %3539 = vmatpush1.msra.mxu0 0.0
    %3540 = vmatprep.subr.mxu0 0.0
    %3541 = vmatpush1.msra.mxu0 0.0
    %3542 = vmatprep.subr.mxu0 0.0
    %3543 = vmatpush1.msra.mxu0 0.0
    %3544 = vmatprep.subr.mxu0 0.0
    %3545 = vmatpush1.msra.mxu0 0.0
    %3546 = vmatprep.subr.mxu0 0.0
    %3547 = vmatpush1.msra.mxu0 0.0
    %3548 = vmatprep.subr.mxu0 0.0
    %3549 = vmatpush1.msra.mxu0 0.0
    %3550 = vmatprep.subr.mxu0 0.0
    %3551 = vmatpush1.msra.mxu0 0.0
    %3552 = vmatprep.subr.mxu0 0.0
    %3553 = vmatpush1.msra.mxu0 0.0
    %3554 = vmatprep.subr.mxu0 0.0
    %3555 = vmatpush1.msra.mxu0 0.0
    %3556 = vmatprep.subr.mxu0 0.0
    %3557 = vmatpush1.msra.mxu0 0.0
    %3558 = vmatprep.subr.mxu0 0.0
    %3559 = vmatpush1.msra.mxu0 %v3526
    %3560 = vmatprep.subr.mxu0 0.0
    %3561 = vmatpush1.msra.mxu0 %v3525
    %3562 = vmatprep.subr.mxu0 0.0
    %3563 = vmatpush2.msra.mxu0 0.0
    %3564 = vmatprep.subr.mxu0 0.0
    %3565 = vmatpush2.msra.mxu0 0.0
    %3566 = vmatprep.subr.mxu0 0.0
    %3567 = vmatpush2.msra.mxu0 0.0
    %3568 = vmatprep.subr.mxu0 0.0
    %3569 = vmatpush2.msra.mxu0 0.0
    %3570 = vmatprep.subr.mxu0 0.0
    %3571 = vmatpush2.msra.mxu0 0.0
    %3572 = vmatprep.subr.mxu0 0.0
    %3573 = vmatpush2.msra.mxu0 0.0
    %3574 = vmatprep.subr.mxu0 0.0
    %3575 = vmatpush2.msra.mxu0 0.0
    %3576 = vmatprep.subr.mxu0 0.0
    %3577 = vmatpush2.msra.mxu0 0.0
    %3578 = vmatprep.subr.mxu0 0.0
    %3579 = vmatpush2.msra.mxu0 0.0
    %3580 = vmatprep.subr.mxu0 0.0
    %3581 = vmatpush2.msra.mxu0 0.0
    %3582 = vmatprep.subr.mxu0 0.0
    %3583 = vmatpush2.msra.mxu0 0.0
    %3584 = vmatprep.subr.mxu0 0.0
    %3585 = vmatpush2.msra.mxu0 0.0
    %3586 = vmatprep.subr.mxu0 0.0
    %3587 = vmatpush2.msra.mxu0 0.0
    %3588 = vmatprep.subr.mxu0 0.0
    %3589 = vmatpush2.msra.mxu0 0.0
    %3590 = vmatprep.subr.mxu0 0.0
    %3591 = vmatpush2.msra.mxu0 0.0
    %3592 = vmatprep.subr.mxu0 0.0
    %3593 = vmatpush2.msra.mxu0 0.0
    %3594 = vmatprep.mubr.f32.mxu0 0.0
    %3595 = vmatmul.mubr.f32.gmra.mxu0 %v3528
    %v3596 = vpop.f32.mrf.mxu0
    %v3597 = vadd.f32 0.0, %v3596
    %v3598 = vpop.f32.mrf.mxu0
    %3599 = vdwg.mxu0
    %v3600 = vadd.f32 %v3515, %v3597
    %vm3601 = vcmask 128004
    %v3602 = vsel %vm3601, %v3430, -inf
    %v3603 = vrot.slane %v3602, 4
    %v3604 = vmax.f32 %v3602, %v3603
    %v3605 = vrot.slane %v3604, 2
    %v3606 = vmax.f32 %v3604, %v3605
    %v3607 = vrot.slane %v3606, 1
    %v3608 = vmax.f32 %v3606, %v3607
    %s3609 = scalar_lea.vmem [#allocation7], 32
    %v3610 = vld [vmem:[%s3609] sm:$0xff]
    %v3611 = vld [vmem:[%s3609 + $0x8] sm:$0xff]
    %v3613 = vsel %vm3441, %v3608, 0
    %3615 = vmatprep.subr.mxu0 0.0
    %3616 = vmatpush1.msra.mxu0 0.0
    %3617 = vmatprep.subr.mxu0 0.0
    %3618 = vmatpush1.msra.mxu0 0.0
    %3619 = vmatprep.subr.mxu0 0.0
    %3620 = vmatpush1.msra.mxu0 0.0
    %3621 = vmatprep.subr.mxu0 0.0
    %3622 = vmatpush1.msra.mxu0 0.0
    %3623 = vmatprep.subr.mxu0 0.0
    %3624 = vmatpush1.msra.mxu0 0.0
    %3625 = vmatprep.subr.mxu0 0.0
    %3626 = vmatpush1.msra.mxu0 0.0
    %3627 = vmatprep.subr.mxu0 0.0
    %3628 = vmatpush1.msra.mxu0 0.0
    %3629 = vmatprep.subr.mxu0 0.0
    %3630 = vmatpush1.msra.mxu0 0.0
    %3631 = vmatprep.subr.mxu0 0.0
    %3632 = vmatpush1.msra.mxu0 0.0
    %3633 = vmatprep.subr.mxu0 0.0
    %3634 = vmatpush1.msra.mxu0 0.0
    %3635 = vmatprep.subr.mxu0 0.0
    %3636 = vmatpush1.msra.mxu0 0.0
    %3637 = vmatprep.subr.mxu0 0.0
    %3638 = vmatpush1.msra.mxu0 0.0
    %3639 = vmatprep.subr.mxu0 0.0
    %3640 = vmatpush1.msra.mxu0 0.0
    %3641 = vmatprep.subr.mxu0 0.0
    %3642 = vmatpush1.msra.mxu0 0.0
    %3643 = vmatprep.subr.mxu0 0.0
    %3644 = vmatpush1.msra.mxu0 %v3611
    %3645 = vmatprep.subr.mxu0 0.0
    %3646 = vmatpush1.msra.mxu0 %v3610
    %3647 = vmatprep.subr.mxu0 0.0
    %3648 = vmatpush2.msra.mxu0 0.0
    %3649 = vmatprep.subr.mxu0 0.0
    %3650 = vmatpush2.msra.mxu0 0.0
    %3651 = vmatprep.subr.mxu0 0.0
    %3652 = vmatpush2.msra.mxu0 0.0
    %3653 = vmatprep.subr.mxu0 0.0
    %3654 = vmatpush2.msra.mxu0 0.0
    %3655 = vmatprep.subr.mxu0 0.0
    %3656 = vmatpush2.msra.mxu0 0.0
    %3657 = vmatprep.subr.mxu0 0.0
    %3658 = vmatpush2.msra.mxu0 0.0
    %3659 = vmatprep.subr.mxu0 0.0
    %3660 = vmatpush2.msra.mxu0 0.0
    %3661 = vmatprep.subr.mxu0 0.0
    %3662 = vmatpush2.msra.mxu0 0.0
    %3663 = vmatprep.subr.mxu0 0.0
    %3664 = vmatpush2.msra.mxu0 0.0
    %3665 = vmatprep.subr.mxu0 0.0
    %3666 = vmatpush2.msra.mxu0 0.0
    %3667 = vmatprep.subr.mxu0 0.0
    %3668 = vmatpush2.msra.mxu0 0.0
    %3669 = vmatprep.subr.mxu0 0.0
    %3670 = vmatpush2.msra.mxu0 0.0
    %3671 = vmatprep.subr.mxu0 0.0
    %3672 = vmatpush2.msra.mxu0 0.0
    %3673 = vmatprep.subr.mxu0 0.0
    %3674 = vmatpush2.msra.mxu0 0.0
    %3675 = vmatprep.subr.mxu0 0.0
    %3676 = vmatpush2.msra.mxu0 0.0
    %3677 = vmatprep.subr.mxu0 0.0
    %3678 = vmatpush2.msra.mxu0 0.0
    %3679 = vmatprep.mubr.f32.mxu0 0.0
    %3680 = vmatmul.mubr.f32.gmra.mxu0 %v3613
    %v3681 = vpop.f32.mrf.mxu0
    %v3682 = vadd.f32 0.0, %v3681
    %v3683 = vpop.f32.mrf.mxu0
    %3684 = vdwg.mxu0
    %v3685 = vadd.f32 %v3600, %v3682
    %v3686 = vadd.f32 %v3422, %v3427
    %v3687 = vmax.f32 %v3686, 0.0
    %v3688 = vsel %vm3431, %v3687, -inf
    %v3689 = vrot.slane %v3688, 4
    %v3690 = vmax.f32 %v3688, %v3689
    %v3691 = vrot.slane %v3690, 2
    %v3692 = vmax.f32 %v3690, %v3691
    %v3693 = vrot.slane %v3692, 1
    %v3694 = vmax.f32 %v3692, %v3693
    %v3696 = vsel %vm3441, %v3694, 0
    %3698 = vmatprep.subr.mxu0 0.0
    %3699 = vmatpush1.msra.mxu0 0.0
    %3700 = vmatprep.subr.mxu0 0.0
    %3701 = vmatpush1.msra.mxu0 0.0
    %3702 = vmatprep.subr.mxu0 0.0
    %3703 = vmatpush1.msra.mxu0 0.0
    %3704 = vmatprep.subr.mxu0 0.0
    %3705 = vmatpush1.msra.mxu0 0.0
    %3706 = vmatprep.subr.mxu0 0.0
    %3707 = vmatpush1.msra.mxu0 0.0
    %3708 = vmatprep.subr.mxu0 0.0
    %3709 = vmatpush1.msra.mxu0 0.0
    %3710 = vmatprep.subr.mxu0 0.0
    %3711 = vmatpush1.msra.mxu0 0.0
    %3712 = vmatprep.subr.mxu0 0.0
    %3713 = vmatpush1.msra.mxu0 0.0
    %3714 = vmatprep.subr.mxu0 0.0
    %3715 = vmatpush1.msra.mxu0 0.0
    %3716 = vmatprep.subr.mxu0 0.0
    %3717 = vmatpush1.msra.mxu0 0.0
    %3718 = vmatprep.subr.mxu0 0.0
    %3719 = vmatpush1.msra.mxu0 0.0
    %3720 = vmatprep.subr.mxu0 0.0
    %3721 = vmatpush1.msra.mxu0 0.0
    %3722 = vmatprep.subr.mxu0 0.0
    %3723 = vmatpush1.msra.mxu0 0.0
    %3724 = vmatprep.subr.mxu0 0.0
    %3725 = vmatpush1.msra.mxu0 0.0
    %3726 = vmatprep.subr.mxu0 0.0
    %3727 = vmatpush1.msra.mxu0 %v3440
    %3728 = vmatprep.subr.mxu0 0.0
    %3729 = vmatpush1.msra.mxu0 %v3439
    %3730 = vmatprep.subr.mxu0 0.0
    %3731 = vmatpush2.msra.mxu0 0.0
    %3732 = vmatprep.subr.mxu0 0.0
    %3733 = vmatpush2.msra.mxu0 0.0
    %3734 = vmatprep.subr.mxu0 0.0
    %3735 = vmatpush2.msra.mxu0 0.0
    %3736 = vmatprep.subr.mxu0 0.0
    %3737 = vmatpush2.msra.mxu0 0.0
    %3738 = vmatprep.subr.mxu0 0.0
    %3739 = vmatpush2.msra.mxu0 0.0
    %3740 = vmatprep.subr.mxu0 0.0
    %3741 = vmatpush2.msra.mxu0 0.0
    %3742 = vmatprep.subr.mxu0 0.0
    %3743 = vmatpush2.msra.mxu0 0.0
    %3744 = vmatprep.subr.mxu0 0.0
    %3745 = vmatpush2.msra.mxu0 0.0
    %3746 = vmatprep.subr.mxu0 0.0
    %3747 = vmatpush2.msra.mxu0 0.0
    %3748 = vmatprep.subr.mxu0 0.0
    %3749 = vmatpush2.msra.mxu0 0.0
    %3750 = vmatprep.subr.mxu0 0.0
    %3751 = vmatpush2.msra.mxu0 0.0
    %3752 = vmatprep.subr.mxu0 0.0
    %3753 = vmatpush2.msra.mxu0 0.0
    %3754 = vmatprep.subr.mxu0 0.0
    %3755 = vmatpush2.msra.mxu0 0.0
    %3756 = vmatprep.subr.mxu0 0.0
    %3757 = vmatpush2.msra.mxu0 0.0
    %3758 = vmatprep.subr.mxu0 0.0
    %3759 = vmatpush2.msra.mxu0 0.0
    %3760 = vmatprep.subr.mxu0 0.0
    %3761 = vmatpush2.msra.mxu0 0.0
    %3762 = vmatprep.mubr.f32.mxu0 0.0
    %3763 = vmatmul.mubr.f32.gmra.mxu0 %v3696
    %v3764 = vpop.f32.mrf.mxu0
    %v3765 = vadd.f32 0.0, %v3764
    %v3766 = vpop.f32.mrf.mxu0
    %3767 = vdwg.mxu0
    %v3768 = vadd.f32 %v94, %v3765
    %v3769 = vsel %vm3516, %v3687, -inf
    %v3770 = vrot.slane %v3769, 4
    %v3771 = vmax.f32 %v3769, %v3770
    %v3772 = vrot.slane %v3771, 2
    %v3773 = vmax.f32 %v3771, %v3772
    %v3774 = vrot.slane %v3773, 1
    %v3775 = vmax.f32 %v3773, %v3774
    %v3777 = vsel %vm3441, %v3775, 0
    %3779 = vmatprep.subr.mxu0 0.0
    %3780 = vmatpush1.msra.mxu0 0.0
    %3781 = vmatprep.subr.mxu0 0.0
    %3782 = vmatpush1.msra.mxu0 0.0
    %3783 = vmatprep.subr.mxu0 0.0
    %3784 = vmatpush1.msra.mxu0 0.0
    %3785 = vmatprep.subr.mxu0 0.0
    %3786 = vmatpush1.msra.mxu0 0.0
    %3787 = vmatprep.subr.mxu0 0.0
    %3788 = vmatpush1.msra.mxu0 0.0
    %3789 = vmatprep.subr.mxu0 0.0
    %3790 = vmatpush1.msra.mxu0 0.0
    %3791 = vmatprep.subr.mxu0 0.0
    %3792 = vmatpush1.msra.mxu0 0.0
    %3793 = vmatprep.subr.mxu0 0.0
    %3794 = vmatpush1.msra.mxu0 0.0
    %3795 = vmatprep.subr.mxu0 0.0
    %3796 = vmatpush1.msra.mxu0 0.0
    %3797 = vmatprep.subr.mxu0 0.0
    %3798 = vmatpush1.msra.mxu0 0.0
    %3799 = vmatprep.subr.mxu0 0.0
    %3800 = vmatpush1.msra.mxu0 0.0
    %3801 = vmatprep.subr.mxu0 0.0
    %3802 = vmatpush1.msra.mxu0 0.0
    %3803 = vmatprep.subr.mxu0 0.0
    %3804 = vmatpush1.msra.mxu0 0.0
    %3805 = vmatprep.subr.mxu0 0.0
    %3806 = vmatpush1.msra.mxu0 0.0
    %3807 = vmatprep.subr.mxu0 0.0
    %3808 = vmatpush1.msra.mxu0 %v3526
    %3809 = vmatprep.subr.mxu0 0.0
    %3810 = vmatpush1.msra.mxu0 %v3525
    %3811 = vmatprep.subr.mxu0 0.0
    %3812 = vmatpush2.msra.mxu0 0.0
    %3813 = vmatprep.subr.mxu0 0.0
    %3814 = vmatpush2.msra.mxu0 0.0
    %3815 = vmatprep.subr.mxu0 0.0
    %3816 = vmatpush2.msra.mxu0 0.0
    %3817 = vmatprep.subr.mxu0 0.0
    %3818 = vmatpush2.msra.mxu0 0.0
    %3819 = vmatprep.subr.mxu0 0.0
    %3820 = vmatpush2.msra.mxu0 0.0
    %3821 = vmatprep.subr.mxu0 0.0
    %3822 = vmatpush2.msra.mxu0 0.0
    %3823 = vmatprep.subr.mxu0 0.0
    %3824 = vmatpush2.msra.mxu0 0.0
    %3825 = vmatprep.subr.mxu0 0.0
    %3826 = vmatpush2.msra.mxu0 0.0
    %3827 = vmatprep.subr.mxu0 0.0
    %3828 = vmatpush2.msra.mxu0 0.0
    %3829 = vmatprep.subr.mxu0 0.0
    %3830 = vmatpush2.msra.mxu0 0.0
    %3831 = vmatprep.subr.mxu0 0.0
    %3832 = vmatpush2.msra.mxu0 0.0
    %3833 = vmatprep.subr.mxu0 0.0
    %3834 = vmatpush2.msra.mxu0 0.0
    %3835 = vmatprep.subr.mxu0 0.0
    %3836 = vmatpush2.msra.mxu0 0.0
    %3837 = vmatprep.subr.mxu0 0.0
    %3838 = vmatpush2.msra.mxu0 0.0
    %3839 = vmatprep.subr.mxu0 0.0
    %3840 = vmatpush2.msra.mxu0 0.0
    %3841 = vmatprep.subr.mxu0 0.0
    %3842 = vmatpush2.msra.mxu0 0.0
    %3843 = vmatprep.mubr.f32.mxu0 0.0
    %3844 = vmatmul.mubr.f32.gmra.mxu0 %v3777
    %v3845 = vpop.f32.mrf.mxu0
    %v3846 = vadd.f32 0.0, %v3845
    %v3847 = vpop.f32.mrf.mxu0
    %3848 = vdwg.mxu0
    %v3849 = vadd.f32 %v3768, %v3846
    %v3850 = vsel %vm3601, %v3687, -inf
    %v3851 = vrot.slane %v3850, 4
    %v3852 = vmax.f32 %v3850, %v3851
    %v3853 = vrot.slane %v3852, 2
    %v3854 = vmax.f32 %v3852, %v3853
    %v3855 = vrot.slane %v3854, 1
    %v3856 = vmax.f32 %v3854, %v3855
    %v3858 = vsel %vm3441, %v3856, 0
    %3860 = vmatprep.subr.mxu0 0.0
    %3861 = vmatpush1.msra.mxu0 0.0
    %3862 = vmatprep.subr.mxu0 0.0
    %3863 = vmatpush1.msra.mxu0 0.0
    %3864 = vmatprep.subr.mxu0 0.0
    %3865 = vmatpush1.msra.mxu0 0.0
    %3866 = vmatprep.subr.mxu0 0.0
    %3867 = vmatpush1.msra.mxu0 0.0
    %3868 = vmatprep.subr.mxu0 0.0
    %3869 = vmatpush1.msra.mxu0 0.0
    %3870 = vmatprep.subr.mxu0 0.0
    %3871 = vmatpush1.msra.mxu0 0.0
    %3872 = vmatprep.subr.mxu0 0.0
    %3873 = vmatpush1.msra.mxu0 0.0
    %3874 = vmatprep.subr.mxu0 0.0
    %3875 = vmatpush1.msra.mxu0 0.0
    %3876 = vmatprep.subr.mxu0 0.0
    %3877 = vmatpush1.msra.mxu0 0.0
    %3878 = vmatprep.subr.mxu0 0.0
    %3879 = vmatpush1.msra.mxu0 0.0
    %3880 = vmatprep.subr.mxu0 0.0
    %3881 = vmatpush1.msra.mxu0 0.0
    %3882 = vmatprep.subr.mxu0 0.0
    %3883 = vmatpush1.msra.mxu0 0.0
    %3884 = vmatprep.subr.mxu0 0.0
    %3885 = vmatpush1.msra.mxu0 0.0
    %3886 = vmatprep.subr.mxu0 0.0
    %3887 = vmatpush1.msra.mxu0 0.0
    %3888 = vmatprep.subr.mxu0 0.0
    %3889 = vmatpush1.msra.mxu0 %v3611
    %3890 = vmatprep.subr.mxu0 0.0
    %3891 = vmatpush1.msra.mxu0 %v3610
    %3892 = vmatprep.subr.mxu0 0.0
    %3893 = vmatpush2.msra.mxu0 0.0
    %3894 = vmatprep.subr.mxu0 0.0
    %3895 = vmatpush2.msra.mxu0 0.0
    %3896 = vmatprep.subr.mxu0 0.0
    %3897 = vmatpush2.msra.mxu0 0.0
    %3898 = vmatprep.subr.mxu0 0.0
    %3899 = vmatpush2.msra.mxu0 0.0
    %3900 = vmatprep.subr.mxu0 0.0
    %3901 = vmatpush2.msra.mxu0 0.0
    %3902 = vmatprep.subr.mxu0 0.0
    %3903 = vmatpush2.msra.mxu0 0.0
    %3904 = vmatprep.subr.mxu0 0.0
    %3905 = vmatpush2.msra.mxu0 0.0
    %3906 = vmatprep.subr.mxu0 0.0
    %3907 = vmatpush2.msra.mxu0 0.0
    %3908 = vmatprep.subr.mxu0 0.0
    %3909 = vmatpush2.msra.mxu0 0.0
    %3910 = vmatprep.subr.mxu0 0.0
    %3911 = vmatpush2.msra.mxu0 0.0
    %3912 = vmatprep.subr.mxu0 0.0
    %3913 = vmatpush2.msra.mxu0 0.0
    %3914 = vmatprep.subr.mxu0 0.0
    %3915 = vmatpush2.msra.mxu0 0.0
    %3916 = vmatprep.subr.mxu0 0.0
    %3917 = vmatpush2.msra.mxu0 0.0
    %3918 = vmatprep.subr.mxu0 0.0
    %3919 = vmatpush2.msra.mxu0 0.0
    %3920 = vmatprep.subr.mxu0 0.0
    %3921 = vmatpush2.msra.mxu0 0.0
    %3922 = vmatprep.subr.mxu0 0.0
    %3923 = vmatpush2.msra.mxu0 0.0
    %3924 = vmatprep.mubr.f32.mxu0 0.0
    %3925 = vmatmul.mubr.f32.gmra.mxu0 %v3858
    %v3926 = vpop.f32.mrf.mxu0
    %v3927 = vadd.f32 0.0, %v3926
    %v3928 = vpop.f32.mrf.mxu0
    %3929 = vdwg.mxu0
    %v3930 = vadd.f32 %v3849, %v3927
    %v3932 = vlaneseq
    %v3933 = vshrl.u32 %v3932, 7
    %v3934 = vsub.s32 0, %v3933
    %v3935 = vrot.slane %v3930, %v3934
    %vm3937 = vcmask 1040384
    %v3938 = vsel %vm3937, %v3685, %v3935
    %v3939 = vld [vmem:[#allocation8] sm:$0xff]
    %v3940 = vld [vmem:[#allocation8 + $0x8] sm:$0xff]
    %v3941 = vld [vmem:[#allocation8 + $0x10] sm:$0xff]
    %v3942 = vld [vmem:[#allocation8 + $0x18] sm:$0xff]
    %v3943 = vld [vmem:[#allocation8 + $0x20] sm:$0xff]
    %v3944 = vld [vmem:[#allocation8 + $0x28] sm:$0xff]
    %v3945 = vld [vmem:[#allocation8 + $0x30] sm:$0xf]
    %v3946 = vld [vmem:[#allocation8 + $0x34] sm:$0xff]
    %v3947 = vld [vmem:[#allocation8 + $0x3c] sm:$0xff]
    %v3948 = vld [vmem:[#allocation8 + $0x44] sm:$0xff]
    %v3949 = vld [vmem:[#allocation8 + $0x4c] sm:$0xff]
    %v3950 = vld [vmem:[#allocation8 + $0x54] sm:$0xff]
    %v3951 = vld [vmem:[#allocation8 + $0x5c] sm:$0xff]
    %v3952 = vld [vmem:[#allocation8 + $0x64] sm:$0xf]
    %v3953 = vld [vmem:[#allocation8 + $0x68] sm:$0xff]
    %v3954 = vld [vmem:[#allocation8 + $0x70] sm:$0xff]
    %v3955 = vld [vmem:[#allocation8 + $0x78] sm:$0xff]
    %v3956 = vld [vmem:[#allocation8 + $0x80] sm:$0xff]
    %v3957 = vld [vmem:[#allocation8 + $0x88] sm:$0xff]
    %v3958 = vld [vmem:[#allocation8 + $0x90] sm:$0xff]
    %v3959 = vld [vmem:[#allocation8 + $0x98] sm:$0xf]
    %v3960 = vld [vmem:[#allocation8 + $0x9c] sm:$0xff]
    %v3961 = vld [vmem:[#allocation8 + $0xa4] sm:$0xff]
    %v3962 = vld [vmem:[#allocation8 + $0xac] sm:$0xff]
    %v3963 = vld [vmem:[#allocation8 + $0xb4] sm:$0xff]
    %v3964 = vld [vmem:[#allocation8 + $0xbc] sm:$0xff]
    %v3965 = vld [vmem:[#allocation8 + $0xc4] sm:$0xff]
    %v3966 = vld [vmem:[#allocation8 + $0xcc] sm:$0xf]
    %v3967 = vld [vmem:[#allocation8 + $0xd0] sm:$0xff]
    %v3968 = vld [vmem:[#allocation8 + $0xd8] sm:$0xff]
    %v3969 = vld [vmem:[#allocation8 + $0xe0] sm:$0xff]
    %v3970 = vld [vmem:[#allocation8 + $0xe8] sm:$0xff]
    %v3971 = vld [vmem:[#allocation8 + $0xf0] sm:$0xff]
    %v3972 = vld [vmem:[#allocation8 + $0xf8] sm:$0xff]
    %v3973 = vld [vmem:[#allocation8 + $0x100] sm:$0xf]
    %v3974 = vld [vmem:[#allocation8 + $0x104] sm:$0xff]
    %v3975 = vld [vmem:[#allocation8 + $0x10c] sm:$0xff]
    %v3976 = vld [vmem:[#allocation8 + $0x114] sm:$0xff]
    %v3977 = vld [vmem:[#allocation8 + $0x11c] sm:$0xff]
    %v3978 = vld [vmem:[#allocation8 + $0x124] sm:$0xff]
    %v3979 = vld [vmem:[#allocation8 + $0x12c] sm:$0xff]
    %v3980 = vld [vmem:[#allocation8 + $0x134] sm:$0xf]
    %v3981 = vld [vmem:[#allocation8 + $0x138] sm:$0x11]
    %v3982 = vld [vmem:[#allocation8 + $0x140] sm:$0x11]
    %v3983 = vld [vmem:[#allocation8 + $0x148] sm:$0x11]
    %v3984 = vld [vmem:[#allocation8 + $0x150] sm:$0x11]
    %v3985 = vld [vmem:[#allocation8 + $0x158] sm:$0x11]
    %v3986 = vld [vmem:[#allocation8 + $0x160] sm:$0x11]
    %v3987 = vld [vmem:[#allocation8 + $0x168] sm:$0x1]
    %v3988 = vunpack.c.l.bf16 %v3939
    %v3989 = vunpack.c.h.bf16 %v3939
    %v3990 = vunpack.c.l.bf16 %v3940
    %v3991 = vunpack.c.h.bf16 %v3940
    %v3992 = vunpack.c.l.bf16 %v3941
    %v3993 = vunpack.c.h.bf16 %v3941
    %v3994 = vunpack.c.l.bf16 %v3942
    %v3995 = vunpack.c.h.bf16 %v3942
    %v3996 = vunpack.c.l.bf16 %v3943
    %v3997 = vunpack.c.h.bf16 %v3943
    %v3998 = vunpack.c.l.bf16 %v3944
    %v3999 = vunpack.c.h.bf16 %v3944
    %v4000 = vunpack.c.l.bf16 %v3945
    %v4001 = vunpack.c.l.bf16 %v3946
    %v4002 = vunpack.c.h.bf16 %v3946
    %v4003 = vunpack.c.l.bf16 %v3947
    %v4004 = vunpack.c.h.bf16 %v3947
    %v4005 = vunpack.c.l.bf16 %v3948
    %v4006 = vunpack.c.h.bf16 %v3948
    %v4007 = vunpack.c.l.bf16 %v3949
    %v4008 = vunpack.c.h.bf16 %v3949
    %v4009 = vunpack.c.l.bf16 %v3950
    %v4010 = vunpack.c.h.bf16 %v3950
    %v4011 = vunpack.c.l.bf16 %v3951
    %v4012 = vunpack.c.h.bf16 %v3951
    %v4013 = vunpack.c.l.bf16 %v3952
    %v4014 = vunpack.c.l.bf16 %v3953
    %v4015 = vunpack.c.h.bf16 %v3953
    %v4016 = vunpack.c.l.bf16 %v3954
    %v4017 = vunpack.c.h.bf16 %v3954
    %v4018 = vunpack.c.l.bf16 %v3955
    %v4019 = vunpack.c.h.bf16 %v3955
    %v4020 = vunpack.c.l.bf16 %v3956
    %v4021 = vunpack.c.h.bf16 %v3956
    %v4022 = vunpack.c.l.bf16 %v3957
    %v4023 = vunpack.c.h.bf16 %v3957
    %v4024 = vunpack.c.l.bf16 %v3958
    %v4025 = vunpack.c.h.bf16 %v3958
    %v4026 = vunpack.c.l.bf16 %v3959
    %v4027 = vunpack.c.l.bf16 %v3960
    %v4028 = vunpack.c.h.bf16 %v3960
    %v4029 = vunpack.c.l.bf16 %v3961
    %v4030 = vunpack.c.h.bf16 %v3961
    %v4031 = vunpack.c.l.bf16 %v3962
    %v4032 = vunpack.c.h.bf16 %v3962
    %v4033 = vunpack.c.l.bf16 %v3963
    %v4034 = vunpack.c.h.bf16 %v3963
    %v4035 = vunpack.c.l.bf16 %v3964
    %v4036 = vunpack.c.h.bf16 %v3964
    %v4037 = vunpack.c.l.bf16 %v3965
    %v4038 = vunpack.c.h.bf16 %v3965
    %v4039 = vunpack.c.l.bf16 %v3966
    %v4040 = vunpack.c.l.bf16 %v3967
    %v4041 = vunpack.c.h.bf16 %v3967
    %v4042 = vunpack.c.l.bf16 %v3968
    %v4043 = vunpack.c.h.bf16 %v3968
    %v4044 = vunpack.c.l.bf16 %v3969
    %v4045 = vunpack.c.h.bf16 %v3969
    %v4046 = vunpack.c.l.bf16 %v3970
    %v4047 = vunpack.c.h.bf16 %v3970
    %v4048 = vunpack.c.l.bf16 %v3971
    %v4049 = vunpack.c.h.bf16 %v3971
    %v4050 = vunpack.c.l.bf16 %v3972
    %v4051 = vunpack.c.h.bf16 %v3972
    %v4052 = vunpack.c.l.bf16 %v3973
    %v4053 = vunpack.c.l.bf16 %v3974
    %v4054 = vunpack.c.h.bf16 %v3974
    %v4055 = vunpack.c.l.bf16 %v3975
    %v4056 = vunpack.c.h.bf16 %v3975
    %v4057 = vunpack.c.l.bf16 %v3976
    %v4058 = vunpack.c.h.bf16 %v3976
    %v4059 = vunpack.c.l.bf16 %v3977
    %v4060 = vunpack.c.h.bf16 %v3977
    %v4061 = vunpack.c.l.bf16 %v3978
    %v4062 = vunpack.c.h.bf16 %v3978
    %v4063 = vunpack.c.l.bf16 %v3979
    %v4064 = vunpack.c.h.bf16 %v3979
    %v4065 = vunpack.c.l.bf16 %v3980
    %v4066 = vunpack.c.l.bf16 %v3981
    %v4067 = vunpack.c.h.bf16 %v3981
    %v4068 = vunpack.c.l.bf16 %v3982
    %v4069 = vunpack.c.h.bf16 %v3982
    %v4070 = vunpack.c.l.bf16 %v3983
    %v4071 = vunpack.c.h.bf16 %v3983
    %v4072 = vunpack.c.l.bf16 %v3984
    %v4073 = vunpack.c.h.bf16 %v3984
    %v4074 = vunpack.c.l.bf16 %v3985
    %v4075 = vunpack.c.h.bf16 %v3985
    %v4076 = vunpack.c.l.bf16 %v3986
    %v4077 = vunpack.c.h.bf16 %v3986
    %v4078 = vunpack.c.l.bf16 %v3987
    %v4079 = vld [vmem:[#allocation10] sm:$0xff]
    %v4080 = vld [vmem:[#allocation10 + $0x8] sm:$0x1f]
    %v4083 = vlaneseq
    %v4084 = vshrl.u32 %v4083, 7
    %v4085 = vsub.s32 0, %v4084
    %v4086 = vrot.slane %v4079, %v4085
    %v4087 = vlaneseq
    %v4088 = vshrl.u32 %v4087, 7
    %v4089 = vsub.s32 1, %v4088
    %v4090 = vrot.slane %v4079, %v4089
    %v4091 = vlaneseq
    %v4092 = vshrl.u32 %v4091, 7
    %v4093 = vsub.s32 2, %v4092
    %v4094 = vrot.slane %v4079, %v4093
    %v4095 = vlaneseq
    %v4096 = vshrl.u32 %v4095, 7
    %v4097 = vsub.s32 3, %v4096
    %v4098 = vrot.slane %v4079, %v4097
    %v4099 = vlaneseq
    %v4100 = vshrl.u32 %v4099, 7
    %v4101 = vsub.s32 4, %v4100
    %v4102 = vrot.slane %v4079, %v4101
    %v4103 = vlaneseq
    %v4104 = vshrl.u32 %v4103, 7
    %v4105 = vsub.s32 5, %v4104
    %v4106 = vrot.slane %v4079, %v4105
    %v4107 = vlaneseq
    %v4108 = vshrl.u32 %v4107, 7
    %v4109 = vsub.s32 6, %v4108
    %v4110 = vrot.slane %v4079, %v4109
    %v4111 = vlaneseq
    %v4112 = vshrl.u32 %v4111, 7
    %v4113 = vsub.s32 7, %v4112
    %v4114 = vrot.slane %v4079, %v4113
    %v4115 = vlaneseq
    %v4116 = vshrl.u32 %v4115, 7
    %v4117 = vsub.s32 0, %v4116
    %v4118 = vrot.slane %v4080, %v4117
    %v4119 = vlaneseq
    %v4120 = vshrl.u32 %v4119, 7
    %v4121 = vsub.s32 1, %v4120
    %v4122 = vrot.slane %v4080, %v4121
    %v4123 = vlaneseq
    %v4124 = vshrl.u32 %v4123, 7
    %v4125 = vsub.s32 2, %v4124
    %v4126 = vrot.slane %v4080, %v4125
    %v4127 = vlaneseq
    %v4128 = vshrl.u32 %v4127, 7
    %v4129 = vsub.s32 3, %v4128
    %v4130 = vrot.slane %v4080, %v4129
    %v4131 = vlaneseq
    %v4132 = vshrl.u32 %v4131, 7
    %v4133 = vsub.s32 4, %v4132
    %v4134 = vrot.slane %v4080, %v4133
    %vm4148 = vcmask 408576
    %v4150 = vsel %vm4148, %v3938, 0
    %vm4152 = vcmask 1041408
    %v4154 = vsel %vm4152, %v4066, 0
    %v4157 = vsel %vm4152, %v4067, 0
    %v4160 = vsel %vm4152, %v4068, 0
    %v4163 = vsel %vm4152, %v4069, 0
    %v4166 = vsel %vm4152, %v4070, 0
    %v4169 = vsel %vm4152, %v4071, 0
    %v4172 = vsel %vm4152, %v4072, 0
    %v4175 = vsel %vm4152, %v4073, 0
    %v4178 = vsel %vm4152, %v4074, 0
    %v4181 = vsel %vm4152, %v4075, 0
    %v4184 = vsel %vm4152, %v4076, 0
    %v4187 = vsel %vm4152, %v4077, 0
    %v4190 = vsel %vm4152, %v4078, 0
    %4192 = vmatprep.subr.mxu0 0.0
    %4193 = vmatpush1.msra.mxu0 0.0
    %4194 = vmatprep.subr.mxu0 0.0
    %4195 = vmatpush1.msra.mxu0 0.0
    %4196 = vmatprep.subr.mxu0 0.0
    %4197 = vmatpush1.msra.mxu0 0.0
    %4198 = vmatprep.subr.mxu0 0.0
    %4199 = vmatpush1.msra.mxu0 0.0
    %4200 = vmatprep.subr.mxu0 0.0
    %4201 = vmatpush1.msra.mxu0 0.0
    %4202 = vmatprep.subr.mxu0 0.0
    %4203 = vmatpush1.msra.mxu0 0.0
    %4204 = vmatprep.subr.mxu0 0.0
    %4205 = vmatpush1.msra.mxu0 0.0
    %4206 = vmatprep.subr.mxu0 0.0
    %4207 = vmatpush1.msra.mxu0 0.0
    %4208 = vmatprep.subr.mxu0 0.0
    %4209 = vmatpush1.msra.mxu0 0.0
    %4210 = vmatprep.subr.mxu0 %v4157
    %4211 = vmatpush1.msra.mxu0 %v4154
    %4212 = vmatprep.subr.mxu0 %v4054
    %4213 = vmatpush1.msra.mxu0 %v4053
    %4214 = vmatprep.subr.mxu0 %v4041
    %4215 = vmatpush1.msra.mxu0 %v4040
    %4216 = vmatprep.subr.mxu0 %v4028
    %4217 = vmatpush1.msra.mxu0 %v4027
    %4218 = vmatprep.subr.mxu0 %v4015
    %4219 = vmatpush1.msra.mxu0 %v4014
    %4220 = vmatprep.subr.mxu0 %v4002
    %4221 = vmatpush1.msra.mxu0 %v4001
    %4222 = vmatprep.subr.mxu0 %v3989
    %4223 = vmatpush1.msra.mxu0 %v3988
    %4224 = vmatprep.subr.mxu0 0.0
    %4225 = vmatpush2.msra.mxu0 0.0
    %4226 = vmatprep.subr.mxu0 0.0
    %4227 = vmatpush2.msra.mxu0 0.0
    %4228 = vmatprep.subr.mxu0 0.0
    %4229 = vmatpush2.msra.mxu0 0.0
    %4230 = vmatprep.subr.mxu0 0.0
    %4231 = vmatpush2.msra.mxu0 0.0
    %4232 = vmatprep.subr.mxu0 0.0
    %4233 = vmatpush2.msra.mxu0 0.0
    %4234 = vmatprep.subr.mxu0 0.0
    %4235 = vmatpush2.msra.mxu0 0.0
    %4236 = vmatprep.subr.mxu0 0.0
    %4237 = vmatpush2.msra.mxu0 0.0
    %4238 = vmatprep.subr.mxu0 0.0
    %4239 = vmatpush2.msra.mxu0 0.0
    %4240 = vmatprep.subr.mxu0 0.0
    %4241 = vmatpush2.msra.mxu0 0.0
    %4242 = vmatprep.subr.mxu0 0.0
    %4243 = vmatpush2.msra.mxu0 0.0
    %4244 = vmatprep.subr.mxu0 0.0
    %4245 = vmatpush2.msra.mxu0 0.0
    %4246 = vmatprep.subr.mxu0 0.0
    %4247 = vmatpush2.msra.mxu0 0.0
    %4248 = vmatprep.subr.mxu0 0.0
    %4249 = vmatpush2.msra.mxu0 0.0
    %4250 = vmatprep.subr.mxu0 0.0
    %4251 = vmatpush2.msra.mxu0 0.0
    %4252 = vmatprep.subr.mxu0 0.0
    %4253 = vmatpush2.msra.mxu0 0.0
    %4254 = vmatprep.subr.mxu0 0.0
    %4255 = vmatpush2.msra.mxu0 0.0
    %4256 = vmatprep.mubr.f32.mxu0 0.0
    %4257 = vmatmul.mubr.f32.gmra.mxu0 %v4150
    %v4258 = vpop.f32.mrf.mxu0
    %v4259 = vadd.f32 %v4086, %v4258
    %v4260 = vpop.f32.mrf.mxu0
    %v4261 = vadd.f32 %v4090, %v4260
    %4262 = vdwg.mxu0
    %4263 = vmatprep.subr.mxu0 0.0
    %4264 = vmatpush1.msra.mxu0 0.0
    %4265 = vmatprep.subr.mxu0 0.0
    %4266 = vmatpush1.msra.mxu0 0.0
    %4267 = vmatprep.subr.mxu0 0.0
    %4268 = vmatpush1.msra.mxu0 0.0
    %4269 = vmatprep.subr.mxu0 0.0
    %4270 = vmatpush1.msra.mxu0 0.0
    %4271 = vmatprep.subr.mxu0 0.0
    %4272 = vmatpush1.msra.mxu0 0.0
    %4273 = vmatprep.subr.mxu0 0.0
    %4274 = vmatpush1.msra.mxu0 0.0
    %4275 = vmatprep.subr.mxu0 0.0
    %4276 = vmatpush1.msra.mxu0 0.0
    %4277 = vmatprep.subr.mxu0 0.0
    %4278 = vmatpush1.msra.mxu0 0.0
    %4279 = vmatprep.subr.mxu0 0.0
    %4280 = vmatpush1.msra.mxu0 0.0
    %4281 = vmatprep.subr.mxu0 %v4163
    %4282 = vmatpush1.msra.mxu0 %v4160
    %4283 = vmatprep.subr.mxu0 %v4056
    %4284 = vmatpush1.msra.mxu0 %v4055
    %4285 = vmatprep.subr.mxu0 %v4043
    %4286 = vmatpush1.msra.mxu0 %v4042
    %4287 = vmatprep.subr.mxu0 %v4030
    %4288 = vmatpush1.msra.mxu0 %v4029
    %4289 = vmatprep.subr.mxu0 %v4017
    %4290 = vmatpush1.msra.mxu0 %v4016
    %4291 = vmatprep.subr.mxu0 %v4004
    %4292 = vmatpush1.msra.mxu0 %v4003
    %4293 = vmatprep.subr.mxu0 %v3991
    %4294 = vmatpush1.msra.mxu0 %v3990
    %4295 = vmatprep.subr.mxu0 0.0
    %4296 = vmatpush2.msra.mxu0 0.0
    %4297 = vmatprep.subr.mxu0 0.0
    %4298 = vmatpush2.msra.mxu0 0.0
    %4299 = vmatprep.subr.mxu0 0.0
    %4300 = vmatpush2.msra.mxu0 0.0
    %4301 = vmatprep.subr.mxu0 0.0
    %4302 = vmatpush2.msra.mxu0 0.0
    %4303 = vmatprep.subr.mxu0 0.0
    %4304 = vmatpush2.msra.mxu0 0.0
    %4305 = vmatprep.subr.mxu0 0.0
    %4306 = vmatpush2.msra.mxu0 0.0
    %4307 = vmatprep.subr.mxu0 0.0
    %4308 = vmatpush2.msra.mxu0 0.0
    %4309 = vmatprep.subr.mxu0 0.0
    %4310 = vmatpush2.msra.mxu0 0.0
    %4311 = vmatprep.subr.mxu0 0.0
    %4312 = vmatpush2.msra.mxu0 0.0
    %4313 = vmatprep.subr.mxu0 0.0
    %4314 = vmatpush2.msra.mxu0 0.0
    %4315 = vmatprep.subr.mxu0 0.0
    %4316 = vmatpush2.msra.mxu0 0.0
    %4317 = vmatprep.subr.mxu0 0.0
    %4318 = vmatpush2.msra.mxu0 0.0
    %4319 = vmatprep.subr.mxu0 0.0
    %4320 = vmatpush2.msra.mxu0 0.0
    %4321 = vmatprep.subr.mxu0 0.0
    %4322 = vmatpush2.msra.mxu0 0.0
    %4323 = vmatprep.subr.mxu0 0.0
    %4324 = vmatpush2.msra.mxu0 0.0
    %4325 = vmatprep.subr.mxu0 0.0
    %4326 = vmatpush2.msra.mxu0 0.0
    %4327 = vmatprep.mubr.f32.mxu0 0.0
    %4328 = vmatmul.mubr.f32.gmra.mxu0 %v4150
    %v4329 = vpop.f32.mrf.mxu0
    %v4330 = vadd.f32 %v4094, %v4329
    %v4331 = vpop.f32.mrf.mxu0
    %v4332 = vadd.f32 %v4098, %v4331
    %4333 = vdwg.mxu0
    %4334 = vmatprep.subr.mxu0 0.0
    %4335 = vmatpush1.msra.mxu0 0.0
    %4336 = vmatprep.subr.mxu0 0.0
    %4337 = vmatpush1.msra.mxu0 0.0
    %4338 = vmatprep.subr.mxu0 0.0
    %4339 = vmatpush1.msra.mxu0 0.0
    %4340 = vmatprep.subr.mxu0 0.0
    %4341 = vmatpush1.msra.mxu0 0.0
    %4342 = vmatprep.subr.mxu0 0.0
    %4343 = vmatpush1.msra.mxu0 0.0
    %4344 = vmatprep.subr.mxu0 0.0
    %4345 = vmatpush1.msra.mxu0 0.0
    %4346 = vmatprep.subr.mxu0 0.0
    %4347 = vmatpush1.msra.mxu0 0.0
    %4348 = vmatprep.subr.mxu0 0.0
    %4349 = vmatpush1.msra.mxu0 0.0
    %4350 = vmatprep.subr.mxu0 0.0
    %4351 = vmatpush1.msra.mxu0 0.0
    %4352 = vmatprep.subr.mxu0 %v4169
    %4353 = vmatpush1.msra.mxu0 %v4166
    %4354 = vmatprep.subr.mxu0 %v4058
    %4355 = vmatpush1.msra.mxu0 %v4057
    %4356 = vmatprep.subr.mxu0 %v4045
    %4357 = vmatpush1.msra.mxu0 %v4044
    %4358 = vmatprep.subr.mxu0 %v4032
    %4359 = vmatpush1.msra.mxu0 %v4031
    %4360 = vmatprep.subr.mxu0 %v4019
    %4361 = vmatpush1.msra.mxu0 %v4018
    %4362 = vmatprep.subr.mxu0 %v4006
    %4363 = vmatpush1.msra.mxu0 %v4005
    %4364 = vmatprep.subr.mxu0 %v3993
    %4365 = vmatpush1.msra.mxu0 %v3992
    %4366 = vmatprep.subr.mxu0 0.0
    %4367 = vmatpush2.msra.mxu0 0.0
    %4368 = vmatprep.subr.mxu0 0.0
    %4369 = vmatpush2.msra.mxu0 0.0
    %4370 = vmatprep.subr.mxu0 0.0
    %4371 = vmatpush2.msra.mxu0 0.0
    %4372 = vmatprep.subr.mxu0 0.0
    %4373 = vmatpush2.msra.mxu0 0.0
    %4374 = vmatprep.subr.mxu0 0.0
    %4375 = vmatpush2.msra.mxu0 0.0
    %4376 = vmatprep.subr.mxu0 0.0
    %4377 = vmatpush2.msra.mxu0 0.0
    %4378 = vmatprep.subr.mxu0 0.0
    %4379 = vmatpush2.msra.mxu0 0.0
    %4380 = vmatprep.subr.mxu0 0.0
    %4381 = vmatpush2.msra.mxu0 0.0
    %4382 = vmatprep.subr.mxu0 0.0
    %4383 = vmatpush2.msra.mxu0 0.0
    %4384 = vmatprep.subr.mxu0 0.0
    %4385 = vmatpush2.msra.mxu0 0.0
    %4386 = vmatprep.subr.mxu0 0.0
    %4387 = vmatpush2.msra.mxu0 0.0
    %4388 = vmatprep.subr.mxu0 0.0
    %4389 = vmatpush2.msra.mxu0 0.0
    %4390 = vmatprep.subr.mxu0 0.0
    %4391 = vmatpush2.msra.mxu0 0.0
    %4392 = vmatprep.subr.mxu0 0.0
    %4393 = vmatpush2.msra.mxu0 0.0
    %4394 = vmatprep.subr.mxu0 0.0
    %4395 = vmatpush2.msra.mxu0 0.0
    %4396 = vmatprep.subr.mxu0 0.0
    %4397 = vmatpush2.msra.mxu0 0.0
    %4398 = vmatprep.mubr.f32.mxu0 0.0
    %4399 = vmatmul.mubr.f32.gmra.mxu0 %v4150
    %v4400 = vpop.f32.mrf.mxu0
    %v4401 = vadd.f32 %v4102, %v4400
    %v4402 = vpop.f32.mrf.mxu0
    %v4403 = vadd.f32 %v4106, %v4402
    %4404 = vdwg.mxu0
    %4405 = vmatprep.subr.mxu0 0.0
    %4406 = vmatpush1.msra.mxu0 0.0
    %4407 = vmatprep.subr.mxu0 0.0
    %4408 = vmatpush1.msra.mxu0 0.0
    %4409 = vmatprep.subr.mxu0 0.0
    %4410 = vmatpush1.msra.mxu0 0.0
    %4411 = vmatprep.subr.mxu0 0.0
    %4412 = vmatpush1.msra.mxu0 0.0
    %4413 = vmatprep.subr.mxu0 0.0
    %4414 = vmatpush1.msra.mxu0 0.0
    %4415 = vmatprep.subr.mxu0 0.0
    %4416 = vmatpush1.msra.mxu0 0.0
    %4417 = vmatprep.subr.mxu0 0.0
    %4418 = vmatpush1.msra.mxu0 0.0
    %4419 = vmatprep.subr.mxu0 0.0
    %4420 = vmatpush1.msra.mxu0 0.0
    %4421 = vmatprep.subr.mxu0 0.0
    %4422 = vmatpush1.msra.mxu0 0.0
    %4423 = vmatprep.subr.mxu0 %v4175
    %4424 = vmatpush1.msra.mxu0 %v4172
    %4425 = vmatprep.subr.mxu0 %v4060
    %4426 = vmatpush1.msra.mxu0 %v4059
    %4427 = vmatprep.subr.mxu0 %v4047
    %4428 = vmatpush1.msra.mxu0 %v4046
    %4429 = vmatprep.subr.mxu0 %v4034
    %4430 = vmatpush1.msra.mxu0 %v4033
    %4431 = vmatprep.subr.mxu0 %v4021
    %4432 = vmatpush1.msra.mxu0 %v4020
    %4433 = vmatprep.subr.mxu0 %v4008
    %4434 = vmatpush1.msra.mxu0 %v4007
    %4435 = vmatprep.subr.mxu0 %v3995
    %4436 = vmatpush1.msra.mxu0 %v3994
    %4437 = vmatprep.subr.mxu0 0.0
    %4438 = vmatpush2.msra.mxu0 0.0
    %4439 = vmatprep.subr.mxu0 0.0
    %4440 = vmatpush2.msra.mxu0 0.0
    %4441 = vmatprep.subr.mxu0 0.0
    %4442 = vmatpush2.msra.mxu0 0.0
    %4443 = vmatprep.subr.mxu0 0.0
    %4444 = vmatpush2.msra.mxu0 0.0
    %4445 = vmatprep.subr.mxu0 0.0
    %4446 = vmatpush2.msra.mxu0 0.0
    %4447 = vmatprep.subr.mxu0 0.0
    %4448 = vmatpush2.msra.mxu0 0.0
    %4449 = vmatprep.subr.mxu0 0.0
    %4450 = vmatpush2.msra.mxu0 0.0
    %4451 = vmatprep.subr.mxu0 0.0
    %4452 = vmatpush2.msra.mxu0 0.0
    %4453 = vmatprep.subr.mxu0 0.0
    %4454 = vmatpush2.msra.mxu0 0.0
    %4455 = vmatprep.subr.mxu0 0.0
    %4456 = vmatpush2.msra.mxu0 0.0
    %4457 = vmatprep.subr.mxu0 0.0
    %4458 = vmatpush2.msra.mxu0 0.0
    %4459 = vmatprep.subr.mxu0 0.0
    %4460 = vmatpush2.msra.mxu0 0.0
    %4461 = vmatprep.subr.mxu0 0.0
    %4462 = vmatpush2.msra.mxu0 0.0
    %4463 = vmatprep.subr.mxu0 0.0
    %4464 = vmatpush2.msra.mxu0 0.0
    %4465 = vmatprep.subr.mxu0 0.0
    %4466 = vmatpush2.msra.mxu0 0.0
    %4467 = vmatprep.subr.mxu0 0.0
    %4468 = vmatpush2.msra.mxu0 0.0
    %4469 = vmatprep.mubr.f32.mxu0 0.0
    %4470 = vmatmul.mubr.f32.gmra.mxu0 %v4150
    %v4471 = vpop.f32.mrf.mxu0
    %v4472 = vadd.f32 %v4110, %v4471
    %v4473 = vpop.f32.mrf.mxu0
    %v4474 = vadd.f32 %v4114, %v4473
    %4475 = vdwg.mxu0
    %4476 = vmatprep.subr.mxu0 0.0
    %4477 = vmatpush1.msra.mxu0 0.0
    %4478 = vmatprep.subr.mxu0 0.0
    %4479 = vmatpush1.msra.mxu0 0.0
    %4480 = vmatprep.subr.mxu0 0.0
    %4481 = vmatpush1.msra.mxu0 0.0
    %4482 = vmatprep.subr.mxu0 0.0
    %4483 = vmatpush1.msra.mxu0 0.0
    %4484 = vmatprep.subr.mxu0 0.0
    %4485 = vmatpush1.msra.mxu0 0.0
    %4486 = vmatprep.subr.mxu0 0.0
    %4487 = vmatpush1.msra.mxu0 0.0
    %4488 = vmatprep.subr.mxu0 0.0
    %4489 = vmatpush1.msra.mxu0 0.0
    %4490 = vmatprep.subr.mxu0 0.0
    %4491 = vmatpush1.msra.mxu0 0.0
    %4492 = vmatprep.subr.mxu0 0.0
    %4493 = vmatpush1.msra.mxu0 0.0
    %4494 = vmatprep.subr.mxu0 %v4181
    %4495 = vmatpush1.msra.mxu0 %v4178
    %4496 = vmatprep.subr.mxu0 %v4062
    %4497 = vmatpush1.msra.mxu0 %v4061
    %4498 = vmatprep.subr.mxu0 %v4049
    %4499 = vmatpush1.msra.mxu0 %v4048
    %4500 = vmatprep.subr.mxu0 %v4036
    %4501 = vmatpush1.msra.mxu0 %v4035
    %4502 = vmatprep.subr.mxu0 %v4023
    %4503 = vmatpush1.msra.mxu0 %v4022
    %4504 = vmatprep.subr.mxu0 %v4010
    %4505 = vmatpush1.msra.mxu0 %v4009
    %4506 = vmatprep.subr.mxu0 %v3997
    %4507 = vmatpush1.msra.mxu0 %v3996
    %4508 = vmatprep.subr.mxu0 0.0
    %4509 = vmatpush2.msra.mxu0 0.0
    %4510 = vmatprep.subr.mxu0 0.0
    %4511 = vmatpush2.msra.mxu0 0.0
    %4512 = vmatprep.subr.mxu0 0.0
    %4513 = vmatpush2.msra.mxu0 0.0
    %4514 = vmatprep.subr.mxu0 0.0
    %4515 = vmatpush2.msra.mxu0 0.0
    %4516 = vmatprep.subr.mxu0 0.0
    %4517 = vmatpush2.msra.mxu0 0.0
    %4518 = vmatprep.subr.mxu0 0.0
    %4519 = vmatpush2.msra.mxu0 0.0
    %4520 = vmatprep.subr.mxu0 0.0
    %4521 = vmatpush2.msra.mxu0 0.0
    %4522 = vmatprep.subr.mxu0 0.0
    %4523 = vmatpush2.msra.mxu0 0.0
    %4524 = vmatprep.subr.mxu0 0.0
    %4525 = vmatpush2.msra.mxu0 0.0
    %4526 = vmatprep.subr.mxu0 0.0
    %4527 = vmatpush2.msra.mxu0 0.0
    %4528 = vmatprep.subr.mxu0 0.0
    %4529 = vmatpush2.msra.mxu0 0.0
    %4530 = vmatprep.subr.mxu0 0.0
    %4531 = vmatpush2.msra.mxu0 0.0
    %4532 = vmatprep.subr.mxu0 0.0
    %4533 = vmatpush2.msra.mxu0 0.0
    %4534 = vmatprep.subr.mxu0 0.0
    %4535 = vmatpush2.msra.mxu0 0.0
    %4536 = vmatprep.subr.mxu0 0.0
    %4537 = vmatpush2.msra.mxu0 0.0
    %4538 = vmatprep.subr.mxu0 0.0
    %4539 = vmatpush2.msra.mxu0 0.0
    %4540 = vmatprep.mubr.f32.mxu0 0.0
    %4541 = vmatmul.mubr.f32.gmra.mxu0 %v4150
    %v4542 = vpop.f32.mrf.mxu0
    %v4543 = vadd.f32 %v4118, %v4542
    %v4544 = vpop.f32.mrf.mxu0
    %v4545 = vadd.f32 %v4122, %v4544
    %4546 = vdwg.mxu0
    %4547 = vmatprep.subr.mxu0 0.0
    %4548 = vmatpush1.msra.mxu0 0.0
    %4549 = vmatprep.subr.mxu0 0.0
    %4550 = vmatpush1.msra.mxu0 0.0
    %4551 = vmatprep.subr.mxu0 0.0
    %4552 = vmatpush1.msra.mxu0 0.0
    %4553 = vmatprep.subr.mxu0 0.0
    %4554 = vmatpush1.msra.mxu0 0.0
    %4555 = vmatprep.subr.mxu0 0.0
    %4556 = vmatpush1.msra.mxu0 0.0
    %4557 = vmatprep.subr.mxu0 0.0
    %4558 = vmatpush1.msra.mxu0 0.0
    %4559 = vmatprep.subr.mxu0 0.0
    %4560 = vmatpush1.msra.mxu0 0.0
    %4561 = vmatprep.subr.mxu0 0.0
    %4562 = vmatpush1.msra.mxu0 0.0
    %4563 = vmatprep.subr.mxu0 0.0
    %4564 = vmatpush1.msra.mxu0 0.0
    %4565 = vmatprep.subr.mxu0 %v4187
    %4566 = vmatpush1.msra.mxu0 %v4184
    %4567 = vmatprep.subr.mxu0 %v4064
    %4568 = vmatpush1.msra.mxu0 %v4063
    %4569 = vmatprep.subr.mxu0 %v4051
    %4570 = vmatpush1.msra.mxu0 %v4050
    %4571 = vmatprep.subr.mxu0 %v4038
    %4572 = vmatpush1.msra.mxu0 %v4037
    %4573 = vmatprep.subr.mxu0 %v4025
    %4574 = vmatpush1.msra.mxu0 %v4024
    %4575 = vmatprep.subr.mxu0 %v4012
    %4576 = vmatpush1.msra.mxu0 %v4011
    %4577 = vmatprep.subr.mxu0 %v3999
    %4578 = vmatpush1.msra.mxu0 %v3998
    %4579 = vmatprep.subr.mxu0 0.0
    %4580 = vmatpush2.msra.mxu0 0.0
    %4581 = vmatprep.subr.mxu0 0.0
    %4582 = vmatpush2.msra.mxu0 0.0
    %4583 = vmatprep.subr.mxu0 0.0
    %4584 = vmatpush2.msra.mxu0 0.0
    %4585 = vmatprep.subr.mxu0 0.0
    %4586 = vmatpush2.msra.mxu0 0.0
    %4587 = vmatprep.subr.mxu0 0.0
    %4588 = vmatpush2.msra.mxu0 0.0
    %4589 = vmatprep.subr.mxu0 0.0
    %4590 = vmatpush2.msra.mxu0 0.0
    %4591 = vmatprep.subr.mxu0 0.0
    %4592 = vmatpush2.msra.mxu0 0.0
    %4593 = vmatprep.subr.mxu0 0.0
    %4594 = vmatpush2.msra.mxu0 0.0
    %4595 = vmatprep.subr.mxu0 0.0
    %4596 = vmatpush2.msra.mxu0 0.0
    %4597 = vmatprep.subr.mxu0 0.0
    %4598 = vmatpush2.msra.mxu0 0.0
    %4599 = vmatprep.subr.mxu0 0.0
    %4600 = vmatpush2.msra.mxu0 0.0
    %4601 = vmatprep.subr.mxu0 0.0
    %4602 = vmatpush2.msra.mxu0 0.0
    %4603 = vmatprep.subr.mxu0 0.0
    %4604 = vmatpush2.msra.mxu0 0.0
    %4605 = vmatprep.subr.mxu0 0.0
    %4606 = vmatpush2.msra.mxu0 0.0
    %4607 = vmatprep.subr.mxu0 0.0
    %4608 = vmatpush2.msra.mxu0 0.0
    %4609 = vmatprep.subr.mxu0 0.0
    %4610 = vmatpush2.msra.mxu0 0.0
    %4611 = vmatprep.mubr.f32.mxu0 0.0
    %4612 = vmatmul.mubr.f32.gmra.mxu0 %v4150
    %v4613 = vpop.f32.mrf.mxu0
    %v4614 = vadd.f32 %v4126, %v4613
    %v4615 = vpop.f32.mrf.mxu0
    %v4616 = vadd.f32 %v4130, %v4615
    %4617 = vdwg.mxu0
    %4618 = vmatprep.subr.mxu0 0.0
    %4619 = vmatpush1.msra.mxu0 0.0
    %4620 = vmatprep.subr.mxu0 0.0
    %4621 = vmatpush1.msra.mxu0 0.0
    %4622 = vmatprep.subr.mxu0 0.0
    %4623 = vmatpush1.msra.mxu0 0.0
    %4624 = vmatprep.subr.mxu0 0.0
    %4625 = vmatpush1.msra.mxu0 0.0
    %4626 = vmatprep.subr.mxu0 0.0
    %4627 = vmatpush1.msra.mxu0 0.0
    %4628 = vmatprep.subr.mxu0 0.0
    %4629 = vmatpush1.msra.mxu0 0.0
    %4630 = vmatprep.subr.mxu0 0.0
    %4631 = vmatpush1.msra.mxu0 0.0
    %4632 = vmatprep.subr.mxu0 0.0
    %4633 = vmatpush1.msra.mxu0 0.0
    %4634 = vmatprep.subr.mxu0 0.0
    %4635 = vmatpush1.msra.mxu0 0.0
    %4636 = vmatprep.subr.mxu0 0.0
    %4637 = vmatpush1.msra.mxu0 %v4190
    %4638 = vmatprep.subr.mxu0 0.0
    %4639 = vmatpush1.msra.mxu0 %v4065
    %4640 = vmatprep.subr.mxu0 0.0
    %4641 = vmatpush1.msra.mxu0 %v4052
    %4642 = vmatprep.subr.mxu0 0.0
    %4643 = vmatpush1.msra.mxu0 %v4039
    %4644 = vmatprep.subr.mxu0 0.0
    %4645 = vmatpush1.msra.mxu0 %v4026
    %4646 = vmatprep.subr.mxu0 0.0
    %4647 = vmatpush1.msra.mxu0 %v4013
    %4648 = vmatprep.subr.mxu0 0.0
    %4649 = vmatpush1.msra.mxu0 %v4000
    %4650 = vmatprep.subr.mxu0 0.0
    %4651 = vmatpush2.msra.mxu0 0.0
    %4652 = vmatprep.subr.mxu0 0.0
    %4653 = vmatpush2.msra.mxu0 0.0
    %4654 = vmatprep.subr.mxu0 0.0
    %4655 = vmatpush2.msra.mxu0 0.0
    %4656 = vmatprep.subr.mxu0 0.0
    %4657 = vmatpush2.msra.mxu0 0.0
    %4658 = vmatprep.subr.mxu0 0.0
    %4659 = vmatpush2.msra.mxu0 0.0
    %4660 = vmatprep.subr.mxu0 0.0
    %4661 = vmatpush2.msra.mxu0 0.0
    %4662 = vmatprep.subr.mxu0 0.0
    %4663 = vmatpush2.msra.mxu0 0.0
    %4664 = vmatprep.subr.mxu0 0.0
    %4665 = vmatpush2.msra.mxu0 0.0
    %4666 = vmatprep.subr.mxu0 0.0
    %4667 = vmatpush2.msra.mxu0 0.0
    %4668 = vmatprep.subr.mxu0 0.0
    %4669 = vmatpush2.msra.mxu0 0.0
    %4670 = vmatprep.subr.mxu0 0.0
    %4671 = vmatpush2.msra.mxu0 0.0
    %4672 = vmatprep.subr.mxu0 0.0
    %4673 = vmatpush2.msra.mxu0 0.0
    %4674 = vmatprep.subr.mxu0 0.0
    %4675 = vmatpush2.msra.mxu0 0.0
    %4676 = vmatprep.subr.mxu0 0.0
    %4677 = vmatpush2.msra.mxu0 0.0
    %4678 = vmatprep.subr.mxu0 0.0
    %4679 = vmatpush2.msra.mxu0 0.0
    %4680 = vmatprep.subr.mxu0 0.0
    %4681 = vmatpush2.msra.mxu0 0.0
    %4682 = vmatprep.mubr.f32.mxu0 0.0
    %4683 = vmatmul.mubr.f32.gmra.mxu0 %v4150
    %v4684 = vpop.f32.mrf.mxu0
    %v4685 = vadd.f32 %v4134, %v4684
    %v4686 = vpop.f32.mrf.mxu0
    %4687 = vdwg.mxu0
    %v4701 = vcombine.low %v4259, %v4261
    %v4702 = vcombine.low %v4330, %v4332
    %v4704 = vunpack.c.l.s4 1983009808
    %v4705 = vunpack.c.0.s8 %v4704
    %v4706 = vlaneseq
    %v4707 = vshrl.u32 %v4706, 7
    %v4708 = vsub.s32 %v4705, %v4707
    %v4709 = vrot.slane %v4701, %v4708
    %v4711 = vunpack.c.l.s4 1983009808
    %v4712 = vunpack.c.0.s8 %v4711
    %v4713 = vlaneseq
    %v4714 = vshrl.u32 %v4713, 7
    %v4715 = vsub.s32 %v4712, %v4714
    %v4716 = vrot.slane %v4702, %v4715
    %v4717 = vcombine.low %v4709, %v4716
    %v4718 = vcombine.low %v4401, %v4403
    %v4719 = vcombine.low %v4472, %v4474
    %v4721 = vunpack.c.l.s4 1983009808
    %v4722 = vunpack.c.0.s8 %v4721
    %v4723 = vlaneseq
    %v4724 = vshrl.u32 %v4723, 7
    %v4725 = vsub.s32 %v4722, %v4724
    %v4726 = vrot.slane %v4718, %v4725
    %v4728 = vunpack.c.l.s4 1983009808
    %v4729 = vunpack.c.0.s8 %v4728
    %v4730 = vlaneseq
    %v4731 = vshrl.u32 %v4730, 7
    %v4732 = vsub.s32 %v4729, %v4731
    %v4733 = vrot.slane %v4719, %v4732
    %v4734 = vcombine.low %v4726, %v4733
    %v4735 = vcombine.low %v4543, %v4545
    %v4736 = vcombine.low %v4614, %v4616
    %v4738 = vunpack.c.l.s4 1983009808
    %v4739 = vunpack.c.0.s8 %v4738
    %v4740 = vlaneseq
    %v4741 = vshrl.u32 %v4740, 7
    %v4742 = vsub.s32 %v4739, %v4741
    %v4743 = vrot.slane %v4735, %v4742
    %v4745 = vunpack.c.l.s4 1983009808
    %v4746 = vunpack.c.0.s8 %v4745
    %v4747 = vlaneseq
    %v4748 = vshrl.u32 %v4747, 7
    %v4749 = vsub.s32 %v4746, %v4748
    %v4750 = vrot.slane %v4736, %v4749
    %v4751 = vcombine.low %v4743, %v4750
    %v4753 = vunpack.c.l.s4 1983009808
    %v4754 = vunpack.c.0.s8 %v4753
    %v4755 = vlaneseq
    %v4756 = vshrl.u32 %v4755, 7
    %v4757 = vsub.s32 %v4754, %v4756
    %v4758 = vrot.slane %v4685, %v4757
    %4763 = vst [vmem:[#allocation11] sm:$0xff] %v4717
    %4764 = vst [vmem:[#allocation11 + $0x8] sm:$0xff] %v4734
    %4765 = vst [vmem:[#allocation11 + $0x10] sm:$0xff] %v4751
    %vm4766 = vcmask 648192
    %4767 = vst.msk [vmem:[#allocation11 + $0x18] sm:$0x3] %vm4766, %v4758
    // Predicated region
    $region50: #{cnn_forward.1} parent=1 // pred_check
      _
    $region51: #{cnn_forward.1} parent=1 // pred_check_branch
      %4769 = sbr.rel (0) target = $region53
    $region52: #{cnn_forward.1} parent=1 // pred_region
      %s4771 = ssub.s32 416, 416
      %4772 = vsyncadd [#allocation4], %s4771
      %s4774 = sshll.u32 [#allocation11], 4
      %s4775 = int_to_ptr.vmem [resolvable:$true] %s4774
      %4777 = dma.vmem_to_hbm [thread:$0]  %s4775, 416, %s7, [#allocation4]
    $region53: #{cnn_forward.1} parent=1 // pred_fallthru
      _
    // Predicated region
    $region54: #{cnn_forward.1} parent=1 // pred_check
      _
    $region55: #{cnn_forward.1} parent=1 // pred_check_branch
      %4779 = sbr.rel (0) target = $region57
    $region56: #{cnn_forward.1} parent=1 // pred_region
      %4780 = dma.done [#allocation4], 416
    $region57: #{cnn_forward.1} parent=1 // pred_fallthru
      _
    %4781 = vsyncpa [#allocation3], 1
    %4782 = vsyncpa [#allocation6], 1
    %4783 = vsyncpa [#allocation9], 1
    %4784 = vsyncpa [#allocation4], 1

</llo_original>
